<compile_context>
chip_gen: v7x
topology: tpu7x:2x2x1
jax: 0.10.0
libtpu: 0.0.40
codegen_flags: <defaults>
</compile_context>

<pallas_src>
import functools
import math

import jax
import jax.numpy as jnp
from jax.experimental import pallas as pl
from jax.experimental.pallas import tpu as pltpu


def _layer_norm(x, g, b, eps=1e-5):
    mu = jnp.mean(x, axis=-1, keepdims=True)
    var = jnp.mean((x - mu) ** 2, axis=-1, keepdims=True)
    return (x - mu) * jax.lax.rsqrt(var + eps) * g + b


# ----------------------------------------------------------------------------
# Fused kernel: one grid step = one batch element, full layer stack + final LN.
# All tensors inside are 2D (rows x D) -> lane-dense MXU matmuls, no relayouts
# beyond the single head-merge lane concat.
# ----------------------------------------------------------------------------
def fused_t2v_encoder_kernel(txt_ref, pos_txt_ref, vid_ref, pos_vid_ref,
                             wq_ref, bq_ref, wk_ref, bk_ref, wv_ref, bv_ref,
                             wo_ref, bo_ref, g1_ref, be1_ref,
                             w1_ref, b1_ref, w2_ref, b2_ref, g2_ref, be2_ref,
                             gn_ref, bn_ref,
                             out_ref, *inter_refs,
                             num_layers, nhead, has_final_norm,
                             write_intermediate):
    D = vid_ref.shape[-1]
    dh = D // nhead

    txt = txt_ref[...].astype(jnp.float32)                          # (St, D)
    k_in = (txt + pos_txt_ref[...].astype(jnp.float32)).astype(jnp.bfloat16)
    v_in = txt.astype(jnp.bfloat16)
    x = vid_ref[...].astype(jnp.float32)                            # (Sv, D)
    p_vid = pos_vid_ref[...].astype(jnp.float32)

    for l in range(num_layers):
        # ---- full-width Q/K/V projections: (n, D) @ (D, D), bf16 -> f32 acc
        q_in = (x + p_vid).astype(jnp.bfloat16)
        q = jnp.dot(q_in, wq_ref[l], preferred_element_type=jnp.float32) + bq_ref[l]
        k = jnp.dot(k_in, wk_ref[l], preferred_element_type=jnp.float32) + bk_ref[l]
        v = jnp.dot(v_in, wv_ref[l], preferred_element_type=jnp.float32) + bv_ref[l]
        q = q.astype(jnp.bfloat16)      # 1/sqrt(dh) already folded into wq/bq
        k = k.astype(jnp.bfloat16)
        v = v.astype(jnp.bfloat16)

        # ---- per-head attention on lane-slice views -------------------------
        head_out = []
        for h in range(nhead):
            qh = q[:, h * dh:(h + 1) * dh]                          # (Sv, dh)
            kh = k[:, h * dh:(h + 1) * dh]                          # (St, dh)
            vh = v[:, h * dh:(h + 1) * dh]                          # (St, dh)
            s = jnp.einsum('qe,ke->qk', qh, kh,
                           preferred_element_type=jnp.float32)      # (Sv, St)
            s = s - jnp.max(s, axis=-1, keepdims=True)
            p = jnp.exp(s)
            p = p * pl.reciprocal(jnp.sum(p, axis=-1, keepdims=True),
                                  approx=True)
            head_out.append(jnp.dot(p.astype(jnp.bfloat16), vh,
                                    preferred_element_type=jnp.float32))

        # ---- head merge (one lane concat) + single output projection -------
        o = jnp.concatenate(head_out, axis=-1).astype(jnp.bfloat16)  # (Sv, D)
        attn = jnp.dot(o, wo_ref[l], preferred_element_type=jnp.float32) + bo_ref[l]

        # ---- residual + LayerNorm 1 -----------------------------------------
        y = _layer_norm(x + attn, g1_ref[l], be1_ref[l])

        # ---- FFN: linear -> relu -> linear ----------------------------------
        h1 = jnp.dot(y.astype(jnp.bfloat16), w1_ref[l],
                     preferred_element_type=jnp.float32) + b1_ref[l]
        h1 = jnp.maximum(h1, 0.0)
        h2 = jnp.dot(h1.astype(jnp.bfloat16), w2_ref[l],
                     preferred_element_type=jnp.float32) + b2_ref[l]

        # ---- residual + LayerNorm 2 -----------------------------------------
        x = _layer_norm(y + h2, g2_ref[l], be2_ref[l])

        if write_intermediate:
            inter_refs[0][l] = x.astype(inter_refs[0].dtype)

    final = _layer_norm(x, gn_ref[...], bn_ref[...]) if has_final_norm else x
    out_ref[...] = final.astype(out_ref.dtype)


# ----------------------------------------------------------------------------
# Parameter packing: layer stacking + dtype casts + 1/sqrt(dh) folding (host).
# Weights are kept un-split ((D, D) etc.), stored bf16 to halve weight DMA.
# ----------------------------------------------------------------------------
def _pack_layer_params(layer_params, nhead):
    d_model = layer_params[0]["wq"].shape[0]
    dh = d_model // nhead
    scale = 1.0 / math.sqrt(dh)

    def stack(name, dtype, mul=1.0):
        return jnp.stack([(p[name] * mul).astype(dtype) for p in layer_params])

    return {
        "wq": stack("wq", jnp.bfloat16, scale),   # fold 1/sqrt(dh) into Wq
        "bq": stack("bq", jnp.float32, scale),    # ... and into bq
        "wk": stack("wk", jnp.bfloat16),
        "bk": stack("bk", jnp.float32),
        "wv": stack("wv", jnp.bfloat16),
        "bv": stack("bv", jnp.float32),
        "wo": stack("wo", jnp.bfloat16),
        "bo": stack("bo", jnp.float32),
        "g1": stack("g1", jnp.float32),
        "be1": stack("be1", jnp.float32),
        "w1": stack("w1", jnp.bfloat16),
        "b1": stack("b1", jnp.float32),
        "w2": stack("w2", jnp.bfloat16),
        "b2": stack("b2", jnp.float32),
        "g2": stack("g2", jnp.float32),
        "be2": stack("be2", jnp.float32),
    }


def t2v_transformer_encoder(src_txt, src_vid, pos_txt, pos_vid, layer_params,
                            norm_params=None, return_intermediate=False,
                            nhead=4):
    """Pallas equivalent of T2V_TransformerEncoder.forward (mask=None path)."""
    B, S_txt, D = src_txt.shape
    _, S_vid, _ = src_vid.shape
    L = len(layer_params)
    packed = _pack_layer_params(layer_params, nhead)

    if norm_params is not None:
        gn, bn = norm_params
        has_norm = True
    else:
        gn = jnp.ones((1, D), jnp.float32)
        bn = jnp.zeros((1, D), jnp.float32)
        has_norm = False

    names = ["wq", "bq", "wk", "bk", "wv", "bv", "wo", "bo", "g1", "be1",
             "w1", "b1", "w2", "b2", "g2", "be2"]
    weight_args = [packed[n] for n in names]

    kernel = functools.partial(
        fused_t2v_encoder_kernel,
        num_layers=L, nhead=nhead, has_final_norm=has_norm,
        write_intermediate=return_intermediate)

    # Batch-sliced activation blocks (leading batch dim squeezed inside kernel).
    def act_spec(S):
        return pl.BlockSpec((None, S, D), lambda b: (b, 0, 0))

    # Weights: full-extent blocks, constant index_map -> fetched once, resident.
    def resident_spec(arr):
        return pl.BlockSpec(arr.shape, lambda b, n=arr.ndim: (0,) * n)

    in_specs = ([act_spec(S_txt), act_spec(S_txt), act_spec(S_vid), act_spec(S_vid)]
                + [resident_spec(w) for w in weight_args]
                + [resident_spec(gn), resident_spec(bn)])

    out_shape = [jax.ShapeDtypeStruct((B, S_vid, D), src_vid.dtype)]
    out_specs = [pl.BlockSpec((None, S_vid, D), lambda b: (b, 0, 0))]
    if return_intermediate:
        # Per-layer outputs, only materialized when requested.
        out_shape.append(jax.ShapeDtypeStruct((B, L, S_vid, D), src_vid.dtype))
        out_specs.append(pl.BlockSpec((None, L, S_vid, D), lambda b: (b, 0, 0, 0)))

    results = pl.pallas_call(
        kernel,
        grid=(B,),
        in_specs=in_specs,
        out_specs=tuple(out_specs),
        out_shape=tuple(out_shape),
        compiler_params=pltpu.CompilerParams(
            dimension_semantics=("parallel",)),      # megacore sharding on v7x
    )(src_txt, pos_txt, src_vid, pos_vid, *weight_args,
      gn.astype(jnp.float32), bn.astype(jnp.float32))

    if return_intermediate:
        _, inter = results
        # match torch.stack(intermediate): (L, B, S_vid, D)
        return jnp.transpose(inter, (1, 0, 2, 3))
    return results[0]


# ----------------------------------------------------------------------------
# Deterministic parameter construction (x @ W convention, W stored (in, out)).
# ----------------------------------------------------------------------------
def make_layer_params(key, d_model, dim_ff):
    ks = jax.random.split(key, 6)
    scale = 0.02
    return {
        "wq": scale * jax.random.normal(ks[0], (d_model, d_model), jnp.float32),
        "bq": jnp.zeros((1, d_model), jnp.float32),
        "wk": scale * jax.random.normal(ks[1], (d_model, d_model), jnp.float32),
        "bk": jnp.zeros((1, d_model), jnp.float32),
        "wv": scale * jax.random.normal(ks[2], (d_model, d_model), jnp.float32),
        "bv": jnp.zeros((1, d_model), jnp.float32),
        "wo": scale * jax.random.normal(ks[3], (d_model, d_model), jnp.float32),
        "bo": jnp.zeros((1, d_model), jnp.float32),
        "g1": jnp.ones((1, d_model), jnp.float32),
        "be1": jnp.zeros((1, d_model), jnp.float32),
        "w1": scale * jax.random.normal(ks[4], (d_model, dim_ff), jnp.float32),
        "b1": jnp.zeros((1, dim_ff), jnp.float32),
        "w2": scale * jax.random.normal(ks[5], (dim_ff, d_model), jnp.float32),
        "b2": jnp.zeros((1, d_model), jnp.float32),
        "g2": jnp.ones((1, d_model), jnp.float32),
        "be2": jnp.zeros((1, d_model), jnp.float32),
    }


if __name__ == "__main__":
    # D = 128 keeps the output store lane-dense (one full lane group).
    B, S_vid, S_txt, D = 2, 8, 16, 128
    nhead, dim_ff, num_layers = 4, 256, 2

    root = jax.random.PRNGKey(0)
    k1, k2, k3, k4, k5 = jax.random.split(root, 5)
    src_txt = jax.random.normal(k1, (B, S_txt, D), jnp.float32)
    pos_txt = jax.random.normal(k2, (B, S_txt, D), jnp.float32)
    src_vid = jax.random.normal(k3, (B, S_vid, D), jnp.float32)
    pos_vid = jax.random.normal(k4, (B, S_vid, D), jnp.float32)

    layer_keys = jax.random.split(k5, num_layers)
    layer_params = [make_layer_params(k, D, dim_ff) for k in layer_keys]
    norm_params = (jnp.ones((1, D), jnp.float32), jnp.zeros((1, D), jnp.float32))

    out = t2v_transformer_encoder(src_txt, src_vid, pos_txt, pos_vid,
                                  layer_params, norm_params=norm_params,
                                  return_intermediate=False, nhead=nhead)
    jax.block_until_ready(out)
    assert out.shape == (B, S_vid, D)
    assert bool(jnp.all(jnp.isfinite(out)))

    inter = t2v_transformer_encoder(src_txt, src_vid, pos_txt, pos_vid,
                                    layer_params, norm_params=norm_params,
                                    return_intermediate=True, nhead=nhead)
    jax.block_until_ready(inter)
    assert inter.shape == (num_layers, B, S_vid, D)
    assert bool(jnp.all(jnp.isfinite(inter)))

    print("KERNEL_OK")
</pallas_src>

<mosaic_0001>
module attributes {stable_mosaic.version = 11 : i64} {
  func.func @fused_t2v_encoder_kernel(%arg0: i32, %arg1: memref<1x16x128xf32, #tpu.memory_space<vmem>>, %arg2: memref<1x16x128xf32, #tpu.memory_space<vmem>>, %arg3: memref<1x8x128xf32, #tpu.memory_space<vmem>>, %arg4: memref<1x8x128xf32, #tpu.memory_space<vmem>>, %arg5: memref<2x128x128xbf16, #tpu.memory_space<vmem>>, %arg6: memref<2x1x128xf32, #tpu.memory_space<vmem>>, %arg7: memref<2x128x128xbf16, #tpu.memory_space<vmem>>, %arg8: memref<2x1x128xf32, #tpu.memory_space<vmem>>, %arg9: memref<2x128x128xbf16, #tpu.memory_space<vmem>>, %arg10: memref<2x1x128xf32, #tpu.memory_space<vmem>>, %arg11: memref<2x128x128xbf16, #tpu.memory_space<vmem>>, %arg12: memref<2x1x128xf32, #tpu.memory_space<vmem>>, %arg13: memref<2x1x128xf32, #tpu.memory_space<vmem>>, %arg14: memref<2x1x128xf32, #tpu.memory_space<vmem>>, %arg15: memref<2x128x256xbf16, #tpu.memory_space<vmem>>, %arg16: memref<2x1x256xf32, #tpu.memory_space<vmem>>, %arg17: memref<2x256x128xbf16, #tpu.memory_space<vmem>>, %arg18: memref<2x1x128xf32, #tpu.memory_space<vmem>>, %arg19: memref<2x1x128xf32, #tpu.memory_space<vmem>>, %arg20: memref<2x1x128xf32, #tpu.memory_space<vmem>>, %arg21: memref<1x128xf32, #tpu.memory_space<vmem>>, %arg22: memref<1x128xf32, #tpu.memory_space<vmem>>, %arg23: memref<1x8x128xf32, #tpu.memory_space<vmem>>) attributes {dimension_semantics = [#tpu.dimension_semantics<parallel>], iteration_bounds = array<i64: 2>, scalar_prefetch = 0 : i64, scratch_operands = 0 : i64, tpu.core_type = #tpu.core_type<tc>, window_params = [{transform_indices = @transform_0, window_bounds = array<i64: 1, 16, 128>}, {transform_indices = @transform_1, window_bounds = array<i64: 1, 16, 128>}, {transform_indices = @transform_2, window_bounds = array<i64: 1, 8, 128>}, {transform_indices = @transform_3, window_bounds = array<i64: 1, 8, 128>}, {pipeline_mode = #tpu.pipeline_mode<synchronous>, transform_indices = @transform_4, window_bounds = array<i64: 2, 128, 128>}, {pipeline_mode = #tpu.pipeline_mode<synchronous>, transform_indices = @transform_5, window_bounds = array<i64: 2, 1, 128>}, {pipeline_mode = #tpu.pipeline_mode<synchronous>, transform_indices = @transform_6, window_bounds = array<i64: 2, 128, 128>}, {pipeline_mode = #tpu.pipeline_mode<synchronous>, transform_indices = @transform_7, window_bounds = array<i64: 2, 1, 128>}, {pipeline_mode = #tpu.pipeline_mode<synchronous>, transform_indices = @transform_8, window_bounds = array<i64: 2, 128, 128>}, {pipeline_mode = #tpu.pipeline_mode<synchronous>, transform_indices = @transform_9, window_bounds = array<i64: 2, 1, 128>}, {pipeline_mode = #tpu.pipeline_mode<synchronous>, transform_indices = @transform_10, window_bounds = array<i64: 2, 128, 128>}, {pipeline_mode = #tpu.pipeline_mode<synchronous>, transform_indices = @transform_11, window_bounds = array<i64: 2, 1, 128>}, {pipeline_mode = #tpu.pipeline_mode<synchronous>, transform_indices = @transform_12, window_bounds = array<i64: 2, 1, 128>}, {pipeline_mode = #tpu.pipeline_mode<synchronous>, transform_indices = @transform_13, window_bounds = array<i64: 2, 1, 128>}, {pipeline_mode = #tpu.pipeline_mode<synchronous>, transform_indices = @transform_14, window_bounds = array<i64: 2, 128, 256>}, {pipeline_mode = #tpu.pipeline_mode<synchronous>, transform_indices = @transform_15, window_bounds = array<i64: 2, 1, 256>}, {pipeline_mode = #tpu.pipeline_mode<synchronous>, transform_indices = @transform_16, window_bounds = array<i64: 2, 256, 128>}, {pipeline_mode = #tpu.pipeline_mode<synchronous>, transform_indices = @transform_17, window_bounds = array<i64: 2, 1, 128>}, {pipeline_mode = #tpu.pipeline_mode<synchronous>, transform_indices = @transform_18, window_bounds = array<i64: 2, 1, 128>}, {pipeline_mode = #tpu.pipeline_mode<synchronous>, transform_indices = @transform_19, window_bounds = array<i64: 2, 1, 128>}, {pipeline_mode = #tpu.pipeline_mode<synchronous>, transform_indices = @transform_20, window_bounds = array<i64: 1, 128>}, {pipeline_mode = #tpu.pipeline_mode<synchronous>, transform_indices = @transform_21, window_bounds = array<i64: 1, 128>}, {transform_indices = @transform_22, window_bounds = array<i64: 1, 8, 128>}]} {
    %c0 = arith.constant 0 : index
    %c0_0 = arith.constant 0 : index
    %c0_1 = arith.constant 0 : index
    %0 = vector.load %arg1[%c0, %c0_0, %c0_1] : memref<1x16x128xf32, #tpu.memory_space<vmem>>, vector<1x16x128xf32>
    %1 = vector.shape_cast %0 : vector<1x16x128xf32> to vector<16x128xf32>
    %c0_2 = arith.constant 0 : index
    %c0_3 = arith.constant 0 : index
    %c0_4 = arith.constant 0 : index
    %2 = vector.load %arg2[%c0_2, %c0_3, %c0_4] : memref<1x16x128xf32, #tpu.memory_space<vmem>>, vector<1x16x128xf32>
    %3 = vector.shape_cast %2 : vector<1x16x128xf32> to vector<16x128xf32>
    %4 = arith.addf %1, %3 : vector<16x128xf32>
    %5 = arith.truncf %4 : vector<16x128xf32> to vector<16x128xbf16>
    %6 = arith.truncf %1 : vector<16x128xf32> to vector<16x128xbf16>
    %c0_5 = arith.constant 0 : index
    %c0_6 = arith.constant 0 : index
    %c0_7 = arith.constant 0 : index
    %7 = vector.load %arg3[%c0_5, %c0_6, %c0_7] : memref<1x8x128xf32, #tpu.memory_space<vmem>>, vector<1x8x128xf32>
    %8 = vector.shape_cast %7 : vector<1x8x128xf32> to vector<8x128xf32>
    %c0_8 = arith.constant 0 : index
    %c0_9 = arith.constant 0 : index
    %c0_10 = arith.constant 0 : index
    %9 = vector.load %arg4[%c0_8, %c0_9, %c0_10] : memref<1x8x128xf32, #tpu.memory_space<vmem>>, vector<1x8x128xf32>
    %10 = vector.shape_cast %9 : vector<1x8x128xf32> to vector<8x128xf32>
    %11 = arith.addf %8, %10 : vector<8x128xf32>
    %12 = arith.truncf %11 : vector<8x128xf32> to vector<8x128xbf16>
    %c0_11 = arith.constant 0 : index
    %c0_12 = arith.constant 0 : index
    %c0_13 = arith.constant 0 : index
    %13 = vector.load %arg5[%c0_11, %c0_12, %c0_13] : memref<2x128x128xbf16, #tpu.memory_space<vmem>>, vector<1x128x128xbf16>
    %14 = vector.shape_cast %13 : vector<1x128x128xbf16> to vector<128x128xbf16>
    %cst = arith.constant dense<0.000000e+00> : vector<8x128xf32>
    %15 = tpu.matmul %12, %14, %cst {dimension_numbers = #tpu.dot_dimension_numbers<[1], [0], [0], [1], [0, 0, 1, 1], [], []>} : vector<8x128xbf16>, vector<128x128xbf16>, vector<8x128xf32> -> vector<8x128xf32>
    %c0_14 = arith.constant 0 : index
    %c0_15 = arith.constant 0 : index
    %c0_16 = arith.constant 0 : index
    %16 = vector.load %arg6[%c0_14, %c0_15, %c0_16] : memref<2x1x128xf32, #tpu.memory_space<vmem>>, vector<1x1x128xf32>
    %17 = vector.shape_cast %16 : vector<1x1x128xf32> to vector<1x128xf32>
    %18 = vector.broadcast %17 : vector<1x128xf32> to vector<8x128xf32>
    %19 = arith.addf %15, %18 : vector<8x128xf32>
    %c0_17 = arith.constant 0 : index
    %c0_18 = arith.constant 0 : index
    %c0_19 = arith.constant 0 : index
    %20 = vector.load %arg7[%c0_17, %c0_18, %c0_19] : memref<2x128x128xbf16, #tpu.memory_space<vmem>>, vector<1x128x128xbf16>
    %21 = vector.shape_cast %20 : vector<1x128x128xbf16> to vector<128x128xbf16>
    %cst_20 = arith.constant dense<0.000000e+00> : vector<16x128xf32>
    %22 = tpu.matmul %5, %21, %cst_20 {dimension_numbers = #tpu.dot_dimension_numbers<[1], [0], [0], [1], [0, 0, 1, 1], [], []>} : vector<16x128xbf16>, vector<128x128xbf16>, vector<16x128xf32> -> vector<16x128xf32>
    %c0_21 = arith.constant 0 : index
    %c0_22 = arith.constant 0 : index
    %c0_23 = arith.constant 0 : index
    %23 = vector.load %arg8[%c0_21, %c0_22, %c0_23] : memref<2x1x128xf32, #tpu.memory_space<vmem>>, vector<1x1x128xf32>
    %24 = vector.shape_cast %23 : vector<1x1x128xf32> to vector<1x128xf32>
    %25 = vector.broadcast %24 : vector<1x128xf32> to vector<16x128xf32>
    %26 = arith.addf %22, %25 : vector<16x128xf32>
    %c0_24 = arith.constant 0 : index
    %c0_25 = arith.constant 0 : index
    %c0_26 = arith.constant 0 : index
    %27 = vector.load %arg9[%c0_24, %c0_25, %c0_26] : memref<2x128x128xbf16, #tpu.memory_space<vmem>>, vector<1x128x128xbf16>
    %28 = vector.shape_cast %27 : vector<1x128x128xbf16> to vector<128x128xbf16>
    %cst_27 = arith.constant dense<0.000000e+00> : vector<16x128xf32>
    %29 = tpu.matmul %6, %28, %cst_27 {dimension_numbers = #tpu.dot_dimension_numbers<[1], [0], [0], [1], [0, 0, 1, 1], [], []>} : vector<16x128xbf16>, vector<128x128xbf16>, vector<16x128xf32> -> vector<16x128xf32>
    %c0_28 = arith.constant 0 : index
    %c0_29 = arith.constant 0 : index
    %c0_30 = arith.constant 0 : index
    %30 = vector.load %arg10[%c0_28, %c0_29, %c0_30] : memref<2x1x128xf32, #tpu.memory_space<vmem>>, vector<1x1x128xf32>
    %31 = vector.shape_cast %30 : vector<1x1x128xf32> to vector<1x128xf32>
    %32 = vector.broadcast %31 : vector<1x128xf32> to vector<16x128xf32>
    %33 = arith.addf %29, %32 : vector<16x128xf32>
    %34 = arith.truncf %19 : vector<8x128xf32> to vector<8x128xbf16>
    %35 = arith.truncf %26 : vector<16x128xf32> to vector<16x128xbf16>
    %36 = arith.truncf %33 : vector<16x128xf32> to vector<16x128xbf16>
    %37 = vector.extract_strided_slice %34 {offsets = [0, 0], sizes = [8, 32], strides = [1, 1]} : vector<8x128xbf16> to vector<8x32xbf16>
    %38 = vector.extract_strided_slice %35 {offsets = [0, 0], sizes = [16, 32], strides = [1, 1]} : vector<16x128xbf16> to vector<16x32xbf16>
    %39 = vector.extract_strided_slice %36 {offsets = [0, 0], sizes = [16, 32], strides = [1, 1]} : vector<16x128xbf16> to vector<16x32xbf16>
    "tpu.trace_start"() <{level = 10 : i32, message = "qe,ke->qk"}> : () -> ()
    %cst_31 = arith.constant dense<0.000000e+00> : vector<8x16xf32>
    %40 = tpu.matmul %37, %38, %cst_31 {dimension_numbers = #tpu.dot_dimension_numbers<[1], [1], [0], [0], [0, 0, 1, 0], [], []>} : vector<8x32xbf16>, vector<16x32xbf16>, vector<8x16xf32> -> vector<8x16xf32>
    "tpu.trace_stop"() : () -> ()
    %cst_32 = arith.constant dense<0xFF800000> : vector<8xf32>
    %41 = vector.multi_reduction <maximumf>, %40, %cst_32 [1] : vector<8x16xf32> to vector<8xf32>
    %42 = vector.shape_cast %41 : vector<8xf32> to vector<8x1xf32>
    %43 = vector.broadcast %42 : vector<8x1xf32> to vector<8x16xf32>
    %44 = arith.subf %40, %43 : vector<8x16xf32>
    %45 = math.exp %44 : vector<8x16xf32>
    %cst_33 = arith.constant dense<0.000000e+00> : vector<8xf32>
    %46 = vector.multi_reduction <add>, %45, %cst_33 [1] : vector<8x16xf32> to vector<8xf32>
    %47 = vector.shape_cast %46 : vector<8xf32> to vector<8x1xf32>
    %48 = tpu.reciprocal %47 {approx = true} : vector<8x1xf32> -> vector<8x1xf32>
    %49 = vector.broadcast %48 : vector<8x1xf32> to vector<8x16xf32>
    %50 = arith.mulf %45, %49 : vector<8x16xf32>
    %51 = arith.truncf %50 : vector<8x16xf32> to vector<8x16xbf16>
    %cst_34 = arith.constant dense<0.000000e+00> : vector<8x32xf32>
    %52 = tpu.matmul %51, %39, %cst_34 {dimension_numbers = #tpu.dot_dimension_numbers<[1], [0], [0], [1], [0, 0, 1, 1], [], []>} : vector<8x16xbf16>, vector<16x32xbf16>, vector<8x32xf32> -> vector<8x32xf32>
    %53 = vector.extract_strided_slice %34 {offsets = [0, 32], sizes = [8, 32], strides = [1, 1]} : vector<8x128xbf16> to vector<8x32xbf16>
    %54 = vector.extract_strided_slice %35 {offsets = [0, 32], sizes = [16, 32], strides = [1, 1]} : vector<16x128xbf16> to vector<16x32xbf16>
    %55 = vector.extract_strided_slice %36 {offsets = [0, 32], sizes = [16, 32], strides = [1, 1]} : vector<16x128xbf16> to vector<16x32xbf16>
    "tpu.trace_start"() <{level = 10 : i32, message = "qe,ke->qk"}> : () -> ()
    %cst_35 = arith.constant dense<0.000000e+00> : vector<8x16xf32>
    %56 = tpu.matmul %53, %54, %cst_35 {dimension_numbers = #tpu.dot_dimension_numbers<[1], [1], [0], [0], [0, 0, 1, 0], [], []>} : vector<8x32xbf16>, vector<16x32xbf16>, vector<8x16xf32> -> vector<8x16xf32>
    "tpu.trace_stop"() : () -> ()
    %cst_36 = arith.constant dense<0xFF800000> : vector<8xf32>
    %57 = vector.multi_reduction <maximumf>, %56, %cst_36 [1] : vector<8x16xf32> to vector<8xf32>
    %58 = vector.shape_cast %57 : vector<8xf32> to vector<8x1xf32>
    %59 = vector.broadcast %58 : vector<8x1xf32> to vector<8x16xf32>
    %60 = arith.subf %56, %59 : vector<8x16xf32>
    %61 = math.exp %60 : vector<8x16xf32>
    %cst_37 = arith.constant dense<0.000000e+00> : vector<8xf32>
    %62 = vector.multi_reduction <add>, %61, %cst_37 [1] : vector<8x16xf32> to vector<8xf32>
    %63 = vector.shape_cast %62 : vector<8xf32> to vector<8x1xf32>
    %64 = tpu.reciprocal %63 {approx = true} : vector<8x1xf32> -> vector<8x1xf32>
    %65 = vector.broadcast %64 : vector<8x1xf32> to vector<8x16xf32>
    %66 = arith.mulf %61, %65 : vector<8x16xf32>
    %67 = arith.truncf %66 : vector<8x16xf32> to vector<8x16xbf16>
    %cst_38 = arith.constant dense<0.000000e+00> : vector<8x32xf32>
    %68 = tpu.matmul %67, %55, %cst_38 {dimension_numbers = #tpu.dot_dimension_numbers<[1], [0], [0], [1], [0, 0, 1, 1], [], []>} : vector<8x16xbf16>, vector<16x32xbf16>, vector<8x32xf32> -> vector<8x32xf32>
    %69 = vector.extract_strided_slice %34 {offsets = [0, 64], sizes = [8, 32], strides = [1, 1]} : vector<8x128xbf16> to vector<8x32xbf16>
    %70 = vector.extract_strided_slice %35 {offsets = [0, 64], sizes = [16, 32], strides = [1, 1]} : vector<16x128xbf16> to vector<16x32xbf16>
    %71 = vector.extract_strided_slice %36 {offsets = [0, 64], sizes = [16, 32], strides = [1, 1]} : vector<16x128xbf16> to vector<16x32xbf16>
    "tpu.trace_start"() <{level = 10 : i32, message = "qe,ke->qk"}> : () -> ()
    %cst_39 = arith.constant dense<0.000000e+00> : vector<8x16xf32>
    %72 = tpu.matmul %69, %70, %cst_39 {dimension_numbers = #tpu.dot_dimension_numbers<[1], [1], [0], [0], [0, 0, 1, 0], [], []>} : vector<8x32xbf16>, vector<16x32xbf16>, vector<8x16xf32> -> vector<8x16xf32>
    "tpu.trace_stop"() : () -> ()
    %cst_40 = arith.constant dense<0xFF800000> : vector<8xf32>
    %73 = vector.multi_reduction <maximumf>, %72, %cst_40 [1] : vector<8x16xf32> to vector<8xf32>
    %74 = vector.shape_cast %73 : vector<8xf32> to vector<8x1xf32>
    %75 = vector.broadcast %74 : vector<8x1xf32> to vector<8x16xf32>
    %76 = arith.subf %72, %75 : vector<8x16xf32>
    %77 = math.exp %76 : vector<8x16xf32>
    %cst_41 = arith.constant dense<0.000000e+00> : vector<8xf32>
    %78 = vector.multi_reduction <add>, %77, %cst_41 [1] : vector<8x16xf32> to vector<8xf32>
    %79 = vector.shape_cast %78 : vector<8xf32> to vector<8x1xf32>
    %80 = tpu.reciprocal %79 {approx = true} : vector<8x1xf32> -> vector<8x1xf32>
    %81 = vector.broadcast %80 : vector<8x1xf32> to vector<8x16xf32>
    %82 = arith.mulf %77, %81 : vector<8x16xf32>
    %83 = arith.truncf %82 : vector<8x16xf32> to vector<8x16xbf16>
    %cst_42 = arith.constant dense<0.000000e+00> : vector<8x32xf32>
    %84 = tpu.matmul %83, %71, %cst_42 {dimension_numbers = #tpu.dot_dimension_numbers<[1], [0], [0], [1], [0, 0, 1, 1], [], []>} : vector<8x16xbf16>, vector<16x32xbf16>, vector<8x32xf32> -> vector<8x32xf32>
    %85 = vector.extract_strided_slice %34 {offsets = [0, 96], sizes = [8, 32], strides = [1, 1]} : vector<8x128xbf16> to vector<8x32xbf16>
    %86 = vector.extract_strided_slice %35 {offsets = [0, 96], sizes = [16, 32], strides = [1, 1]} : vector<16x128xbf16> to vector<16x32xbf16>
    %87 = vector.extract_strided_slice %36 {offsets = [0, 96], sizes = [16, 32], strides = [1, 1]} : vector<16x128xbf16> to vector<16x32xbf16>
    "tpu.trace_start"() <{level = 10 : i32, message = "qe,ke->qk"}> : () -> ()
    %cst_43 = arith.constant dense<0.000000e+00> : vector<8x16xf32>
    %88 = tpu.matmul %85, %86, %cst_43 {dimension_numbers = #tpu.dot_dimension_numbers<[1], [1], [0], [0], [0, 0, 1, 0], [], []>} : vector<8x32xbf16>, vector<16x32xbf16>, vector<8x16xf32> -> vector<8x16xf32>
    "tpu.trace_stop"() : () -> ()
    %cst_44 = arith.constant dense<0xFF800000> : vector<8xf32>
    %89 = vector.multi_reduction <maximumf>, %88, %cst_44 [1] : vector<8x16xf32> to vector<8xf32>
    %90 = vector.shape_cast %89 : vector<8xf32> to vector<8x1xf32>
    %91 = vector.broadcast %90 : vector<8x1xf32> to vector<8x16xf32>
    %92 = arith.subf %88, %91 : vector<8x16xf32>
    %93 = math.exp %92 : vector<8x16xf32>
    %cst_45 = arith.constant dense<0.000000e+00> : vector<8xf32>
    %94 = vector.multi_reduction <add>, %93, %cst_45 [1] : vector<8x16xf32> to vector<8xf32>
    %95 = vector.shape_cast %94 : vector<8xf32> to vector<8x1xf32>
    %96 = tpu.reciprocal %95 {approx = true} : vector<8x1xf32> -> vector<8x1xf32>
    %97 = vector.broadcast %96 : vector<8x1xf32> to vector<8x16xf32>
    %98 = arith.mulf %93, %97 : vector<8x16xf32>
    %99 = arith.truncf %98 : vector<8x16xf32> to vector<8x16xbf16>
    %cst_46 = arith.constant dense<0.000000e+00> : vector<8x32xf32>
    %100 = tpu.matmul %99, %87, %cst_46 {dimension_numbers = #tpu.dot_dimension_numbers<[1], [0], [0], [1], [0, 0, 1, 1], [], []>} : vector<8x16xbf16>, vector<16x32xbf16>, vector<8x32xf32> -> vector<8x32xf32>
    %101 = tpu.concatenate %52, %68, %84, %100 in 1 : vector<8x32xf32>, vector<8x32xf32>, vector<8x32xf32>, vector<8x32xf32> -> vector<8x128xf32>
    %102 = arith.truncf %101 : vector<8x128xf32> to vector<8x128xbf16>
    %c0_47 = arith.constant 0 : index
    %c0_48 = arith.constant 0 : index
    %c0_49 = arith.constant 0 : index
    %103 = vector.load %arg11[%c0_47, %c0_48, %c0_49] : memref<2x128x128xbf16, #tpu.memory_space<vmem>>, vector<1x128x128xbf16>
    %104 = vector.shape_cast %103 : vector<1x128x128xbf16> to vector<128x128xbf16>
    %cst_50 = arith.constant dense<0.000000e+00> : vector<8x128xf32>
    %105 = tpu.matmul %102, %104, %cst_50 {dimension_numbers = #tpu.dot_dimension_numbers<[1], [0], [0], [1], [0, 0, 1, 1], [], []>} : vector<8x128xbf16>, vector<128x128xbf16>, vector<8x128xf32> -> vector<8x128xf32>
    %c0_51 = arith.constant 0 : index
    %c0_52 = arith.constant 0 : index
    %c0_53 = arith.constant 0 : index
    %106 = vector.load %arg12[%c0_51, %c0_52, %c0_53] : memref<2x1x128xf32, #tpu.memory_space<vmem>>, vector<1x1x128xf32>
    %107 = vector.shape_cast %106 : vector<1x1x128xf32> to vector<1x128xf32>
    %108 = vector.broadcast %107 : vector<1x128xf32> to vector<8x128xf32>
    %109 = arith.addf %105, %108 : vector<8x128xf32>
    %110 = arith.addf %8, %109 : vector<8x128xf32>
    %c0_54 = arith.constant 0 : index
    %c0_55 = arith.constant 0 : index
    %c0_56 = arith.constant 0 : index
    %111 = vector.load %arg13[%c0_54, %c0_55, %c0_56] : memref<2x1x128xf32, #tpu.memory_space<vmem>>, vector<1x1x128xf32>
    %112 = vector.shape_cast %111 : vector<1x1x128xf32> to vector<1x128xf32>
    %c0_57 = arith.constant 0 : index
    %c0_58 = arith.constant 0 : index
    %c0_59 = arith.constant 0 : index
    %113 = vector.load %arg14[%c0_57, %c0_58, %c0_59] : memref<2x1x128xf32, #tpu.memory_space<vmem>>, vector<1x1x128xf32>
    %114 = vector.shape_cast %113 : vector<1x1x128xf32> to vector<1x128xf32>
    %cst_60 = arith.constant dense<0.000000e+00> : vector<8xf32>
    %115 = vector.multi_reduction <add>, %110, %cst_60 [1] : vector<8x128xf32> to vector<8xf32>
    %116 = vector.shape_cast %115 : vector<8xf32> to vector<8x1xf32>
    %cst_61 = arith.constant 1.280000e+02 : f32
    %117 = vector.broadcast %cst_61 : f32 to vector<8x1xf32>
    %118 = arith.divf %116, %117 : vector<8x1xf32>
    %119 = vector.broadcast %118 : vector<8x1xf32> to vector<8x128xf32>
    %120 = arith.subf %110, %119 : vector<8x128xf32>
    %121 = arith.mulf %120, %120 : vector<8x128xf32>
    %cst_62 = arith.constant dense<0.000000e+00> : vector<8xf32>
    %122 = vector.multi_reduction <add>, %121, %cst_62 [1] : vector<8x128xf32> to vector<8xf32>
    %123 = vector.shape_cast %122 : vector<8xf32> to vector<8x1xf32>
    %cst_63 = arith.constant 1.280000e+02 : f32
    %124 = vector.broadcast %cst_63 : f32 to vector<8x1xf32>
    %125 = arith.divf %123, %124 : vector<8x1xf32>
    %126 = vector.broadcast %118 : vector<8x1xf32> to vector<8x128xf32>
    %127 = arith.subf %110, %126 : vector<8x128xf32>
    %cst_64 = arith.constant 9.99999974E-6 : f32
    %128 = vector.broadcast %cst_64 : f32 to vector<8x1xf32>
    %129 = arith.addf %125, %128 : vector<8x1xf32>
    %130 = math.rsqrt %129 : vector<8x1xf32>
    %131 = vector.broadcast %130 : vector<8x1xf32> to vector<8x128xf32>
    %132 = arith.mulf %127, %131 : vector<8x128xf32>
    %133 = vector.broadcast %112 : vector<1x128xf32> to vector<8x128xf32>
    %134 = arith.mulf %132, %133 : vector<8x128xf32>
    %135 = vector.broadcast %114 : vector<1x128xf32> to vector<8x128xf32>
    %136 = arith.addf %134, %135 : vector<8x128xf32>
    %137 = arith.truncf %136 : vector<8x128xf32> to vector<8x128xbf16>
    %c0_65 = arith.constant 0 : index
    %c0_66 = arith.constant 0 : index
    %c0_67 = arith.constant 0 : index
    %138 = vector.load %arg15[%c0_65, %c0_66, %c0_67] : memref<2x128x256xbf16, #tpu.memory_space<vmem>>, vector<1x128x256xbf16>
    %139 = vector.shape_cast %138 : vector<1x128x256xbf16> to vector<128x256xbf16>
    %cst_68 = arith.constant dense<0.000000e+00> : vector<8x256xf32>
    %140 = tpu.matmul %137, %139, %cst_68 {dimension_numbers = #tpu.dot_dimension_numbers<[1], [0], [0], [1], [0, 0, 1, 1], [], []>} : vector<8x128xbf16>, vector<128x256xbf16>, vector<8x256xf32> -> vector<8x256xf32>
    %c0_69 = arith.constant 0 : index
    %c0_70 = arith.constant 0 : index
    %c0_71 = arith.constant 0 : index
    %141 = vector.load %arg16[%c0_69, %c0_70, %c0_71] : memref<2x1x256xf32, #tpu.memory_space<vmem>>, vector<1x1x256xf32>
    %142 = vector.shape_cast %141 : vector<1x1x256xf32> to vector<1x256xf32>
    %143 = vector.broadcast %142 : vector<1x256xf32> to vector<8x256xf32>
    %144 = arith.addf %140, %143 : vector<8x256xf32>
    %cst_72 = arith.constant 0.000000e+00 : f32
    %145 = vector.broadcast %cst_72 : f32 to vector<8x256xf32>
    %146 = arith.maximumf %144, %145 : vector<8x256xf32>
    %147 = arith.truncf %146 : vector<8x256xf32> to vector<8x256xbf16>
    %c0_73 = arith.constant 0 : index
    %c0_74 = arith.constant 0 : index
    %c0_75 = arith.constant 0 : index
    %148 = vector.load %arg17[%c0_73, %c0_74, %c0_75] : memref<2x256x128xbf16, #tpu.memory_space<vmem>>, vector<1x256x128xbf16>
    %149 = vector.shape_cast %148 : vector<1x256x128xbf16> to vector<256x128xbf16>
    %cst_76 = arith.constant dense<0.000000e+00> : vector<8x128xf32>
    %150 = tpu.matmul %147, %149, %cst_76 {dimension_numbers = #tpu.dot_dimension_numbers<[1], [0], [0], [1], [0, 0, 1, 1], [], []>} : vector<8x256xbf16>, vector<256x128xbf16>, vector<8x128xf32> -> vector<8x128xf32>
    %c0_77 = arith.constant 0 : index
    %c0_78 = arith.constant 0 : index
    %c0_79 = arith.constant 0 : index
    %151 = vector.load %arg18[%c0_77, %c0_78, %c0_79] : memref<2x1x128xf32, #tpu.memory_space<vmem>>, vector<1x1x128xf32>
    %152 = vector.shape_cast %151 : vector<1x1x128xf32> to vector<1x128xf32>
    %153 = vector.broadcast %152 : vector<1x128xf32> to vector<8x128xf32>
    %154 = arith.addf %150, %153 : vector<8x128xf32>
    %155 = arith.addf %136, %154 : vector<8x128xf32>
    %c0_80 = arith.constant 0 : index
    %c0_81 = arith.constant 0 : index
    %c0_82 = arith.constant 0 : index
    %156 = vector.load %arg19[%c0_80, %c0_81, %c0_82] : memref<2x1x128xf32, #tpu.memory_space<vmem>>, vector<1x1x128xf32>
    %157 = vector.shape_cast %156 : vector<1x1x128xf32> to vector<1x128xf32>
    %c0_83 = arith.constant 0 : index
    %c0_84 = arith.constant 0 : index
    %c0_85 = arith.constant 0 : index
    %158 = vector.load %arg20[%c0_83, %c0_84, %c0_85] : memref<2x1x128xf32, #tpu.memory_space<vmem>>, vector<1x1x128xf32>
    %159 = vector.shape_cast %158 : vector<1x1x128xf32> to vector<1x128xf32>
    %cst_86 = arith.constant dense<0.000000e+00> : vector<8xf32>
    %160 = vector.multi_reduction <add>, %155, %cst_86 [1] : vector<8x128xf32> to vector<8xf32>
    %161 = vector.shape_cast %160 : vector<8xf32> to vector<8x1xf32>
    %cst_87 = arith.constant 1.280000e+02 : f32
    %162 = vector.broadcast %cst_87 : f32 to vector<8x1xf32>
    %163 = arith.divf %161, %162 : vector<8x1xf32>
    %164 = vector.broadcast %163 : vector<8x1xf32> to vector<8x128xf32>
    %165 = arith.subf %155, %164 : vector<8x128xf32>
    %166 = arith.mulf %165, %165 : vector<8x128xf32>
    %cst_88 = arith.constant dense<0.000000e+00> : vector<8xf32>
    %167 = vector.multi_reduction <add>, %166, %cst_88 [1] : vector<8x128xf32> to vector<8xf32>
    %168 = vector.shape_cast %167 : vector<8xf32> to vector<8x1xf32>
    %cst_89 = arith.constant 1.280000e+02 : f32
    %169 = vector.broadcast %cst_89 : f32 to vector<8x1xf32>
    %170 = arith.divf %168, %169 : vector<8x1xf32>
    %171 = vector.broadcast %163 : vector<8x1xf32> to vector<8x128xf32>
    %172 = arith.subf %155, %171 : vector<8x128xf32>
    %cst_90 = arith.constant 9.99999974E-6 : f32
    %173 = vector.broadcast %cst_90 : f32 to vector<8x1xf32>
    %174 = arith.addf %170, %173 : vector<8x1xf32>
    %175 = math.rsqrt %174 : vector<8x1xf32>
    %176 = vector.broadcast %175 : vector<8x1xf32> to vector<8x128xf32>
    %177 = arith.mulf %172, %176 : vector<8x128xf32>
    %178 = vector.broadcast %157 : vector<1x128xf32> to vector<8x128xf32>
    %179 = arith.mulf %177, %178 : vector<8x128xf32>
    %180 = vector.broadcast %159 : vector<1x128xf32> to vector<8x128xf32>
    %181 = arith.addf %179, %180 : vector<8x128xf32>
    %182 = arith.addf %181, %10 : vector<8x128xf32>
    %183 = arith.truncf %182 : vector<8x128xf32> to vector<8x128xbf16>
    %c1 = arith.constant 1 : index
    %c0_91 = arith.constant 0 : index
    %c0_92 = arith.constant 0 : index
    %184 = vector.load %arg5[%c1, %c0_91, %c0_92] : memref<2x128x128xbf16, #tpu.memory_space<vmem>>, vector<1x128x128xbf16>
    %185 = vector.shape_cast %184 : vector<1x128x128xbf16> to vector<128x128xbf16>
    %cst_93 = arith.constant dense<0.000000e+00> : vector<8x128xf32>
    %186 = tpu.matmul %183, %185, %cst_93 {dimension_numbers = #tpu.dot_dimension_numbers<[1], [0], [0], [1], [0, 0, 1, 1], [], []>} : vector<8x128xbf16>, vector<128x128xbf16>, vector<8x128xf32> -> vector<8x128xf32>
    %c1_94 = arith.constant 1 : index
    %c0_95 = arith.constant 0 : index
    %c0_96 = arith.constant 0 : index
    %187 = vector.load %arg6[%c1_94, %c0_95, %c0_96] : memref<2x1x128xf32, #tpu.memory_space<vmem>>, vector<1x1x128xf32>
    %188 = vector.shape_cast %187 : vector<1x1x128xf32> to vector<1x128xf32>
    %189 = vector.broadcast %188 : vector<1x128xf32> to vector<8x128xf32>
    %190 = arith.addf %186, %189 : vector<8x128xf32>
    %c1_97 = arith.constant 1 : index
    %c0_98 = arith.constant 0 : index
    %c0_99 = arith.constant 0 : index
    %191 = vector.load %arg7[%c1_97, %c0_98, %c0_99] : memref<2x128x128xbf16, #tpu.memory_space<vmem>>, vector<1x128x128xbf16>
    %192 = vector.shape_cast %191 : vector<1x128x128xbf16> to vector<128x128xbf16>
    %cst_100 = arith.constant dense<0.000000e+00> : vector<16x128xf32>
    %193 = tpu.matmul %5, %192, %cst_100 {dimension_numbers = #tpu.dot_dimension_numbers<[1], [0], [0], [1], [0, 0, 1, 1], [], []>} : vector<16x128xbf16>, vector<128x128xbf16>, vector<16x128xf32> -> vector<16x128xf32>
    %c1_101 = arith.constant 1 : index
    %c0_102 = arith.constant 0 : index
    %c0_103 = arith.constant 0 : index
    %194 = vector.load %arg8[%c1_101, %c0_102, %c0_103] : memref<2x1x128xf32, #tpu.memory_space<vmem>>, vector<1x1x128xf32>
    %195 = vector.shape_cast %194 : vector<1x1x128xf32> to vector<1x128xf32>
    %196 = vector.broadcast %195 : vector<1x128xf32> to vector<16x128xf32>
    %197 = arith.addf %193, %196 : vector<16x128xf32>
    %c1_104 = arith.constant 1 : index
    %c0_105 = arith.constant 0 : index
    %c0_106 = arith.constant 0 : index
    %198 = vector.load %arg9[%c1_104, %c0_105, %c0_106] : memref<2x128x128xbf16, #tpu.memory_space<vmem>>, vector<1x128x128xbf16>
    %199 = vector.shape_cast %198 : vector<1x128x128xbf16> to vector<128x128xbf16>
    %cst_107 = arith.constant dense<0.000000e+00> : vector<16x128xf32>
    %200 = tpu.matmul %6, %199, %cst_107 {dimension_numbers = #tpu.dot_dimension_numbers<[1], [0], [0], [1], [0, 0, 1, 1], [], []>} : vector<16x128xbf16>, vector<128x128xbf16>, vector<16x128xf32> -> vector<16x128xf32>
    %c1_108 = arith.constant 1 : index
    %c0_109 = arith.constant 0 : index
    %c0_110 = arith.constant 0 : index
    %201 = vector.load %arg10[%c1_108, %c0_109, %c0_110] : memref<2x1x128xf32, #tpu.memory_space<vmem>>, vector<1x1x128xf32>
    %202 = vector.shape_cast %201 : vector<1x1x128xf32> to vector<1x128xf32>
    %203 = vector.broadcast %202 : vector<1x128xf32> to vector<16x128xf32>
    %204 = arith.addf %200, %203 : vector<16x128xf32>
    %205 = arith.truncf %190 : vector<8x128xf32> to vector<8x128xbf16>
    %206 = arith.truncf %197 : vector<16x128xf32> to vector<16x128xbf16>
    %207 = arith.truncf %204 : vector<16x128xf32> to vector<16x128xbf16>
    %208 = vector.extract_strided_slice %205 {offsets = [0, 0], sizes = [8, 32], strides = [1, 1]} : vector<8x128xbf16> to vector<8x32xbf16>
    %209 = vector.extract_strided_slice %206 {offsets = [0, 0], sizes = [16, 32], strides = [1, 1]} : vector<16x128xbf16> to vector<16x32xbf16>
    %210 = vector.extract_strided_slice %207 {offsets = [0, 0], sizes = [16, 32], strides = [1, 1]} : vector<16x128xbf16> to vector<16x32xbf16>
    "tpu.trace_start"() <{level = 10 : i32, message = "qe,ke->qk"}> : () -> ()
    %cst_111 = arith.constant dense<0.000000e+00> : vector<8x16xf32>
    %211 = tpu.matmul %208, %209, %cst_111 {dimension_numbers = #tpu.dot_dimension_numbers<[1], [1], [0], [0], [0, 0, 1, 0], [], []>} : vector<8x32xbf16>, vector<16x32xbf16>, vector<8x16xf32> -> vector<8x16xf32>
    "tpu.trace_stop"() : () -> ()
    %cst_112 = arith.constant dense<0xFF800000> : vector<8xf32>
    %212 = vector.multi_reduction <maximumf>, %211, %cst_112 [1] : vector<8x16xf32> to vector<8xf32>
    %213 = vector.shape_cast %212 : vector<8xf32> to vector<8x1xf32>
    %214 = vector.broadcast %213 : vector<8x1xf32> to vector<8x16xf32>
    %215 = arith.subf %211, %214 : vector<8x16xf32>
    %216 = math.exp %215 : vector<8x16xf32>
    %cst_113 = arith.constant dense<0.000000e+00> : vector<8xf32>
    %217 = vector.multi_reduction <add>, %216, %cst_113 [1] : vector<8x16xf32> to vector<8xf32>
    %218 = vector.shape_cast %217 : vector<8xf32> to vector<8x1xf32>
    %219 = tpu.reciprocal %218 {approx = true} : vector<8x1xf32> -> vector<8x1xf32>
    %220 = vector.broadcast %219 : vector<8x1xf32> to vector<8x16xf32>
    %221 = arith.mulf %216, %220 : vector<8x16xf32>
    %222 = arith.truncf %221 : vector<8x16xf32> to vector<8x16xbf16>
    %cst_114 = arith.constant dense<0.000000e+00> : vector<8x32xf32>
    %223 = tpu.matmul %222, %210, %cst_114 {dimension_numbers = #tpu.dot_dimension_numbers<[1], [0], [0], [1], [0, 0, 1, 1], [], []>} : vector<8x16xbf16>, vector<16x32xbf16>, vector<8x32xf32> -> vector<8x32xf32>
    %224 = vector.extract_strided_slice %205 {offsets = [0, 32], sizes = [8, 32], strides = [1, 1]} : vector<8x128xbf16> to vector<8x32xbf16>
    %225 = vector.extract_strided_slice %206 {offsets = [0, 32], sizes = [16, 32], strides = [1, 1]} : vector<16x128xbf16> to vector<16x32xbf16>
    %226 = vector.extract_strided_slice %207 {offsets = [0, 32], sizes = [16, 32], strides = [1, 1]} : vector<16x128xbf16> to vector<16x32xbf16>
    "tpu.trace_start"() <{level = 10 : i32, message = "qe,ke->qk"}> : () -> ()
    %cst_115 = arith.constant dense<0.000000e+00> : vector<8x16xf32>
    %227 = tpu.matmul %224, %225, %cst_115 {dimension_numbers = #tpu.dot_dimension_numbers<[1], [1], [0], [0], [0, 0, 1, 0], [], []>} : vector<8x32xbf16>, vector<16x32xbf16>, vector<8x16xf32> -> vector<8x16xf32>
    "tpu.trace_stop"() : () -> ()
    %cst_116 = arith.constant dense<0xFF800000> : vector<8xf32>
    %228 = vector.multi_reduction <maximumf>, %227, %cst_116 [1] : vector<8x16xf32> to vector<8xf32>
    %229 = vector.shape_cast %228 : vector<8xf32> to vector<8x1xf32>
    %230 = vector.broadcast %229 : vector<8x1xf32> to vector<8x16xf32>
    %231 = arith.subf %227, %230 : vector<8x16xf32>
    %232 = math.exp %231 : vector<8x16xf32>
    %cst_117 = arith.constant dense<0.000000e+00> : vector<8xf32>
    %233 = vector.multi_reduction <add>, %232, %cst_117 [1] : vector<8x16xf32> to vector<8xf32>
    %234 = vector.shape_cast %233 : vector<8xf32> to vector<8x1xf32>
    %235 = tpu.reciprocal %234 {approx = true} : vector<8x1xf32> -> vector<8x1xf32>
    %236 = vector.broadcast %235 : vector<8x1xf32> to vector<8x16xf32>
    %237 = arith.mulf %232, %236 : vector<8x16xf32>
    %238 = arith.truncf %237 : vector<8x16xf32> to vector<8x16xbf16>
    %cst_118 = arith.constant dense<0.000000e+00> : vector<8x32xf32>
    %239 = tpu.matmul %238, %226, %cst_118 {dimension_numbers = #tpu.dot_dimension_numbers<[1], [0], [0], [1], [0, 0, 1, 1], [], []>} : vector<8x16xbf16>, vector<16x32xbf16>, vector<8x32xf32> -> vector<8x32xf32>
    %240 = vector.extract_strided_slice %205 {offsets = [0, 64], sizes = [8, 32], strides = [1, 1]} : vector<8x128xbf16> to vector<8x32xbf16>
    %241 = vector.extract_strided_slice %206 {offsets = [0, 64], sizes = [16, 32], strides = [1, 1]} : vector<16x128xbf16> to vector<16x32xbf16>
    %242 = vector.extract_strided_slice %207 {offsets = [0, 64], sizes = [16, 32], strides = [1, 1]} : vector<16x128xbf16> to vector<16x32xbf16>
    "tpu.trace_start"() <{level = 10 : i32, message = "qe,ke->qk"}> : () -> ()
    %cst_119 = arith.constant dense<0.000000e+00> : vector<8x16xf32>
    %243 = tpu.matmul %240, %241, %cst_119 {dimension_numbers = #tpu.dot_dimension_numbers<[1], [1], [0], [0], [0, 0, 1, 0], [], []>} : vector<8x32xbf16>, vector<16x32xbf16>, vector<8x16xf32> -> vector<8x16xf32>
    "tpu.trace_stop"() : () -> ()
    %cst_120 = arith.constant dense<0xFF800000> : vector<8xf32>
    %244 = vector.multi_reduction <maximumf>, %243, %cst_120 [1] : vector<8x16xf32> to vector<8xf32>
    %245 = vector.shape_cast %244 : vector<8xf32> to vector<8x1xf32>
    %246 = vector.broadcast %245 : vector<8x1xf32> to vector<8x16xf32>
    %247 = arith.subf %243, %246 : vector<8x16xf32>
    %248 = math.exp %247 : vector<8x16xf32>
    %cst_121 = arith.constant dense<0.000000e+00> : vector<8xf32>
    %249 = vector.multi_reduction <add>, %248, %cst_121 [1] : vector<8x16xf32> to vector<8xf32>
    %250 = vector.shape_cast %249 : vector<8xf32> to vector<8x1xf32>
    %251 = tpu.reciprocal %250 {approx = true} : vector<8x1xf32> -> vector<8x1xf32>
    %252 = vector.broadcast %251 : vector<8x1xf32> to vector<8x16xf32>
    %253 = arith.mulf %248, %252 : vector<8x16xf32>
    %254 = arith.truncf %253 : vector<8x16xf32> to vector<8x16xbf16>
    %cst_122 = arith.constant dense<0.000000e+00> : vector<8x32xf32>
    %255 = tpu.matmul %254, %242, %cst_122 {dimension_numbers = #tpu.dot_dimension_numbers<[1], [0], [0], [1], [0, 0, 1, 1], [], []>} : vector<8x16xbf16>, vector<16x32xbf16>, vector<8x32xf32> -> vector<8x32xf32>
    %256 = vector.extract_strided_slice %205 {offsets = [0, 96], sizes = [8, 32], strides = [1, 1]} : vector<8x128xbf16> to vector<8x32xbf16>
    %257 = vector.extract_strided_slice %206 {offsets = [0, 96], sizes = [16, 32], strides = [1, 1]} : vector<16x128xbf16> to vector<16x32xbf16>
    %258 = vector.extract_strided_slice %207 {offsets = [0, 96], sizes = [16, 32], strides = [1, 1]} : vector<16x128xbf16> to vector<16x32xbf16>
    "tpu.trace_start"() <{level = 10 : i32, message = "qe,ke->qk"}> : () -> ()
    %cst_123 = arith.constant dense<0.000000e+00> : vector<8x16xf32>
    %259 = tpu.matmul %256, %257, %cst_123 {dimension_numbers = #tpu.dot_dimension_numbers<[1], [1], [0], [0], [0, 0, 1, 0], [], []>} : vector<8x32xbf16>, vector<16x32xbf16>, vector<8x16xf32> -> vector<8x16xf32>
    "tpu.trace_stop"() : () -> ()
    %cst_124 = arith.constant dense<0xFF800000> : vector<8xf32>
    %260 = vector.multi_reduction <maximumf>, %259, %cst_124 [1] : vector<8x16xf32> to vector<8xf32>
    %261 = vector.shape_cast %260 : vector<8xf32> to vector<8x1xf32>
    %262 = vector.broadcast %261 : vector<8x1xf32> to vector<8x16xf32>
    %263 = arith.subf %259, %262 : vector<8x16xf32>
    %264 = math.exp %263 : vector<8x16xf32>
    %cst_125 = arith.constant dense<0.000000e+00> : vector<8xf32>
    %265 = vector.multi_reduction <add>, %264, %cst_125 [1] : vector<8x16xf32> to vector<8xf32>
    %266 = vector.shape_cast %265 : vector<8xf32> to vector<8x1xf32>
    %267 = tpu.reciprocal %266 {approx = true} : vector<8x1xf32> -> vector<8x1xf32>
    %268 = vector.broadcast %267 : vector<8x1xf32> to vector<8x16xf32>
    %269 = arith.mulf %264, %268 : vector<8x16xf32>
    %270 = arith.truncf %269 : vector<8x16xf32> to vector<8x16xbf16>
    %cst_126 = arith.constant dense<0.000000e+00> : vector<8x32xf32>
    %271 = tpu.matmul %270, %258, %cst_126 {dimension_numbers = #tpu.dot_dimension_numbers<[1], [0], [0], [1], [0, 0, 1, 1], [], []>} : vector<8x16xbf16>, vector<16x32xbf16>, vector<8x32xf32> -> vector<8x32xf32>
    %272 = tpu.concatenate %223, %239, %255, %271 in 1 : vector<8x32xf32>, vector<8x32xf32>, vector<8x32xf32>, vector<8x32xf32> -> vector<8x128xf32>
    %273 = arith.truncf %272 : vector<8x128xf32> to vector<8x128xbf16>
    %c1_127 = arith.constant 1 : index
    %c0_128 = arith.constant 0 : index
    %c0_129 = arith.constant 0 : index
    %274 = vector.load %arg11[%c1_127, %c0_128, %c0_129] : memref<2x128x128xbf16, #tpu.memory_space<vmem>>, vector<1x128x128xbf16>
    %275 = vector.shape_cast %274 : vector<1x128x128xbf16> to vector<128x128xbf16>
    %cst_130 = arith.constant dense<0.000000e+00> : vector<8x128xf32>
    %276 = tpu.matmul %273, %275, %cst_130 {dimension_numbers = #tpu.dot_dimension_numbers<[1], [0], [0], [1], [0, 0, 1, 1], [], []>} : vector<8x128xbf16>, vector<128x128xbf16>, vector<8x128xf32> -> vector<8x128xf32>
    %c1_131 = arith.constant 1 : index
    %c0_132 = arith.constant 0 : index
    %c0_133 = arith.constant 0 : index
    %277 = vector.load %arg12[%c1_131, %c0_132, %c0_133] : memref<2x1x128xf32, #tpu.memory_space<vmem>>, vector<1x1x128xf32>
    %278 = vector.shape_cast %277 : vector<1x1x128xf32> to vector<1x128xf32>
    %279 = vector.broadcast %278 : vector<1x128xf32> to vector<8x128xf32>
    %280 = arith.addf %276, %279 : vector<8x128xf32>
    %281 = arith.addf %181, %280 : vector<8x128xf32>
    %c1_134 = arith.constant 1 : index
    %c0_135 = arith.constant 0 : index
    %c0_136 = arith.constant 0 : index
    %282 = vector.load %arg13[%c1_134, %c0_135, %c0_136] : memref<2x1x128xf32, #tpu.memory_space<vmem>>, vector<1x1x128xf32>
    %283 = vector.shape_cast %282 : vector<1x1x128xf32> to vector<1x128xf32>
    %c1_137 = arith.constant 1 : index
    %c0_138 = arith.constant 0 : index
    %c0_139 = arith.constant 0 : index
    %284 = vector.load %arg14[%c1_137, %c0_138, %c0_139] : memref<2x1x128xf32, #tpu.memory_space<vmem>>, vector<1x1x128xf32>
    %285 = vector.shape_cast %284 : vector<1x1x128xf32> to vector<1x128xf32>
    %cst_140 = arith.constant dense<0.000000e+00> : vector<8xf32>
    %286 = vector.multi_reduction <add>, %281, %cst_140 [1] : vector<8x128xf32> to vector<8xf32>
    %287 = vector.shape_cast %286 : vector<8xf32> to vector<8x1xf32>
    %cst_141 = arith.constant 1.280000e+02 : f32
    %288 = vector.broadcast %cst_141 : f32 to vector<8x1xf32>
    %289 = arith.divf %287, %288 : vector<8x1xf32>
    %290 = vector.broadcast %289 : vector<8x1xf32> to vector<8x128xf32>
    %291 = arith.subf %281, %290 : vector<8x128xf32>
    %292 = arith.mulf %291, %291 : vector<8x128xf32>
    %cst_142 = arith.constant dense<0.000000e+00> : vector<8xf32>
    %293 = vector.multi_reduction <add>, %292, %cst_142 [1] : vector<8x128xf32> to vector<8xf32>
    %294 = vector.shape_cast %293 : vector<8xf32> to vector<8x1xf32>
    %cst_143 = arith.constant 1.280000e+02 : f32
    %295 = vector.broadcast %cst_143 : f32 to vector<8x1xf32>
    %296 = arith.divf %294, %295 : vector<8x1xf32>
    %297 = vector.broadcast %289 : vector<8x1xf32> to vector<8x128xf32>
    %298 = arith.subf %281, %297 : vector<8x128xf32>
    %cst_144 = arith.constant 9.99999974E-6 : f32
    %299 = vector.broadcast %cst_144 : f32 to vector<8x1xf32>
    %300 = arith.addf %296, %299 : vector<8x1xf32>
    %301 = math.rsqrt %300 : vector<8x1xf32>
    %302 = vector.broadcast %301 : vector<8x1xf32> to vector<8x128xf32>
    %303 = arith.mulf %298, %302 : vector<8x128xf32>
    %304 = vector.broadcast %283 : vector<1x128xf32> to vector<8x128xf32>
    %305 = arith.mulf %303, %304 : vector<8x128xf32>
    %306 = vector.broadcast %285 : vector<1x128xf32> to vector<8x128xf32>
    %307 = arith.addf %305, %306 : vector<8x128xf32>
    %308 = arith.truncf %307 : vector<8x128xf32> to vector<8x128xbf16>
    %c1_145 = arith.constant 1 : index
    %c0_146 = arith.constant 0 : index
    %c0_147 = arith.constant 0 : index
    %309 = vector.load %arg15[%c1_145, %c0_146, %c0_147] : memref<2x128x256xbf16, #tpu.memory_space<vmem>>, vector<1x128x256xbf16>
    %310 = vector.shape_cast %309 : vector<1x128x256xbf16> to vector<128x256xbf16>
    %cst_148 = arith.constant dense<0.000000e+00> : vector<8x256xf32>
    %311 = tpu.matmul %308, %310, %cst_148 {dimension_numbers = #tpu.dot_dimension_numbers<[1], [0], [0], [1], [0, 0, 1, 1], [], []>} : vector<8x128xbf16>, vector<128x256xbf16>, vector<8x256xf32> -> vector<8x256xf32>
    %c1_149 = arith.constant 1 : index
    %c0_150 = arith.constant 0 : index
    %c0_151 = arith.constant 0 : index
    %312 = vector.load %arg16[%c1_149, %c0_150, %c0_151] : memref<2x1x256xf32, #tpu.memory_space<vmem>>, vector<1x1x256xf32>
    %313 = vector.shape_cast %312 : vector<1x1x256xf32> to vector<1x256xf32>
    %314 = vector.broadcast %313 : vector<1x256xf32> to vector<8x256xf32>
    %315 = arith.addf %311, %314 : vector<8x256xf32>
    %cst_152 = arith.constant 0.000000e+00 : f32
    %316 = vector.broadcast %cst_152 : f32 to vector<8x256xf32>
    %317 = arith.maximumf %315, %316 : vector<8x256xf32>
    %318 = arith.truncf %317 : vector<8x256xf32> to vector<8x256xbf16>
    %c1_153 = arith.constant 1 : index
    %c0_154 = arith.constant 0 : index
    %c0_155 = arith.constant 0 : index
    %319 = vector.load %arg17[%c1_153, %c0_154, %c0_155] : memref<2x256x128xbf16, #tpu.memory_space<vmem>>, vector<1x256x128xbf16>
    %320 = vector.shape_cast %319 : vector<1x256x128xbf16> to vector<256x128xbf16>
    %cst_156 = arith.constant dense<0.000000e+00> : vector<8x128xf32>
    %321 = tpu.matmul %318, %320, %cst_156 {dimension_numbers = #tpu.dot_dimension_numbers<[1], [0], [0], [1], [0, 0, 1, 1], [], []>} : vector<8x256xbf16>, vector<256x128xbf16>, vector<8x128xf32> -> vector<8x128xf32>
    %c1_157 = arith.constant 1 : index
    %c0_158 = arith.constant 0 : index
    %c0_159 = arith.constant 0 : index
    %322 = vector.load %arg18[%c1_157, %c0_158, %c0_159] : memref<2x1x128xf32, #tpu.memory_space<vmem>>, vector<1x1x128xf32>
    %323 = vector.shape_cast %322 : vector<1x1x128xf32> to vector<1x128xf32>
    %324 = vector.broadcast %323 : vector<1x128xf32> to vector<8x128xf32>
    %325 = arith.addf %321, %324 : vector<8x128xf32>
    %326 = arith.addf %307, %325 : vector<8x128xf32>
    %c1_160 = arith.constant 1 : index
    %c0_161 = arith.constant 0 : index
    %c0_162 = arith.constant 0 : index
    %327 = vector.load %arg19[%c1_160, %c0_161, %c0_162] : memref<2x1x128xf32, #tpu.memory_space<vmem>>, vector<1x1x128xf32>
    %328 = vector.shape_cast %327 : vector<1x1x128xf32> to vector<1x128xf32>
    %c1_163 = arith.constant 1 : index
    %c0_164 = arith.constant 0 : index
    %c0_165 = arith.constant 0 : index
    %329 = vector.load %arg20[%c1_163, %c0_164, %c0_165] : memref<2x1x128xf32, #tpu.memory_space<vmem>>, vector<1x1x128xf32>
    %330 = vector.shape_cast %329 : vector<1x1x128xf32> to vector<1x128xf32>
    %cst_166 = arith.constant dense<0.000000e+00> : vector<8xf32>
    %331 = vector.multi_reduction <add>, %326, %cst_166 [1] : vector<8x128xf32> to vector<8xf32>
    %332 = vector.shape_cast %331 : vector<8xf32> to vector<8x1xf32>
    %cst_167 = arith.constant 1.280000e+02 : f32
    %333 = vector.broadcast %cst_167 : f32 to vector<8x1xf32>
    %334 = arith.divf %332, %333 : vector<8x1xf32>
    %335 = vector.broadcast %334 : vector<8x1xf32> to vector<8x128xf32>
    %336 = arith.subf %326, %335 : vector<8x128xf32>
    %337 = arith.mulf %336, %336 : vector<8x128xf32>
    %cst_168 = arith.constant dense<0.000000e+00> : vector<8xf32>
    %338 = vector.multi_reduction <add>, %337, %cst_168 [1] : vector<8x128xf32> to vector<8xf32>
    %339 = vector.shape_cast %338 : vector<8xf32> to vector<8x1xf32>
    %cst_169 = arith.constant 1.280000e+02 : f32
    %340 = vector.broadcast %cst_169 : f32 to vector<8x1xf32>
    %341 = arith.divf %339, %340 : vector<8x1xf32>
    %342 = vector.broadcast %334 : vector<8x1xf32> to vector<8x128xf32>
    %343 = arith.subf %326, %342 : vector<8x128xf32>
    %cst_170 = arith.constant 9.99999974E-6 : f32
    %344 = vector.broadcast %cst_170 : f32 to vector<8x1xf32>
    %345 = arith.addf %341, %344 : vector<8x1xf32>
    %346 = math.rsqrt %345 : vector<8x1xf32>
    %347 = vector.broadcast %346 : vector<8x1xf32> to vector<8x128xf32>
    %348 = arith.mulf %343, %347 : vector<8x128xf32>
    %349 = vector.broadcast %328 : vector<1x128xf32> to vector<8x128xf32>
    %350 = arith.mulf %348, %349 : vector<8x128xf32>
    %351 = vector.broadcast %330 : vector<1x128xf32> to vector<8x128xf32>
    %352 = arith.addf %350, %351 : vector<8x128xf32>
    %c0_171 = arith.constant 0 : index
    %c0_172 = arith.constant 0 : index
    %353 = vector.load %arg21[%c0_171, %c0_172] : memref<1x128xf32, #tpu.memory_space<vmem>>, vector<1x128xf32>
    %c0_173 = arith.constant 0 : index
    %c0_174 = arith.constant 0 : index
    %354 = vector.load %arg22[%c0_173, %c0_174] : memref<1x128xf32, #tpu.memory_space<vmem>>, vector<1x128xf32>
    %cst_175 = arith.constant dense<0.000000e+00> : vector<8xf32>
    %355 = vector.multi_reduction <add>, %352, %cst_175 [1] : vector<8x128xf32> to vector<8xf32>
    %356 = vector.shape_cast %355 : vector<8xf32> to vector<8x1xf32>
    %cst_176 = arith.constant 1.280000e+02 : f32
    %357 = vector.broadcast %cst_176 : f32 to vector<8x1xf32>
    %358 = arith.divf %356, %357 : vector<8x1xf32>
    %359 = vector.broadcast %358 : vector<8x1xf32> to vector<8x128xf32>
    %360 = arith.subf %352, %359 : vector<8x128xf32>
    %361 = arith.mulf %360, %360 : vector<8x128xf32>
    %cst_177 = arith.constant dense<0.000000e+00> : vector<8xf32>
    %362 = vector.multi_reduction <add>, %361, %cst_177 [1] : vector<8x128xf32> to vector<8xf32>
    %363 = vector.shape_cast %362 : vector<8xf32> to vector<8x1xf32>
    %cst_178 = arith.constant 1.280000e+02 : f32
    %364 = vector.broadcast %cst_178 : f32 to vector<8x1xf32>
    %365 = arith.divf %363, %364 : vector<8x1xf32>
    %366 = vector.broadcast %358 : vector<8x1xf32> to vector<8x128xf32>
    %367 = arith.subf %352, %366 : vector<8x128xf32>
    %cst_179 = arith.constant 9.99999974E-6 : f32
    %368 = vector.broadcast %cst_179 : f32 to vector<8x1xf32>
    %369 = arith.addf %365, %368 : vector<8x1xf32>
    %370 = math.rsqrt %369 : vector<8x1xf32>
    %371 = vector.broadcast %370 : vector<8x1xf32> to vector<8x128xf32>
    %372 = arith.mulf %367, %371 : vector<8x128xf32>
    %373 = vector.broadcast %353 : vector<1x128xf32> to vector<8x128xf32>
    %374 = arith.mulf %372, %373 : vector<8x128xf32>
    %375 = vector.broadcast %354 : vector<1x128xf32> to vector<8x128xf32>
    %376 = arith.addf %374, %375 : vector<8x128xf32>
    %c0_180 = arith.constant 0 : index
    %c0_181 = arith.constant 0 : index
    %c0_182 = arith.constant 0 : index
    %377 = vector.load %arg23[%c0_180, %c0_181, %c0_182] : memref<1x8x128xf32, #tpu.memory_space<vmem>>, vector<1x8x128xf32>
    %378 = vector.shape_cast %377 : vector<1x8x128xf32> to vector<8x128xf32>
    %379 = vector.shape_cast %376 : vector<8x128xf32> to vector<1x8x128xf32>
    tpu.vector_store %arg23[%c0_180, %c0_181, %c0_182], %379 {strides = array<i32>} : memref<1x8x128xf32, #tpu.memory_space<vmem>>, vector<1x8x128xf32>,
    return
  }
  func.func @transform_0(%arg0: i32) -> (i32, i32, i32) {
    %c0_i32 = arith.constant 0 : i32
    %c0_i32_0 = arith.constant 0 : i32
    %c0_i32_1 = arith.constant 0 : i32
    return %arg0, %c0_i32, %c0_i32_0 : i32, i32, i32
  }
  func.func @transform_1(%arg0: i32) -> (i32, i32, i32) {
    %c0_i32 = arith.constant 0 : i32
    %c0_i32_0 = arith.constant 0 : i32
    %c0_i32_1 = arith.constant 0 : i32
    return %arg0, %c0_i32, %c0_i32_0 : i32, i32, i32
  }
  func.func @transform_2(%arg0: i32) -> (i32, i32, i32) {
    %c0_i32 = arith.constant 0 : i32
    %c0_i32_0 = arith.constant 0 : i32
    %c0_i32_1 = arith.constant 0 : i32
    return %arg0, %c0_i32, %c0_i32_0 : i32, i32, i32
  }
  func.func @transform_3(%arg0: i32) -> (i32, i32, i32) {
    %c0_i32 = arith.constant 0 : i32
    %c0_i32_0 = arith.constant 0 : i32
    %c0_i32_1 = arith.constant 0 : i32
    return %arg0, %c0_i32, %c0_i32_0 : i32, i32, i32
  }
  func.func @transform_4(%arg0: i32) -> (i32, i32, i32) {
    %c0_i32 = arith.constant 0 : i32
    %c0_i32_0 = arith.constant 0 : i32
    %c0_i32_1 = arith.constant 0 : i32
    %c0_i32_2 = arith.constant 0 : i32
    return %c0_i32, %c0_i32_0, %c0_i32_1 : i32, i32, i32
  }
  func.func @transform_5(%arg0: i32) -> (i32, i32, i32) {
    %c0_i32 = arith.constant 0 : i32
    %c0_i32_0 = arith.constant 0 : i32
    %c0_i32_1 = arith.constant 0 : i32
    %c0_i32_2 = arith.constant 0 : i32
    return %c0_i32, %c0_i32_0, %c0_i32_1 : i32, i32, i32
  }
  func.func @transform_6(%arg0: i32) -> (i32, i32, i32) {
    %c0_i32 = arith.constant 0 : i32
    %c0_i32_0 = arith.constant 0 : i32
    %c0_i32_1 = arith.constant 0 : i32
    %c0_i32_2 = arith.constant 0 : i32
    return %c0_i32, %c0_i32_0, %c0_i32_1 : i32, i32, i32
  }
  func.func @transform_7(%arg0: i32) -> (i32, i32, i32) {
    %c0_i32 = arith.constant 0 : i32
    %c0_i32_0 = arith.constant 0 : i32
    %c0_i32_1 = arith.constant 0 : i32
    %c0_i32_2 = arith.constant 0 : i32
    return %c0_i32, %c0_i32_0, %c0_i32_1 : i32, i32, i32
  }
  func.func @transform_8(%arg0: i32) -> (i32, i32, i32) {
    %c0_i32 = arith.constant 0 : i32
    %c0_i32_0 = arith.constant 0 : i32
    %c0_i32_1 = arith.constant 0 : i32
    %c0_i32_2 = arith.constant 0 : i32
    return %c0_i32, %c0_i32_0, %c0_i32_1 : i32, i32, i32
  }
  func.func @transform_9(%arg0: i32) -> (i32, i32, i32) {
    %c0_i32 = arith.constant 0 : i32
    %c0_i32_0 = arith.constant 0 : i32
    %c0_i32_1 = arith.constant 0 : i32
    %c0_i32_2 = arith.constant 0 : i32
    return %c0_i32, %c0_i32_0, %c0_i32_1 : i32, i32, i32
  }
  func.func @transform_10(%arg0: i32) -> (i32, i32, i32) {
    %c0_i32 = arith.constant 0 : i32
    %c0_i32_0 = arith.constant 0 : i32
    %c0_i32_1 = arith.constant 0 : i32
    %c0_i32_2 = arith.constant 0 : i32
    return %c0_i32, %c0_i32_0, %c0_i32_1 : i32, i32, i32
  }
  func.func @transform_11(%arg0: i32) -> (i32, i32, i32) {
    %c0_i32 = arith.constant 0 : i32
    %c0_i32_0 = arith.constant 0 : i32
    %c0_i32_1 = arith.constant 0 : i32
    %c0_i32_2 = arith.constant 0 : i32
    return %c0_i32, %c0_i32_0, %c0_i32_1 : i32, i32, i32
  }
  func.func @transform_12(%arg0: i32) -> (i32, i32, i32) {
    %c0_i32 = arith.constant 0 : i32
    %c0_i32_0 = arith.constant 0 : i32
    %c0_i32_1 = arith.constant 0 : i32
    %c0_i32_2 = arith.constant 0 : i32
    return %c0_i32, %c0_i32_0, %c0_i32_1 : i32, i32, i32
  }
  func.func @transform_13(%arg0: i32) -> (i32, i32, i32) {
    %c0_i32 = arith.constant 0 : i32
    %c0_i32_0 = arith.constant 0 : i32
    %c0_i32_1 = arith.constant 0 : i32
    %c0_i32_2 = arith.constant 0 : i32
    return %c0_i32, %c0_i32_0, %c0_i32_1 : i32, i32, i32
  }
  func.func @transform_14(%arg0: i32) -> (i32, i32, i32) {
    %c0_i32 = arith.constant 0 : i32
    %c0_i32_0 = arith.constant 0 : i32
    %c0_i32_1 = arith.constant 0 : i32
    %c0_i32_2 = arith.constant 0 : i32
    return %c0_i32, %c0_i32_0, %c0_i32_1 : i32, i32, i32
  }
  func.func @transform_15(%arg0: i32) -> (i32, i32, i32) {
    %c0_i32 = arith.constant 0 : i32
    %c0_i32_0 = arith.constant 0 : i32
    %c0_i32_1 = arith.constant 0 : i32
    %c0_i32_2 = arith.constant 0 : i32
    return %c0_i32, %c0_i32_0, %c0_i32_1 : i32, i32, i32
  }
  func.func @transform_16(%arg0: i32) -> (i32, i32, i32) {
    %c0_i32 = arith.constant 0 : i32
    %c0_i32_0 = arith.constant 0 : i32
    %c0_i32_1 = arith.constant 0 : i32
    %c0_i32_2 = arith.constant 0 : i32
    return %c0_i32, %c0_i32_0, %c0_i32_1 : i32, i32, i32
  }
  func.func @transform_17(%arg0: i32) -> (i32, i32, i32) {
    %c0_i32 = arith.constant 0 : i32
    %c0_i32_0 = arith.constant 0 : i32
    %c0_i32_1 = arith.constant 0 : i32
    %c0_i32_2 = arith.constant 0 : i32
    return %c0_i32, %c0_i32_0, %c0_i32_1 : i32, i32, i32
  }
  func.func @transform_18(%arg0: i32) -> (i32, i32, i32) {
    %c0_i32 = arith.constant 0 : i32
    %c0_i32_0 = arith.constant 0 : i32
    %c0_i32_1 = arith.constant 0 : i32
    %c0_i32_2 = arith.constant 0 : i32
    return %c0_i32, %c0_i32_0, %c0_i32_1 : i32, i32, i32
  }
  func.func @transform_19(%arg0: i32) -> (i32, i32, i32) {
    %c0_i32 = arith.constant 0 : i32
    %c0_i32_0 = arith.constant 0 : i32
    %c0_i32_1 = arith.constant 0 : i32
    %c0_i32_2 = arith.constant 0 : i32
    return %c0_i32, %c0_i32_0, %c0_i32_1 : i32, i32, i32
  }
  func.func @transform_20(%arg0: i32) -> (i32, i32) {
    %c0_i32 = arith.constant 0 : i32
    %c0_i32_0 = arith.constant 0 : i32
    %c0_i32_1 = arith.constant 0 : i32
    return %c0_i32, %c0_i32_0 : i32, i32
  }
  func.func @transform_21(%arg0: i32) -> (i32, i32) {
    %c0_i32 = arith.constant 0 : i32
    %c0_i32_0 = arith.constant 0 : i32
    %c0_i32_1 = arith.constant 0 : i32
    return %c0_i32, %c0_i32_0 : i32, i32
  }
  func.func @transform_22(%arg0: i32) -> (i32, i32, i32) {
    %c0_i32 = arith.constant 0 : i32
    %c0_i32_0 = arith.constant 0 : i32
    %c0_i32_1 = arith.constant 0 : i32
    return %arg0, %c0_i32, %c0_i32_0 : i32, i32, i32
  }
}

</mosaic_0001>

<llo_original>
// kernel: tpu_custom_call.1
$region0: #{tpu_custom_call.1}
  #allocation0 [shape = 'u32[]', space=smem, size = 0x4, offset = 0x4, fixed_abs, tag = 'smem constant byte address 0x4 - core index']
  #allocation1 [shape = 'u32[144,128]{1,0:T(1,128)}', space=vmem, size = 0x12000, scoped, tag = 'internal scratch']
  %s0 = inlined_call_operand.hbm [shape: f32[2,16,128], index: 0, kind: input, shape index: {}]
  %s1 = inlined_call_operand.hbm [shape: f32[2,16,128], index: 1, kind: input, shape index: {}]
  %s2 = inlined_call_operand.hbm [shape: f32[2,8,128], index: 2, kind: input, shape index: {}]
  %s3 = inlined_call_operand.hbm [shape: f32[2,8,128], index: 3, kind: input, shape index: {}]
  %s4 = inlined_call_operand.hbm [shape: bf16[2,128,128], index: 4, kind: input, shape index: {}]
  %s5 = inlined_call_operand.vmem [shape: f32[2,1,128], index: 5, kind: input, shape index: {}]
  %s6 = inlined_call_operand.hbm [shape: bf16[2,128,128], index: 6, kind: input, shape index: {}]
  %s7 = inlined_call_operand.vmem [shape: f32[2,1,128], index: 7, kind: input, shape index: {}]
  %s8 = inlined_call_operand.hbm [shape: bf16[2,128,128], index: 8, kind: input, shape index: {}]
  %s9 = inlined_call_operand.vmem [shape: f32[2,1,128], index: 9, kind: input, shape index: {}]
  %s10 = inlined_call_operand.hbm [shape: bf16[2,128,128], index: 10, kind: input, shape index: {}]
  %s11 = inlined_call_operand.vmem [shape: f32[2,1,128], index: 11, kind: input, shape index: {}]
  %s12 = inlined_call_operand.vmem [shape: f32[2,1,128], index: 12, kind: input, shape index: {}]
  %s13 = inlined_call_operand.vmem [shape: f32[2,1,128], index: 13, kind: input, shape index: {}]
  %s14 = inlined_call_operand.hbm [shape: bf16[2,128,256], index: 14, kind: input, shape index: {}]
  %s15 = inlined_call_operand.vmem [shape: f32[2,1,256], index: 15, kind: input, shape index: {}]
  %s16 = inlined_call_operand.hbm [shape: bf16[2,256,128], index: 16, kind: input, shape index: {}]
  %s17 = inlined_call_operand.vmem [shape: f32[2,1,128], index: 17, kind: input, shape index: {}]
  %s18 = inlined_call_operand.vmem [shape: f32[2,1,128], index: 18, kind: input, shape index: {}]
  %s19 = inlined_call_operand.vmem [shape: f32[2,1,128], index: 19, kind: input, shape index: {}]
  %s20 = inlined_call_operand.vmem [shape: f32[1,128], index: 20, kind: input, shape index: {}]
  %s21 = inlined_call_operand.vmem [shape: f32[1,128], index: 21, kind: input, shape index: {}]
  %s22 = inlined_call_operand.hbm [shape: f32[2,8,128], index: 22, kind: output, shape index: {}]
  %s23 = sld [smem:[#allocation0]]
  $region161: #{tpu_custom_call.1} parent=0
    _
  %s25 = ssub.s32 1, %s23
  %s26 = scalar_select 0, %s25, %s23
  $region1: #{tpu_custom_call.1} parent=0
    #allocation2 [shape = 'u8[16384]{0}', space=vmem, size = 0x4000, scoped, tag = 'input window, operand 0']
    #allocation3 [shape = 's32[2]{0}', space=sflag, size = 0x8, scoped, tag = 'scoped memory for tpu_custom_call.1']
    #allocation4 [shape = 's32[2]{0}', space=sflag, size = 0x8, scoped, tag = 'scoped memory for tpu_custom_call.1']
    #allocation5 [shape = 'u8[16384]{0}', space=vmem, size = 0x4000, scoped, tag = 'input window, operand 1']
    #allocation6 [shape = 's32[2]{0}', space=sflag, size = 0x8, scoped, tag = 'scoped memory for tpu_custom_call.1']
    #allocation7 [shape = 'u8[8192]{0}', space=vmem, size = 0x2000, scoped, tag = 'input window, operand 2']
    #allocation8 [shape = 'u8[8192]{0}', space=vmem, size = 0x2000, scoped, tag = 'input window, operand 3']
    #allocation9 [shape = 's32[2]{0}', space=sflag, size = 0x8, scoped, tag = 'scoped memory for tpu_custom_call.1']
    #allocation10 [shape = 'u8[65536]{0}', space=vmem, size = 0x10000, scoped, tag = 'input window, operand 4, single buffered']
    #allocation11 [shape = 'u8[65536]{0}', space=vmem, size = 0x10000, scoped, tag = 'input window, operand 6, single buffered']
    #allocation12 [shape = 's32[1]{0}', space=sflag, size = 0x4, scoped, tag = 'scoped memory for tpu_custom_call.1']
    #allocation13 [shape = 'u8[65536]{0}', space=vmem, size = 0x10000, scoped, tag = 'input window, operand 8, single buffered']
    #allocation14 [shape = 'u8[65536]{0}', space=vmem, size = 0x10000, scoped, tag = 'input window, operand 10, single buffered']
    #allocation15 [shape = 's32[1]{0}', space=sflag, size = 0x4, scoped, tag = 'scoped memory for tpu_custom_call.1']
    #allocation16 [shape = 'u8[131072]{0}', space=vmem, size = 0x20000, scoped, tag = 'input window, operand 14, single buffered']
    #allocation17 [shape = 'u8[131072]{0}', space=vmem, size = 0x20000, scoped, tag = 'input window, operand 16, single buffered']
    #allocation18 [shape = 's32[1]{0}', space=sflag, size = 0x4, scoped, tag = 'scoped memory for tpu_custom_call.1']
    #allocation19 [shape = 'u8[8192]{0}', space=vmem, size = 0x2000, scoped, tag = 'output window, operand 0']
    %27 = vsyncpa [#allocation3], 0
    %s28 = scalar_lea.sflag [#allocation3], 1
    %29 = vsyncpa %s28, 0
    %30 = vsyncpa [#allocation6], 0
    %s31 = scalar_lea.sflag [#allocation6], 1
    %32 = vsyncpa %s31, 0
    %33 = vsyncpa [#allocation9], 0
    %s34 = scalar_lea.sflag [#allocation9], 1
    %35 = vsyncpa %s34, 0
    %36 = vsyncpa [#allocation12], 0
    %37 = vsyncpa [#allocation15], 0
    %38 = vsyncpa [#allocation18], 0
    %39 = vsyncpa [#allocation4], 0
    %s40 = scalar_lea.sflag [#allocation4], 1
    %41 = vsyncpa %s40, 0
    loop: start=0, step=1, limit=4
    $region2: #{tpu_custom_call.1} parent=1 // loop_pre_header
      _
    $region3: #{tpu_custom_call.1} parent=1 // loop_header
      %s43 = sphi 0, %s47
      %p44 = scmp.ge.s32.totalorder %s43, 4
      %s53 = sphi 0, %s55
      %s56 = sphi 0, %s53
      %s57 = sphi 0, %s56
      %s73 = sphi 0, %s57
      %s79 = sphi 0, %s81
      %s82 = sphi 0, %s79
      %s83 = sphi 0, %s82
      %s99 = sphi 0, %s83
      %s105 = sphi 0, %s107
      %s108 = sphi 0, %s105
      %s109 = sphi 0, %s108
      %s125 = sphi 0, %s109
      %s131 = sphi 0, %s133
      %s134 = sphi 0, %s131
      %s135 = sphi 0, %s134
      %s151 = sphi 0, %s135
      %s155 = sphi 0, %s155
      %s157 = sphi 0, %s155
      %s158 = sphi 0, %s157
      %s172 = sphi 0, %s158
      %s176 = sphi 0, %s176
      %s178 = sphi 0, %s176
      %s179 = sphi 0, %s178
      %s193 = sphi 0, %s179
      %s197 = sphi 0, %s197
      %s199 = sphi 0, %s197
      %s200 = sphi 0, %s199
      %s214 = sphi 0, %s200
      %s218 = sphi 0, %s218
      %s220 = sphi 0, %s218
      %s221 = sphi 0, %s220
      %s235 = sphi 0, %s221
      %s239 = sphi 0, %s239
      %s241 = sphi 0, %s239
      %s242 = sphi 0, %s241
      %s256 = sphi 0, %s242
      %s260 = sphi 0, %s260
      %s262 = sphi 0, %s260
      %s263 = sphi 0, %s262
      %s277 = sphi 0, %s263
      %s281 = sphi 0, %s281
      %s283 = sphi 0, %s281
      %s284 = sphi 0, %s283
      %s298 = sphi 0, %s284
      %s302 = sphi 0, %s302
      %s304 = sphi 0, %s302
      %s305 = sphi 0, %s304
      %s319 = sphi 0, %s305
      %s323 = sphi 0, %s323
      %s325 = sphi 0, %s323
      %s326 = sphi 0, %s325
      %s340 = sphi 0, %s326
      %s344 = sphi 0, %s344
      %s346 = sphi 0, %s344
      %s347 = sphi 0, %s346
      %s361 = sphi 0, %s347
      %s365 = sphi 0, %s365
      %s367 = sphi 0, %s365
      %s368 = sphi 0, %s367
      %s382 = sphi 0, %s368
      %s386 = sphi 0, %s386
      %s388 = sphi 0, %s386
      %s389 = sphi 0, %s388
      %s403 = sphi 0, %s389
      %s407 = sphi 0, %s407
      %s409 = sphi 0, %s407
      %s410 = sphi 0, %s409
      %s424 = sphi 0, %s410
      %s428 = sphi 0, %s428
      %s430 = sphi 0, %s428
      %s431 = sphi 0, %s430
      %s445 = sphi 0, %s431
      %s449 = sphi 0, %s449
      %s451 = sphi 0, %s449
      %s452 = sphi 0, %s451
      %s466 = sphi 0, %s452
      %s470 = sphi 0, %s470
      %s472 = sphi 0, %s470
      %s473 = sphi 0, %s472
      %s487 = sphi 0, %s473
      %s491 = sphi 0, %s491
      %s493 = sphi 0, %s491
      %s494 = sphi 0, %s493
      %s508 = sphi 0, %s494
      %s512 = sphi 0, %s512
      %s514 = sphi 0, %s512
      %s515 = sphi 0, %s514
      %s529 = sphi 0, %s515
      %s535 = sphi 0, %s537
      %s538 = sphi 0, %s535
      %s539 = sphi 0, %s538
      %s555 = sphi 0, %s539
    $region4: #{tpu_custom_call.1} parent=1 // loop_header_branch
      %46 = sbr.rel (%p44) target = $region8
    $region5: #{tpu_custom_call.1} parent=1 // loop_body
      %s48 = ssub.s32 %s43, 1
      %s49 = ssub.s32 %s43, 2
      %s50 = sadd.s32 %s43, 1
      %s51 = ssub.s32 %s43, %s50
      %p52 = scmp.eq.s32.totalorder %s51, 0
      %s54 = sadd.s32 %s53, 1
      %s55 = scalar_select %p52, %s53, %s54
      %p58 = pneg %p52
      %p59 = scmp.eq.s32.totalorder %s43, 1
      %p60 = por %p58, %p59
      %p61 = scmp.ne.s32.totalorder %s53, %s56
      %p62 = scmp.eq.s32.totalorder %s43, 0
      %p63 = por %p61, %p62
      %p64 = scmp.ne.s32.totalorder %s53, %s56
      %p65 = scmp.eq.s32.totalorder %s48, 1
      %p66 = por %p64, %p65
      %p67 = scmp.ne.s32.totalorder %s56, %s57
      %p68 = scmp.eq.s32.totalorder %s48, 0
      %p69 = por %p67, %p68
      %p70 = scmp.ne.s32.totalorder %s56, %s57
      %p71 = scmp.eq.s32.totalorder %s49, 1
      %p72 = por %p70, %p71
      %p74 = scmp.ne.s32.totalorder %s57, %s73
      %p75 = scmp.eq.s32.totalorder %s49, 0
      %p76 = por %p74, %p75
      %s77 = ssub.s32 %s43, %s50
      %p78 = scmp.eq.s32.totalorder %s77, 0
      %s80 = sadd.s32 %s79, 1
      %s81 = scalar_select %p78, %s79, %s80
      %p84 = pneg %p78
      %p85 = scmp.eq.s32.totalorder %s43, 1
      %p86 = por %p84, %p85
      %p87 = scmp.ne.s32.totalorder %s79, %s82
      %p88 = scmp.eq.s32.totalorder %s43, 0
      %p89 = por %p87, %p88
      %p90 = scmp.ne.s32.totalorder %s79, %s82
      %p91 = scmp.eq.s32.totalorder %s48, 1
      %p92 = por %p90, %p91
      %p93 = scmp.ne.s32.totalorder %s82, %s83
      %p94 = scmp.eq.s32.totalorder %s48, 0
      %p95 = por %p93, %p94
      %p96 = scmp.ne.s32.totalorder %s82, %s83
      %p97 = scmp.eq.s32.totalorder %s49, 1
      %p98 = por %p96, %p97
      %p100 = scmp.ne.s32.totalorder %s83, %s99
      %p101 = scmp.eq.s32.totalorder %s49, 0
      %p102 = por %p100, %p101
      %s103 = ssub.s32 %s43, %s50
      %p104 = scmp.eq.s32.totalorder %s103, 0
      %s106 = sadd.s32 %s105, 1
      %s107 = scalar_select %p104, %s105, %s106
      %p110 = pneg %p104
      %p111 = scmp.eq.s32.totalorder %s43, 1
      %p112 = por %p110, %p111
      %p113 = scmp.ne.s32.totalorder %s105, %s108
      %p114 = scmp.eq.s32.totalorder %s43, 0
      %p115 = por %p113, %p114
      %p116 = scmp.ne.s32.totalorder %s105, %s108
      %p117 = scmp.eq.s32.totalorder %s48, 1
      %p118 = por %p116, %p117
      %p119 = scmp.ne.s32.totalorder %s108, %s109
      %p120 = scmp.eq.s32.totalorder %s48, 0
      %p121 = por %p119, %p120
      %p122 = scmp.ne.s32.totalorder %s108, %s109
      %p123 = scmp.eq.s32.totalorder %s49, 1
      %p124 = por %p122, %p123
      %p126 = scmp.ne.s32.totalorder %s109, %s125
      %p127 = scmp.eq.s32.totalorder %s49, 0
      %p128 = por %p126, %p127
      %s129 = ssub.s32 %s43, %s50
      %p130 = scmp.eq.s32.totalorder %s129, 0
      %s132 = sadd.s32 %s131, 1
      %s133 = scalar_select %p130, %s131, %s132
      %p136 = pneg %p130
      %p137 = scmp.eq.s32.totalorder %s43, 1
      %p138 = por %p136, %p137
      %p139 = scmp.ne.s32.totalorder %s131, %s134
      %p140 = scmp.eq.s32.totalorder %s43, 0
      %p141 = por %p139, %p140
      %p142 = scmp.ne.s32.totalorder %s131, %s134
      %p143 = scmp.eq.s32.totalorder %s48, 1
      %p144 = por %p142, %p143
      %p145 = scmp.ne.s32.totalorder %s134, %s135
      %p146 = scmp.eq.s32.totalorder %s48, 0
      %p147 = por %p145, %p146
      %p148 = scmp.ne.s32.totalorder %s134, %s135
      %p149 = scmp.eq.s32.totalorder %s49, 1
      %p150 = por %p148, %p149
      %p152 = scmp.ne.s32.totalorder %s135, %s151
      %p153 = scmp.eq.s32.totalorder %s49, 0
      %p154 = por %p152, %p153
      %s156 = sadd.s32 %s155, 1
      %p159 = scmp.eq.s32.totalorder %s43, 1
      %p160 = scmp.ne.s32.totalorder %s155, %s157
      %p161 = scmp.eq.s32.totalorder %s43, 0
      %p162 = por %p160, %p161
      %p163 = scmp.ne.s32.totalorder %s155, %s157
      %p164 = scmp.eq.s32.totalorder %s48, 1
      %p165 = por %p163, %p164
      %p166 = scmp.ne.s32.totalorder %s157, %s158
      %p167 = scmp.eq.s32.totalorder %s48, 0
      %p168 = por %p166, %p167
      %p169 = scmp.ne.s32.totalorder %s157, %s158
      %p170 = scmp.eq.s32.totalorder %s49, 1
      %p171 = por %p169, %p170
      %p173 = scmp.ne.s32.totalorder %s158, %s172
      %p174 = scmp.eq.s32.totalorder %s49, 0
      %p175 = por %p173, %p174
      %s177 = sadd.s32 %s176, 1
      %p180 = scmp.eq.s32.totalorder %s43, 1
      %p181 = scmp.ne.s32.totalorder %s176, %s178
      %p182 = scmp.eq.s32.totalorder %s43, 0
      %p183 = por %p181, %p182
      %p184 = scmp.ne.s32.totalorder %s176, %s178
      %p185 = scmp.eq.s32.totalorder %s48, 1
      %p186 = por %p184, %p185
      %p187 = scmp.ne.s32.totalorder %s178, %s179
      %p188 = scmp.eq.s32.totalorder %s48, 0
      %p189 = por %p187, %p188
      %p190 = scmp.ne.s32.totalorder %s178, %s179
      %p191 = scmp.eq.s32.totalorder %s49, 1
      %p192 = por %p190, %p191
      %p194 = scmp.ne.s32.totalorder %s179, %s193
      %p195 = scmp.eq.s32.totalorder %s49, 0
      %p196 = por %p194, %p195
      %s198 = sadd.s32 %s197, 1
      %p201 = scmp.eq.s32.totalorder %s43, 1
      %p202 = scmp.ne.s32.totalorder %s197, %s199
      %p203 = scmp.eq.s32.totalorder %s43, 0
      %p204 = por %p202, %p203
      %p205 = scmp.ne.s32.totalorder %s197, %s199
      %p206 = scmp.eq.s32.totalorder %s48, 1
      %p207 = por %p205, %p206
      %p208 = scmp.ne.s32.totalorder %s199, %s200
      %p209 = scmp.eq.s32.totalorder %s48, 0
      %p210 = por %p208, %p209
      %p211 = scmp.ne.s32.totalorder %s199, %s200
      %p212 = scmp.eq.s32.totalorder %s49, 1
      %p213 = por %p211, %p212
      %p215 = scmp.ne.s32.totalorder %s200, %s214
      %p216 = scmp.eq.s32.totalorder %s49, 0
      %p217 = por %p215, %p216
      %s219 = sadd.s32 %s218, 1
      %p222 = scmp.eq.s32.totalorder %s43, 1
      %p223 = scmp.ne.s32.totalorder %s218, %s220
      %p224 = scmp.eq.s32.totalorder %s43, 0
      %p225 = por %p223, %p224
      %p226 = scmp.ne.s32.totalorder %s218, %s220
      %p227 = scmp.eq.s32.totalorder %s48, 1
      %p228 = por %p226, %p227
      %p229 = scmp.ne.s32.totalorder %s220, %s221
      %p230 = scmp.eq.s32.totalorder %s48, 0
      %p231 = por %p229, %p230
      %p232 = scmp.ne.s32.totalorder %s220, %s221
      %p233 = scmp.eq.s32.totalorder %s49, 1
      %p234 = por %p232, %p233
      %p236 = scmp.ne.s32.totalorder %s221, %s235
      %p237 = scmp.eq.s32.totalorder %s49, 0
      %p238 = por %p236, %p237
      %s240 = sadd.s32 %s239, 1
      %p243 = scmp.eq.s32.totalorder %s43, 1
      %p244 = scmp.ne.s32.totalorder %s239, %s241
      %p245 = scmp.eq.s32.totalorder %s43, 0
      %p246 = por %p244, %p245
      %p247 = scmp.ne.s32.totalorder %s239, %s241
      %p248 = scmp.eq.s32.totalorder %s48, 1
      %p249 = por %p247, %p248
      %p250 = scmp.ne.s32.totalorder %s241, %s242
      %p251 = scmp.eq.s32.totalorder %s48, 0
      %p252 = por %p250, %p251
      %p253 = scmp.ne.s32.totalorder %s241, %s242
      %p254 = scmp.eq.s32.totalorder %s49, 1
      %p255 = por %p253, %p254
      %p257 = scmp.ne.s32.totalorder %s242, %s256
      %p258 = scmp.eq.s32.totalorder %s49, 0
      %p259 = por %p257, %p258
      %s261 = sadd.s32 %s260, 1
      %p264 = scmp.eq.s32.totalorder %s43, 1
      %p265 = scmp.ne.s32.totalorder %s260, %s262
      %p266 = scmp.eq.s32.totalorder %s43, 0
      %p267 = por %p265, %p266
      %p268 = scmp.ne.s32.totalorder %s260, %s262
      %p269 = scmp.eq.s32.totalorder %s48, 1
      %p270 = por %p268, %p269
      %p271 = scmp.ne.s32.totalorder %s262, %s263
      %p272 = scmp.eq.s32.totalorder %s48, 0
      %p273 = por %p271, %p272
      %p274 = scmp.ne.s32.totalorder %s262, %s263
      %p275 = scmp.eq.s32.totalorder %s49, 1
      %p276 = por %p274, %p275
      %p278 = scmp.ne.s32.totalorder %s263, %s277
      %p279 = scmp.eq.s32.totalorder %s49, 0
      %p280 = por %p278, %p279
      %s282 = sadd.s32 %s281, 1
      %p285 = scmp.eq.s32.totalorder %s43, 1
      %p286 = scmp.ne.s32.totalorder %s281, %s283
      %p287 = scmp.eq.s32.totalorder %s43, 0
      %p288 = por %p286, %p287
      %p289 = scmp.ne.s32.totalorder %s281, %s283
      %p290 = scmp.eq.s32.totalorder %s48, 1
      %p291 = por %p289, %p290
      %p292 = scmp.ne.s32.totalorder %s283, %s284
      %p293 = scmp.eq.s32.totalorder %s48, 0
      %p294 = por %p292, %p293
      %p295 = scmp.ne.s32.totalorder %s283, %s284
      %p296 = scmp.eq.s32.totalorder %s49, 1
      %p297 = por %p295, %p296
      %p299 = scmp.ne.s32.totalorder %s284, %s298
      %p300 = scmp.eq.s32.totalorder %s49, 0
      %p301 = por %p299, %p300
      %s303 = sadd.s32 %s302, 1
      %p306 = scmp.eq.s32.totalorder %s43, 1
      %p307 = scmp.ne.s32.totalorder %s302, %s304
      %p308 = scmp.eq.s32.totalorder %s43, 0
      %p309 = por %p307, %p308
      %p310 = scmp.ne.s32.totalorder %s302, %s304
      %p311 = scmp.eq.s32.totalorder %s48, 1
      %p312 = por %p310, %p311
      %p313 = scmp.ne.s32.totalorder %s304, %s305
      %p314 = scmp.eq.s32.totalorder %s48, 0
      %p315 = por %p313, %p314
      %p316 = scmp.ne.s32.totalorder %s304, %s305
      %p317 = scmp.eq.s32.totalorder %s49, 1
      %p318 = por %p316, %p317
      %p320 = scmp.ne.s32.totalorder %s305, %s319
      %p321 = scmp.eq.s32.totalorder %s49, 0
      %p322 = por %p320, %p321
      %s324 = sadd.s32 %s323, 1
      %p327 = scmp.eq.s32.totalorder %s43, 1
      %p328 = scmp.ne.s32.totalorder %s323, %s325
      %p329 = scmp.eq.s32.totalorder %s43, 0
      %p330 = por %p328, %p329
      %p331 = scmp.ne.s32.totalorder %s323, %s325
      %p332 = scmp.eq.s32.totalorder %s48, 1
      %p333 = por %p331, %p332
      %p334 = scmp.ne.s32.totalorder %s325, %s326
      %p335 = scmp.eq.s32.totalorder %s48, 0
      %p336 = por %p334, %p335
      %p337 = scmp.ne.s32.totalorder %s325, %s326
      %p338 = scmp.eq.s32.totalorder %s49, 1
      %p339 = por %p337, %p338
      %p341 = scmp.ne.s32.totalorder %s326, %s340
      %p342 = scmp.eq.s32.totalorder %s49, 0
      %p343 = por %p341, %p342
      %s345 = sadd.s32 %s344, 1
      %p348 = scmp.eq.s32.totalorder %s43, 1
      %p349 = scmp.ne.s32.totalorder %s344, %s346
      %p350 = scmp.eq.s32.totalorder %s43, 0
      %p351 = por %p349, %p350
      %p352 = scmp.ne.s32.totalorder %s344, %s346
      %p353 = scmp.eq.s32.totalorder %s48, 1
      %p354 = por %p352, %p353
      %p355 = scmp.ne.s32.totalorder %s346, %s347
      %p356 = scmp.eq.s32.totalorder %s48, 0
      %p357 = por %p355, %p356
      %p358 = scmp.ne.s32.totalorder %s346, %s347
      %p359 = scmp.eq.s32.totalorder %s49, 1
      %p360 = por %p358, %p359
      %p362 = scmp.ne.s32.totalorder %s347, %s361
      %p363 = scmp.eq.s32.totalorder %s49, 0
      %p364 = por %p362, %p363
      %s366 = sadd.s32 %s365, 1
      %p369 = scmp.eq.s32.totalorder %s43, 1
      %p370 = scmp.ne.s32.totalorder %s365, %s367
      %p371 = scmp.eq.s32.totalorder %s43, 0
      %p372 = por %p370, %p371
      %p373 = scmp.ne.s32.totalorder %s365, %s367
      %p374 = scmp.eq.s32.totalorder %s48, 1
      %p375 = por %p373, %p374
      %p376 = scmp.ne.s32.totalorder %s367, %s368
      %p377 = scmp.eq.s32.totalorder %s48, 0
      %p378 = por %p376, %p377
      %p379 = scmp.ne.s32.totalorder %s367, %s368
      %p380 = scmp.eq.s32.totalorder %s49, 1
      %p381 = por %p379, %p380
      %p383 = scmp.ne.s32.totalorder %s368, %s382
      %p384 = scmp.eq.s32.totalorder %s49, 0
      %p385 = por %p383, %p384
      %s387 = sadd.s32 %s386, 1
      %p390 = scmp.eq.s32.totalorder %s43, 1
      %p391 = scmp.ne.s32.totalorder %s386, %s388
      %p392 = scmp.eq.s32.totalorder %s43, 0
      %p393 = por %p391, %p392
      %p394 = scmp.ne.s32.totalorder %s386, %s388
      %p395 = scmp.eq.s32.totalorder %s48, 1
      %p396 = por %p394, %p395
      %p397 = scmp.ne.s32.totalorder %s388, %s389
      %p398 = scmp.eq.s32.totalorder %s48, 0
      %p399 = por %p397, %p398
      %p400 = scmp.ne.s32.totalorder %s388, %s389
      %p401 = scmp.eq.s32.totalorder %s49, 1
      %p402 = por %p400, %p401
      %p404 = scmp.ne.s32.totalorder %s389, %s403
      %p405 = scmp.eq.s32.totalorder %s49, 0
      %p406 = por %p404, %p405
      %s408 = sadd.s32 %s407, 1
      %p411 = scmp.eq.s32.totalorder %s43, 1
      %p412 = scmp.ne.s32.totalorder %s407, %s409
      %p413 = scmp.eq.s32.totalorder %s43, 0
      %p414 = por %p412, %p413
      %p415 = scmp.ne.s32.totalorder %s407, %s409
      %p416 = scmp.eq.s32.totalorder %s48, 1
      %p417 = por %p415, %p416
      %p418 = scmp.ne.s32.totalorder %s409, %s410
      %p419 = scmp.eq.s32.totalorder %s48, 0
      %p420 = por %p418, %p419
      %p421 = scmp.ne.s32.totalorder %s409, %s410
      %p422 = scmp.eq.s32.totalorder %s49, 1
      %p423 = por %p421, %p422
      %p425 = scmp.ne.s32.totalorder %s410, %s424
      %p426 = scmp.eq.s32.totalorder %s49, 0
      %p427 = por %p425, %p426
      %s429 = sadd.s32 %s428, 1
      %p432 = scmp.eq.s32.totalorder %s43, 1
      %p433 = scmp.ne.s32.totalorder %s428, %s430
      %p434 = scmp.eq.s32.totalorder %s43, 0
      %p435 = por %p433, %p434
      %p436 = scmp.ne.s32.totalorder %s428, %s430
      %p437 = scmp.eq.s32.totalorder %s48, 1
      %p438 = por %p436, %p437
      %p439 = scmp.ne.s32.totalorder %s430, %s431
      %p440 = scmp.eq.s32.totalorder %s48, 0
      %p441 = por %p439, %p440
      %p442 = scmp.ne.s32.totalorder %s430, %s431
      %p443 = scmp.eq.s32.totalorder %s49, 1
      %p444 = por %p442, %p443
      %p446 = scmp.ne.s32.totalorder %s431, %s445
      %p447 = scmp.eq.s32.totalorder %s49, 0
      %p448 = por %p446, %p447
      %s450 = sadd.s32 %s449, 1
      %p453 = scmp.eq.s32.totalorder %s43, 1
      %p454 = scmp.ne.s32.totalorder %s449, %s451
      %p455 = scmp.eq.s32.totalorder %s43, 0
      %p456 = por %p454, %p455
      %p457 = scmp.ne.s32.totalorder %s449, %s451
      %p458 = scmp.eq.s32.totalorder %s48, 1
      %p459 = por %p457, %p458
      %p460 = scmp.ne.s32.totalorder %s451, %s452
      %p461 = scmp.eq.s32.totalorder %s48, 0
      %p462 = por %p460, %p461
      %p463 = scmp.ne.s32.totalorder %s451, %s452
      %p464 = scmp.eq.s32.totalorder %s49, 1
      %p465 = por %p463, %p464
      %p467 = scmp.ne.s32.totalorder %s452, %s466
      %p468 = scmp.eq.s32.totalorder %s49, 0
      %p469 = por %p467, %p468
      %s471 = sadd.s32 %s470, 1
      %p474 = scmp.eq.s32.totalorder %s43, 1
      %p475 = scmp.ne.s32.totalorder %s470, %s472
      %p476 = scmp.eq.s32.totalorder %s43, 0
      %p477 = por %p475, %p476
      %p478 = scmp.ne.s32.totalorder %s470, %s472
      %p479 = scmp.eq.s32.totalorder %s48, 1
      %p480 = por %p478, %p479
      %p481 = scmp.ne.s32.totalorder %s472, %s473
      %p482 = scmp.eq.s32.totalorder %s48, 0
      %p483 = por %p481, %p482
      %p484 = scmp.ne.s32.totalorder %s472, %s473
      %p485 = scmp.eq.s32.totalorder %s49, 1
      %p486 = por %p484, %p485
      %p488 = scmp.ne.s32.totalorder %s473, %s487
      %p489 = scmp.eq.s32.totalorder %s49, 0
      %p490 = por %p488, %p489
      %s492 = sadd.s32 %s491, 1
      %p495 = scmp.eq.s32.totalorder %s43, 1
      %p496 = scmp.ne.s32.totalorder %s491, %s493
      %p497 = scmp.eq.s32.totalorder %s43, 0
      %p498 = por %p496, %p497
      %p499 = scmp.ne.s32.totalorder %s491, %s493
      %p500 = scmp.eq.s32.totalorder %s48, 1
      %p501 = por %p499, %p500
      %p502 = scmp.ne.s32.totalorder %s493, %s494
      %p503 = scmp.eq.s32.totalorder %s48, 0
      %p504 = por %p502, %p503
      %p505 = scmp.ne.s32.totalorder %s493, %s494
      %p506 = scmp.eq.s32.totalorder %s49, 1
      %p507 = por %p505, %p506
      %p509 = scmp.ne.s32.totalorder %s494, %s508
      %p510 = scmp.eq.s32.totalorder %s49, 0
      %p511 = por %p509, %p510
      %s513 = sadd.s32 %s512, 1
      %p516 = scmp.eq.s32.totalorder %s43, 1
      %p517 = scmp.ne.s32.totalorder %s512, %s514
      %p518 = scmp.eq.s32.totalorder %s43, 0
      %p519 = por %p517, %p518
      %p520 = scmp.ne.s32.totalorder %s512, %s514
      %p521 = scmp.eq.s32.totalorder %s48, 1
      %p522 = por %p520, %p521
      %p523 = scmp.ne.s32.totalorder %s514, %s515
      %p524 = scmp.eq.s32.totalorder %s48, 0
      %p525 = por %p523, %p524
      %p526 = scmp.ne.s32.totalorder %s514, %s515
      %p527 = scmp.eq.s32.totalorder %s49, 1
      %p528 = por %p526, %p527
      %p530 = scmp.ne.s32.totalorder %s515, %s529
      %p531 = scmp.eq.s32.totalorder %s49, 0
      %p532 = por %p530, %p531
      %s533 = ssub.s32 %s43, %s50
      %p534 = scmp.eq.s32.totalorder %s533, 0
      %s536 = sadd.s32 %s535, 1
      %s537 = scalar_select %p534, %s535, %s536
      %p540 = pneg %p534
      %p541 = scmp.eq.s32.totalorder %s43, 1
      %p542 = por %p540, %p541
      %p543 = scmp.ne.s32.totalorder %s535, %s538
      %p544 = scmp.eq.s32.totalorder %s43, 0
      %p545 = por %p543, %p544
      %p546 = scmp.ne.s32.totalorder %s535, %s538
      %p547 = scmp.eq.s32.totalorder %s48, 1
      %p548 = por %p546, %p547
      %p549 = scmp.ne.s32.totalorder %s538, %s539
      %p550 = scmp.eq.s32.totalorder %s48, 0
      %p551 = por %p549, %p550
      %p552 = scmp.ne.s32.totalorder %s538, %s539
      %p553 = scmp.eq.s32.totalorder %s49, 1
      %p554 = por %p552, %p553
      %p556 = scmp.ne.s32.totalorder %s539, %s555
      %p557 = scmp.eq.s32.totalorder %s49, 0
      %p558 = por %p556, %p557
      %p559 = scmp.le.s32.totalorder 1, %s43
      %p560 = scmp.lt.s32.totalorder %s43, 3
      %p561 = pnand %p559, %p560
      %p562 = pneg %p561
      // Predicated region
      $region9: #{tpu_custom_call.1} parent=5 // pred_check
        _
      $region10: #{tpu_custom_call.1} parent=5 // pred_check_branch
        %564 = sbr.rel (%p561) target = $region12
      $region11: #{tpu_custom_call.1} parent=5 // pred_region
        %s565 = ssub.s32 %s43, 1
        // Predicated region
        $region13: #{tpu_custom_call.1} parent=11 // pred_check
          %p566 = pneg %p168
        $region14: #{tpu_custom_call.1} parent=11 // pred_check_branch
          %568 = sbr.rel (%p566) target = $region16
        $region15: #{tpu_custom_call.1} parent=11 // pred_region
          %s570 = ssub.s32 2048, 2048
          %571 = vsyncadd [#allocation9], %s570
          %s572 = sshll.u32 [#allocation10], 4
          %s573 = int_to_ptr.vmem [resolvable:$true] %s572
          %578 = dma.hbm_to_vmem [thread:$0]  %s4, 2048, %s573, [#allocation9], 64, 64, 4
        $region16: #{tpu_custom_call.1} parent=11 // pred_fallthru
          _
        // Predicated region
        $region17: #{tpu_custom_call.1} parent=11 // pred_check
          %p579 = pneg %p189
        $region18: #{tpu_custom_call.1} parent=11 // pred_check_branch
          %581 = sbr.rel (%p579) target = $region20
        $region19: #{tpu_custom_call.1} parent=11 // pred_region
          _
        $region20: #{tpu_custom_call.1} parent=11 // pred_fallthru
          _
        // Predicated region
        $region21: #{tpu_custom_call.1} parent=11 // pred_check
          %p582 = pneg %p210
        $region22: #{tpu_custom_call.1} parent=11 // pred_check_branch
          %584 = sbr.rel (%p582) target = $region24
        $region23: #{tpu_custom_call.1} parent=11 // pred_region
          %s586 = ssub.s32 2048, 2048
          %587 = vsyncadd [#allocation12], %s586
          %s588 = sshll.u32 [#allocation11], 4
          %s589 = int_to_ptr.vmem [resolvable:$true] %s588
          %594 = dma.hbm_to_vmem [thread:$0]  %s6, 2048, %s589, [#allocation12], 64, 64, 4
        $region24: #{tpu_custom_call.1} parent=11 // pred_fallthru
          _
        // Predicated region
        $region25: #{tpu_custom_call.1} parent=11 // pred_check
          %p595 = pneg %p231
        $region26: #{tpu_custom_call.1} parent=11 // pred_check_branch
          %597 = sbr.rel (%p595) target = $region28
        $region27: #{tpu_custom_call.1} parent=11 // pred_region
          _
        $region28: #{tpu_custom_call.1} parent=11 // pred_fallthru
          _
        // Predicated region
        $region29: #{tpu_custom_call.1} parent=11 // pred_check
          %p598 = pneg %p252
        $region30: #{tpu_custom_call.1} parent=11 // pred_check_branch
          %600 = sbr.rel (%p598) target = $region32
        $region31: #{tpu_custom_call.1} parent=11 // pred_region
          %s602 = ssub.s32 2048, 2048
          %603 = vsyncadd [#allocation12], %s602
          %s604 = sshll.u32 [#allocation13], 4
          %s605 = int_to_ptr.vmem [resolvable:$true] %s604
          %610 = dma.hbm_to_vmem [thread:$0]  %s8, 2048, %s605, [#allocation12], 64, 64, 4
        $region32: #{tpu_custom_call.1} parent=11 // pred_fallthru
          _
        // Predicated region
        $region33: #{tpu_custom_call.1} parent=11 // pred_check
          %p611 = pneg %p273
        $region34: #{tpu_custom_call.1} parent=11 // pred_check_branch
          %613 = sbr.rel (%p611) target = $region36
        $region35: #{tpu_custom_call.1} parent=11 // pred_region
          _
        $region36: #{tpu_custom_call.1} parent=11 // pred_fallthru
          _
        // Predicated region
        $region37: #{tpu_custom_call.1} parent=11 // pred_check
          %p614 = pneg %p294
        $region38: #{tpu_custom_call.1} parent=11 // pred_check_branch
          %616 = sbr.rel (%p614) target = $region40
        $region39: #{tpu_custom_call.1} parent=11 // pred_region
          %s618 = ssub.s32 2048, 2048
          %619 = vsyncadd [#allocation15], %s618
          %s620 = sshll.u32 [#allocation14], 4
          %s621 = int_to_ptr.vmem [resolvable:$true] %s620
          %626 = dma.hbm_to_vmem [thread:$0]  %s10, 2048, %s621, [#allocation15], 64, 64, 4
        $region40: #{tpu_custom_call.1} parent=11 // pred_fallthru
          _
        // Predicated region
        $region41: #{tpu_custom_call.1} parent=11 // pred_check
          %p627 = pneg %p315
        $region42: #{tpu_custom_call.1} parent=11 // pred_check_branch
          %629 = sbr.rel (%p627) target = $region44
        $region43: #{tpu_custom_call.1} parent=11 // pred_region
          _
        $region44: #{tpu_custom_call.1} parent=11 // pred_fallthru
          _
        // Predicated region
        $region45: #{tpu_custom_call.1} parent=11 // pred_check
          %p630 = pneg %p336
        $region46: #{tpu_custom_call.1} parent=11 // pred_check_branch
          %632 = sbr.rel (%p630) target = $region48
        $region47: #{tpu_custom_call.1} parent=11 // pred_region
          _
        $region48: #{tpu_custom_call.1} parent=11 // pred_fallthru
          _
        // Predicated region
        $region49: #{tpu_custom_call.1} parent=11 // pred_check
          %p633 = pneg %p357
        $region50: #{tpu_custom_call.1} parent=11 // pred_check_branch
          %635 = sbr.rel (%p633) target = $region52
        $region51: #{tpu_custom_call.1} parent=11 // pred_region
          _
        $region52: #{tpu_custom_call.1} parent=11 // pred_fallthru
          _
        // Predicated region
        $region53: #{tpu_custom_call.1} parent=11 // pred_check
          %p636 = pneg %p378
        $region54: #{tpu_custom_call.1} parent=11 // pred_check_branch
          %638 = sbr.rel (%p636) target = $region56
        $region55: #{tpu_custom_call.1} parent=11 // pred_region
          %s640 = ssub.s32 4096, 4096
          %641 = vsyncadd [#allocation15], %s640
          %s642 = sshll.u32 [#allocation16], 4
          %s643 = int_to_ptr.vmem [resolvable:$true] %s642
          %648 = dma.hbm_to_vmem [thread:$0]  %s14, 4096, %s643, [#allocation15], 128, 128, 8
        $region56: #{tpu_custom_call.1} parent=11 // pred_fallthru
          _
        // Predicated region
        $region57: #{tpu_custom_call.1} parent=11 // pred_check
          %p649 = pneg %p399
        $region58: #{tpu_custom_call.1} parent=11 // pred_check_branch
          %651 = sbr.rel (%p649) target = $region60
        $region59: #{tpu_custom_call.1} parent=11 // pred_region
          _
        $region60: #{tpu_custom_call.1} parent=11 // pred_fallthru
          _
        // Predicated region
        $region61: #{tpu_custom_call.1} parent=11 // pred_check
          %p652 = pneg %p420
        $region62: #{tpu_custom_call.1} parent=11 // pred_check_branch
          %654 = sbr.rel (%p652) target = $region64
        $region63: #{tpu_custom_call.1} parent=11 // pred_region
          %s656 = ssub.s32 4096, 4096
          %657 = vsyncadd [#allocation18], %s656
          %s658 = sshll.u32 [#allocation17], 4
          %s659 = int_to_ptr.vmem [resolvable:$true] %s658
          %664 = dma.hbm_to_vmem [thread:$0]  %s16, 4096, %s659, [#allocation18], 64, 64, 4
        $region64: #{tpu_custom_call.1} parent=11 // pred_fallthru
          _
        // Predicated region
        $region65: #{tpu_custom_call.1} parent=11 // pred_check
          %p665 = pneg %p441
        $region66: #{tpu_custom_call.1} parent=11 // pred_check_branch
          %667 = sbr.rel (%p665) target = $region68
        $region67: #{tpu_custom_call.1} parent=11 // pred_region
          _
        $region68: #{tpu_custom_call.1} parent=11 // pred_fallthru
          _
        // Predicated region
        $region69: #{tpu_custom_call.1} parent=11 // pred_check
          %p668 = pneg %p462
        $region70: #{tpu_custom_call.1} parent=11 // pred_check_branch
          %670 = sbr.rel (%p668) target = $region72
        $region71: #{tpu_custom_call.1} parent=11 // pred_region
          _
        $region72: #{tpu_custom_call.1} parent=11 // pred_fallthru
          _
        // Predicated region
        $region73: #{tpu_custom_call.1} parent=11 // pred_check
          %p671 = pneg %p483
        $region74: #{tpu_custom_call.1} parent=11 // pred_check_branch
          %673 = sbr.rel (%p671) target = $region76
        $region75: #{tpu_custom_call.1} parent=11 // pred_region
          _
        $region76: #{tpu_custom_call.1} parent=11 // pred_fallthru
          _
        // Predicated region
        $region77: #{tpu_custom_call.1} parent=11 // pred_check
          %p674 = pneg %p504
        $region78: #{tpu_custom_call.1} parent=11 // pred_check_branch
          %676 = sbr.rel (%p674) target = $region80
        $region79: #{tpu_custom_call.1} parent=11 // pred_region
          _
        $region80: #{tpu_custom_call.1} parent=11 // pred_fallthru
          _
        // Predicated region
        $region81: #{tpu_custom_call.1} parent=11 // pred_check
          %p677 = pneg %p525
        $region82: #{tpu_custom_call.1} parent=11 // pred_check_branch
          %679 = sbr.rel (%p677) target = $region84
        $region83: #{tpu_custom_call.1} parent=11 // pred_region
          _
        $region84: #{tpu_custom_call.1} parent=11 // pred_fallthru
          _
      $region12: #{tpu_custom_call.1} parent=5 // pred_fallthru
        _
      %p680 = scmp.lt.s32.totalorder %s43, 2
      // Predicated region
      $region85: #{tpu_custom_call.1} parent=5 // pred_check
        %p681 = pneg %p680
      $region86: #{tpu_custom_call.1} parent=5 // pred_check_branch
        %683 = sbr.rel (%p681) target = $region88
      $region87: #{tpu_custom_call.1} parent=5 // pred_region
        // Predicated region
        $region89: #{tpu_custom_call.1} parent=87 // pred_check
          %p684 = pneg %p63
        $region90: #{tpu_custom_call.1} parent=87 // pred_check_branch
          %686 = sbr.rel (%p684) target = $region92
        $region91: #{tpu_custom_call.1} parent=87 // pred_region
          %s687 = sand.u32 %s53, 1
          %s688 = scalar_lea.sflag [#allocation3], %s687
          %s689 = sand.u32 %s53, 1
          %s690 = smul.addr %s689, 16
          %s691 = scalar_lea.vmem [#allocation2], %s690
          %s693 = ssub.s32 256, 256
          %694 = vsyncadd %s688, %s693
          %s695 = smul.addr %s43, 2
          %s696 = smul.addr %s695, 128
          %s697 = scalar_lea.hbm %s0, %s696
          %s698 = sshll.u32 %s691, 4
          %s699 = int_to_ptr.vmem [resolvable:$true] %s698
          %704 = dma.hbm_to_vmem [thread:$0]  %s697, 256, %s699, %s688, 128, 128, 8
        $region92: #{tpu_custom_call.1} parent=87 // pred_fallthru
          _
        // Predicated region
        $region93: #{tpu_custom_call.1} parent=87 // pred_check
          %p705 = pneg %p89
        $region94: #{tpu_custom_call.1} parent=87 // pred_check_branch
          %707 = sbr.rel (%p705) target = $region96
        $region95: #{tpu_custom_call.1} parent=87 // pred_region
          %s708 = sand.u32 %s43, 1
          %s709 = scalar_lea.sflag [#allocation6], %s708
          %s710 = sand.u32 %s79, 1
          %s711 = smul.addr %s710, 16
          %s712 = scalar_lea.vmem [#allocation5], %s711
          %s714 = ssub.s32 256, 256
          %715 = vsyncadd %s709, %s714
          %s716 = smul.addr %s43, 2
          %s717 = smul.addr %s716, 128
          %s718 = scalar_lea.hbm %s1, %s717
          %s719 = sshll.u32 %s712, 4
          %s720 = int_to_ptr.vmem [resolvable:$true] %s719
          %725 = dma.hbm_to_vmem [thread:$0]  %s718, 256, %s720, %s709, 128, 128, 8
        $region96: #{tpu_custom_call.1} parent=87 // pred_fallthru
          _
        // Predicated region
        $region97: #{tpu_custom_call.1} parent=87 // pred_check
          %p726 = pneg %p115
        $region98: #{tpu_custom_call.1} parent=87 // pred_check_branch
          %728 = sbr.rel (%p726) target = $region100
        $region99: #{tpu_custom_call.1} parent=87 // pred_region
          %s729 = sand.u32 %s43, 1
          %s730 = scalar_lea.sflag [#allocation6], %s729
          %s731 = sand.u32 %s105, 1
          %s732 = smul.addr %s731, 8
          %s733 = scalar_lea.vmem [#allocation7], %s732
          %s735 = ssub.s32 128, 128
          %736 = vsyncadd %s730, %s735
          %s737 = smul.addr %s43, 128
          %s738 = scalar_lea.hbm %s2, %s737
          %s740 = sshll.u32 %s733, 4
          %s741 = int_to_ptr.vmem [resolvable:$true] %s740
          %743 = dma.hbm_to_vmem [thread:$0]  %s738, 128, %s741, %s730
        $region100: #{tpu_custom_call.1} parent=87 // pred_fallthru
          _
        // Predicated region
        $region101: #{tpu_custom_call.1} parent=87 // pred_check
          %p744 = pneg %p141
        $region102: #{tpu_custom_call.1} parent=87 // pred_check_branch
          %746 = sbr.rel (%p744) target = $region104
        $region103: #{tpu_custom_call.1} parent=87 // pred_region
          %s747 = sand.u32 %s43, 1
          %s748 = scalar_lea.sflag [#allocation9], %s747
          %s749 = sand.u32 %s131, 1
          %s750 = smul.addr %s749, 8
          %s751 = scalar_lea.vmem [#allocation8], %s750
          %s753 = ssub.s32 128, 128
          %754 = vsyncadd %s748, %s753
          %s755 = smul.addr %s43, 128
          %s756 = scalar_lea.hbm %s3, %s755
          %s758 = sshll.u32 %s751, 4
          %s759 = int_to_ptr.vmem [resolvable:$true] %s758
          %761 = dma.hbm_to_vmem [thread:$0]  %s756, 128, %s759, %s748
        $region104: #{tpu_custom_call.1} parent=87 // pred_fallthru
          _
      $region88: #{tpu_custom_call.1} parent=5 // pred_fallthru
        _
      %p762 = scmp.le.s32.totalorder 1, %s43
      %p763 = scmp.lt.s32.totalorder %s43, 3
      %p764 = pnand %p762, %p763
      %p765 = pneg %p764
      // Predicated region
      $region105: #{tpu_custom_call.1} parent=5 // pred_check
        _
      $region106: #{tpu_custom_call.1} parent=5 // pred_check_branch
        %767 = sbr.rel (%p764) target = $region108
      $region107: #{tpu_custom_call.1} parent=5 // pred_region
        %s768 = ssub.s32 %s43, 1
        %s769 = sand.u32 %s56, 1
        %s770 = scalar_lea.sflag [#allocation3], %s769
        %s771 = sand.u32 %s56, 1
        %s772 = smul.addr %s771, 16
        %s773 = scalar_lea.vmem [#allocation2], %s772
        // Predicated region
        $region109: #{tpu_custom_call.1} parent=107 // pred_check
          %p774 = pneg %p69
        $region110: #{tpu_custom_call.1} parent=107 // pred_check_branch
          %776 = sbr.rel (%p774) target = $region112
        $region111: #{tpu_custom_call.1} parent=107 // pred_region
          %777 = dma.done %s770, 256
        $region112: #{tpu_custom_call.1} parent=107 // pred_fallthru
          _
        %s778 = sand.u32 %s48, 1
        %s779 = scalar_lea.sflag [#allocation6], %s778
        %s780 = sand.u32 %s82, 1
        %s781 = smul.addr %s780, 16
        %s782 = scalar_lea.vmem [#allocation5], %s781
        // Predicated region
        $region113: #{tpu_custom_call.1} parent=107 // pred_check
          %p783 = pneg %p95
        $region114: #{tpu_custom_call.1} parent=107 // pred_check_branch
          %785 = sbr.rel (%p783) target = $region116
        $region115: #{tpu_custom_call.1} parent=107 // pred_region
          %786 = dma.done %s779, 256
        $region116: #{tpu_custom_call.1} parent=107 // pred_fallthru
          _
        %s787 = sand.u32 %s48, 1
        %s788 = scalar_lea.sflag [#allocation6], %s787
        %s789 = sand.u32 %s108, 1
        %s790 = smul.addr %s789, 8
        %s791 = scalar_lea.vmem [#allocation7], %s790
        // Predicated region
        $region117: #{tpu_custom_call.1} parent=107 // pred_check
          %p792 = pneg %p121
        $region118: #{tpu_custom_call.1} parent=107 // pred_check_branch
          %794 = sbr.rel (%p792) target = $region120
        $region119: #{tpu_custom_call.1} parent=107 // pred_region
          %795 = dma.done %s788, 128
        $region120: #{tpu_custom_call.1} parent=107 // pred_fallthru
          _
        %s796 = sand.u32 %s48, 1
        %s797 = scalar_lea.sflag [#allocation9], %s796
        %s798 = sand.u32 %s134, 1
        %s799 = smul.addr %s798, 8
        %s800 = scalar_lea.vmem [#allocation8], %s799
        // Predicated region
        $region121: #{tpu_custom_call.1} parent=107 // pred_check
          %p801 = pneg %p147
        $region122: #{tpu_custom_call.1} parent=107 // pred_check_branch
          %803 = sbr.rel (%p801) target = $region124
        $region123: #{tpu_custom_call.1} parent=107 // pred_region
          %804 = dma.done %s797, 128
        $region124: #{tpu_custom_call.1} parent=107 // pred_fallthru
          _
        // Predicated region
        $region125: #{tpu_custom_call.1} parent=107 // pred_check
          %p805 = pneg %p168
        $region126: #{tpu_custom_call.1} parent=107 // pred_check_branch
          %807 = sbr.rel (%p805) target = $region128
        $region127: #{tpu_custom_call.1} parent=107 // pred_region
          %808 = dma.done [#allocation9], 2048
        $region128: #{tpu_custom_call.1} parent=107 // pred_fallthru
          _
        // Predicated region
        $region129: #{tpu_custom_call.1} parent=107 // pred_check
          %p809 = pneg %p210
        $region130: #{tpu_custom_call.1} parent=107 // pred_check_branch
          %811 = sbr.rel (%p809) target = $region132
        $region131: #{tpu_custom_call.1} parent=107 // pred_region
          %812 = dma.done [#allocation12], 2048
        $region132: #{tpu_custom_call.1} parent=107 // pred_fallthru
          _
        // Predicated region
        $region133: #{tpu_custom_call.1} parent=107 // pred_check
          %p813 = pneg %p252
        $region134: #{tpu_custom_call.1} parent=107 // pred_check_branch
          %815 = sbr.rel (%p813) target = $region136
        $region135: #{tpu_custom_call.1} parent=107 // pred_region
          %816 = dma.done [#allocation12], 2048
        $region136: #{tpu_custom_call.1} parent=107 // pred_fallthru
          _
        // Predicated region
        $region137: #{tpu_custom_call.1} parent=107 // pred_check
          %p817 = pneg %p294
        $region138: #{tpu_custom_call.1} parent=107 // pred_check_branch
          %819 = sbr.rel (%p817) target = $region140
        $region139: #{tpu_custom_call.1} parent=107 // pred_region
          %820 = dma.done [#allocation15], 2048
        $region140: #{tpu_custom_call.1} parent=107 // pred_fallthru
          _
        // Predicated region
        $region141: #{tpu_custom_call.1} parent=107 // pred_check
          %p821 = pneg %p378
        $region142: #{tpu_custom_call.1} parent=107 // pred_check_branch
          %823 = sbr.rel (%p821) target = $region144
        $region143: #{tpu_custom_call.1} parent=107 // pred_region
          %824 = dma.done [#allocation15], 4096
        $region144: #{tpu_custom_call.1} parent=107 // pred_fallthru
          _
        // Predicated region
        $region145: #{tpu_custom_call.1} parent=107 // pred_check
          %p825 = pneg %p420
        $region146: #{tpu_custom_call.1} parent=107 // pred_check_branch
          %827 = sbr.rel (%p825) target = $region148
        $region147: #{tpu_custom_call.1} parent=107 // pred_region
          %828 = dma.done [#allocation18], 4096
        $region148: #{tpu_custom_call.1} parent=107 // pred_fallthru
          _
        %s829 = sand.u32 %s56, 1
        %s830 = scalar_lea.sflag [#allocation3], %s829
        %s831 = sand.u32 %s56, 1
        %s832 = smul.addr %s831, 16
        %s833 = scalar_lea.vmem [#allocation2], %s832
        %p834 = pneg %p69
        %p835 = pneg %p66
        %s836 = sand.u32 %s48, 1
        %s837 = scalar_lea.sflag [#allocation6], %s836
        %s838 = sand.u32 %s82, 1
        %s839 = smul.addr %s838, 16
        %s840 = scalar_lea.vmem [#allocation5], %s839
        %p841 = pneg %p95
        %p842 = pneg %p92
        %s843 = sand.u32 %s48, 1
        %s844 = scalar_lea.sflag [#allocation6], %s843
        %s845 = sand.u32 %s108, 1
        %s846 = smul.addr %s845, 8
        %s847 = scalar_lea.vmem [#allocation7], %s846
        %p848 = pneg %p121
        %p849 = pneg %p118
        %s850 = sand.u32 %s48, 1
        %s851 = scalar_lea.sflag [#allocation9], %s850
        %s852 = sand.u32 %s134, 1
        %s853 = smul.addr %s852, 8
        %s854 = scalar_lea.vmem [#allocation8], %s853
        %p855 = pneg %p147
        %p856 = pneg %p144
        %p857 = pneg %p168
        %p858 = pneg %p165
        %p859 = pneg %p189
        %p860 = pneg %p186
        %p861 = pneg %p210
        %p862 = pneg %p207
        %p863 = pneg %p231
        %p864 = pneg %p228
        %p865 = pneg %p252
        %p866 = pneg %p249
        %p867 = pneg %p273
        %p868 = pneg %p270
        %p869 = pneg %p294
        %p870 = pneg %p291
        %p871 = pneg %p315
        %p872 = pneg %p312
        %p873 = pneg %p336
        %p874 = pneg %p333
        %p875 = pneg %p357
        %p876 = pneg %p354
        %p877 = pneg %p378
        %p878 = pneg %p375
        %p879 = pneg %p399
        %p880 = pneg %p396
        %p881 = pneg %p420
        %p882 = pneg %p417
        %p883 = pneg %p441
        %p884 = pneg %p438
        %p885 = pneg %p462
        %p886 = pneg %p459
        %p887 = pneg %p483
        %p888 = pneg %p480
        %p889 = pneg %p504
        %p890 = pneg %p501
        %p891 = pneg %p525
        %p892 = pneg %p522
        %p893 = pneg %p551
        %p894 = pneg %p548
        %s895 = sand.u32 %s538, 1
        %s896 = scalar_lea.sflag [#allocation4], %s895
        %s897 = sand.u32 %s538, 1
        %s898 = smul.addr %s897, 8
        %s899 = scalar_lea.vmem [#allocation19], %s898
        %v901 = vld [vmem:[%s773] sm:$0xff]
        %v902 = vld [vmem:[%s773 + $0x8] sm:$0xff]
        %v903 = vld [vmem:[%s782] sm:$0xff]
        %v904 = vld [vmem:[%s782 + $0x8] sm:$0xff]
        %v905 = vadd.f32 %v901, %v903
        %v906 = vadd.f32 %v902, %v904
        %v907 = vpack.c.bf16 %v906, %v905
        %v908 = vpack.c.bf16 %v902, %v901
        %v909 = vld [vmem:[%s791] sm:$0xff]
        %v910 = vld [vmem:[%s800] sm:$0xff]
        %v911 = vadd.f32 %v909, %v910
        %v912 = vpack.c.bf16 %v911, %v911
        %v913 = vld [vmem:[#allocation10] sm:$0xf]
        %v914 = vld [vmem:[#allocation10 + $0x4] sm:$0xf]
        %v915 = vld [vmem:[#allocation10 + $0x8] sm:$0xf]
        %v916 = vld [vmem:[#allocation10 + $0xc] sm:$0xf]
        %v917 = vld [vmem:[#allocation10 + $0x10] sm:$0xf]
        %v918 = vld [vmem:[#allocation10 + $0x14] sm:$0xf]
        %v919 = vld [vmem:[#allocation10 + $0x18] sm:$0xf]
        %v920 = vld [vmem:[#allocation10 + $0x1c] sm:$0xf]
        %v921 = vld [vmem:[#allocation10 + $0x20] sm:$0xf]
        %v922 = vld [vmem:[#allocation10 + $0x24] sm:$0xf]
        %v923 = vld [vmem:[#allocation10 + $0x28] sm:$0xf]
        %v924 = vld [vmem:[#allocation10 + $0x2c] sm:$0xf]
        %v925 = vld [vmem:[#allocation10 + $0x30] sm:$0xf]
        %v926 = vld [vmem:[#allocation10 + $0x34] sm:$0xf]
        %v927 = vld [vmem:[#allocation10 + $0x38] sm:$0xf]
        %v928 = vld [vmem:[#allocation10 + $0x3c] sm:$0xf]
        %v929 = vld [vmem:[%s5] sm:$0x1]
        %v931 = vlaneseq
        %v932 = vshrl.u32 %v931, 7
        %v933 = vsub.s32 0, %v932
        %v934 = vrot.slane %v929, %v933
        %v952 = vunpack.c.l.b16 %v913
        %v953 = vunpack.c.l.b16 %v914
        %v954 = vunpack.c.l.b16 %v915
        %v955 = vunpack.c.l.b16 %v916
        %v956 = vunpack.c.l.b16 %v917
        %v957 = vunpack.c.l.b16 %v918
        %v958 = vunpack.c.l.b16 %v919
        %v959 = vunpack.c.l.b16 %v920
        %v960 = vunpack.c.l.b16 %v921
        %v961 = vunpack.c.l.b16 %v922
        %v962 = vunpack.c.l.b16 %v923
        %v963 = vunpack.c.l.b16 %v924
        %v964 = vunpack.c.l.b16 %v925
        %v965 = vunpack.c.l.b16 %v926
        %v966 = vunpack.c.l.b16 %v927
        %v967 = vunpack.c.l.b16 %v928
        %v968 = vpack.c.b16 %v953, %v952
        %v969 = vpack.c.b16 %v955, %v954
        %v970 = vpack.c.b16 %v957, %v956
        %v971 = vpack.c.b16 %v959, %v958
        %v972 = vpack.c.b16 %v961, %v960
        %v973 = vpack.c.b16 %v963, %v962
        %v974 = vpack.c.b16 %v965, %v964
        %v975 = vpack.c.b16 %v967, %v966
        %984 = vmatprep.subr.bf16.mxu0 0
        %985 = vmatpush1.bf16.msra.mxu0 %v968
        %986 = vmatprep.subr.bf16.mxu0 0
        %987 = vmatpush1.bf16.msra.mxu0 %v969
        %988 = vmatprep.subr.bf16.mxu0 0
        %989 = vmatpush1.bf16.msra.mxu0 %v970
        %990 = vmatprep.subr.bf16.mxu0 0
        %991 = vmatpush1.bf16.msra.mxu0 %v971
        %992 = vmatprep.subr.bf16.mxu0 0
        %993 = vmatpush1.bf16.msra.mxu0 %v972
        %994 = vmatprep.subr.bf16.mxu0 0
        %995 = vmatpush1.bf16.msra.mxu0 %v973
        %996 = vmatprep.subr.bf16.mxu0 0
        %997 = vmatpush1.bf16.msra.mxu0 %v974
        %998 = vmatprep.subr.bf16.mxu0 0
        %999 = vmatpush1.bf16.msra.mxu0 %v975
        %1000 = vmatprep.subr.bf16.mxu0 0
        %1001 = vmatpush1.bf16.msra.mxu0 0
        %1002 = vmatprep.subr.bf16.mxu0 0
        %1003 = vmatpush1.bf16.msra.mxu0 0
        %1004 = vmatprep.subr.bf16.mxu0 0
        %1005 = vmatpush1.bf16.msra.mxu0 0
        %1006 = vmatprep.subr.bf16.mxu0 0
        %1007 = vmatpush1.bf16.msra.mxu0 0
        %1008 = vmatprep.subr.bf16.mxu0 0
        %1009 = vmatpush1.bf16.msra.mxu0 0
        %1010 = vmatprep.subr.bf16.mxu0 0
        %1011 = vmatpush1.bf16.msra.mxu0 0
        %1012 = vmatprep.subr.bf16.mxu0 0
        %1013 = vmatpush1.bf16.msra.mxu0 0
        %1014 = vmatprep.subr.bf16.mxu0 0
        %1015 = vmatpush1.bf16.msra.mxu0 0
        %1016 = vmatprep.mubr.bf16.mxu0 0
        %1017 = vmatmul.mubr.bf16.gmra.mrb[0].mxu0 %v912
        %v1018 = vpop.f32.mrb[0].mxu0
        %v1019 = vadd.f32 %v934, %v1018
        %v1020 = vpop.f32.mrb[0].mxu0
        %v1021 = vpop.f32.mrb[0].mxu0
        %v1022 = vpop.f32.mrb[0].mxu0
        %1023 = vdwg.mxu0
        %v1024 = vld [vmem:[#allocation11] sm:$0xf]
        %v1025 = vld [vmem:[#allocation11 + $0x4] sm:$0xf]
        %v1026 = vld [vmem:[#allocation11 + $0x8] sm:$0xf]
        %v1027 = vld [vmem:[#allocation11 + $0xc] sm:$0xf]
        %v1028 = vld [vmem:[#allocation11 + $0x10] sm:$0xf]
        %v1029 = vld [vmem:[#allocation11 + $0x14] sm:$0xf]
        %v1030 = vld [vmem:[#allocation11 + $0x18] sm:$0xf]
        %v1031 = vld [vmem:[#allocation11 + $0x1c] sm:$0xf]
        %v1032 = vld [vmem:[#allocation11 + $0x20] sm:$0xf]
        %v1033 = vld [vmem:[#allocation11 + $0x24] sm:$0xf]
        %v1034 = vld [vmem:[#allocation11 + $0x28] sm:$0xf]
        %v1035 = vld [vmem:[#allocation11 + $0x2c] sm:$0xf]
        %v1036 = vld [vmem:[#allocation11 + $0x30] sm:$0xf]
        %v1037 = vld [vmem:[#allocation11 + $0x34] sm:$0xf]
        %v1038 = vld [vmem:[#allocation11 + $0x38] sm:$0xf]
        %v1039 = vld [vmem:[#allocation11 + $0x3c] sm:$0xf]
        %v1040 = vld [vmem:[%s7] sm:$0x1]
        %v1042 = vlaneseq
        %v1043 = vshrl.u32 %v1042, 7
        %v1044 = vsub.s32 0, %v1043
        %v1045 = vrot.slane %v1040, %v1044
        %v1063 = vunpack.c.l.b16 %v1024
        %v1064 = vunpack.c.l.b16 %v1025
        %v1065 = vunpack.c.l.b16 %v1026
        %v1066 = vunpack.c.l.b16 %v1027
        %v1067 = vunpack.c.l.b16 %v1028
        %v1068 = vunpack.c.l.b16 %v1029
        %v1069 = vunpack.c.l.b16 %v1030
        %v1070 = vunpack.c.l.b16 %v1031
        %v1071 = vunpack.c.l.b16 %v1032
        %v1072 = vunpack.c.l.b16 %v1033
        %v1073 = vunpack.c.l.b16 %v1034
        %v1074 = vunpack.c.l.b16 %v1035
        %v1075 = vunpack.c.l.b16 %v1036
        %v1076 = vunpack.c.l.b16 %v1037
        %v1077 = vunpack.c.l.b16 %v1038
        %v1078 = vunpack.c.l.b16 %v1039
        %v1079 = vpack.c.b16 %v1064, %v1063
        %v1080 = vpack.c.b16 %v1066, %v1065
        %v1081 = vpack.c.b16 %v1068, %v1067
        %v1082 = vpack.c.b16 %v1070, %v1069
        %v1083 = vpack.c.b16 %v1072, %v1071
        %v1084 = vpack.c.b16 %v1074, %v1073
        %v1085 = vpack.c.b16 %v1076, %v1075
        %v1086 = vpack.c.b16 %v1078, %v1077
        %1095 = vmatprep.subr.bf16.mxu0 0
        %1096 = vmatpush1.bf16.msra.mxu0 %v1079
        %1097 = vmatprep.subr.bf16.mxu0 0
        %1098 = vmatpush1.bf16.msra.mxu0 %v1080
        %1099 = vmatprep.subr.bf16.mxu0 0
        %1100 = vmatpush1.bf16.msra.mxu0 %v1081
        %1101 = vmatprep.subr.bf16.mxu0 0
        %1102 = vmatpush1.bf16.msra.mxu0 %v1082
        %1103 = vmatprep.subr.bf16.mxu0 0
        %1104 = vmatpush1.bf16.msra.mxu0 %v1083
        %1105 = vmatprep.subr.bf16.mxu0 0
        %1106 = vmatpush1.bf16.msra.mxu0 %v1084
        %1107 = vmatprep.subr.bf16.mxu0 0
        %1108 = vmatpush1.bf16.msra.mxu0 %v1085
        %1109 = vmatprep.subr.bf16.mxu0 0
        %1110 = vmatpush1.bf16.msra.mxu0 %v1086
        %1111 = vmatprep.subr.bf16.mxu0 0
        %1112 = vmatpush1.bf16.msra.mxu0 0
        %1113 = vmatprep.subr.bf16.mxu0 0
        %1114 = vmatpush1.bf16.msra.mxu0 0
        %1115 = vmatprep.subr.bf16.mxu0 0
        %1116 = vmatpush1.bf16.msra.mxu0 0
        %1117 = vmatprep.subr.bf16.mxu0 0
        %1118 = vmatpush1.bf16.msra.mxu0 0
        %1119 = vmatprep.subr.bf16.mxu0 0
        %1120 = vmatpush1.bf16.msra.mxu0 0
        %1121 = vmatprep.subr.bf16.mxu0 0
        %1122 = vmatpush1.bf16.msra.mxu0 0
        %1123 = vmatprep.subr.bf16.mxu0 0
        %1124 = vmatpush1.bf16.msra.mxu0 0
        %1125 = vmatprep.subr.bf16.mxu0 0
        %1126 = vmatpush1.bf16.msra.mxu0 0
        %1127 = vmatprep.mubr.bf16.mxu0 0
        %1128 = vmatmul.mubr.bf16.gmra.mrb[0].mxu0 %v907
        %v1129 = vpop.f32.mrb[0].mxu0
        %v1130 = vadd.f32 %v1045, %v1129
        %v1131 = vpop.f32.mrb[0].mxu0
        %v1132 = vpop.f32.mrb[0].mxu0
        %v1133 = vadd.f32 %v1045, %v1132
        %v1134 = vpop.f32.mrb[0].mxu0
        %1135 = vdwg.mxu0
        %v1136 = vld [vmem:[#allocation13] sm:$0xf]
        %v1137 = vld [vmem:[#allocation13 + $0x4] sm:$0xf]
        %v1138 = vld [vmem:[#allocation13 + $0x8] sm:$0xf]
        %v1139 = vld [vmem:[#allocation13 + $0xc] sm:$0xf]
        %v1140 = vld [vmem:[#allocation13 + $0x10] sm:$0xf]
        %v1141 = vld [vmem:[#allocation13 + $0x14] sm:$0xf]
        %v1142 = vld [vmem:[#allocation13 + $0x18] sm:$0xf]
        %v1143 = vld [vmem:[#allocation13 + $0x1c] sm:$0xf]
        %v1144 = vld [vmem:[#allocation13 + $0x20] sm:$0xf]
        %v1145 = vld [vmem:[#allocation13 + $0x24] sm:$0xf]
        %v1146 = vld [vmem:[#allocation13 + $0x28] sm:$0xf]
        %v1147 = vld [vmem:[#allocation13 + $0x2c] sm:$0xf]
        %v1148 = vld [vmem:[#allocation13 + $0x30] sm:$0xf]
        %v1149 = vld [vmem:[#allocation13 + $0x34] sm:$0xf]
        %v1150 = vld [vmem:[#allocation13 + $0x38] sm:$0xf]
        %v1151 = vld [vmem:[#allocation13 + $0x3c] sm:$0xf]
        %v1152 = vld [vmem:[%s9] sm:$0x1]
        %v1154 = vlaneseq
        %v1155 = vshrl.u32 %v1154, 7
        %v1156 = vsub.s32 0, %v1155
        %v1157 = vrot.slane %v1152, %v1156
        %v1175 = vunpack.c.l.b16 %v1136
        %v1176 = vunpack.c.l.b16 %v1137
        %v1177 = vunpack.c.l.b16 %v1138
        %v1178 = vunpack.c.l.b16 %v1139
        %v1179 = vunpack.c.l.b16 %v1140
        %v1180 = vunpack.c.l.b16 %v1141
        %v1181 = vunpack.c.l.b16 %v1142
        %v1182 = vunpack.c.l.b16 %v1143
        %v1183 = vunpack.c.l.b16 %v1144
        %v1184 = vunpack.c.l.b16 %v1145
        %v1185 = vunpack.c.l.b16 %v1146
        %v1186 = vunpack.c.l.b16 %v1147
        %v1187 = vunpack.c.l.b16 %v1148
        %v1188 = vunpack.c.l.b16 %v1149
        %v1189 = vunpack.c.l.b16 %v1150
        %v1190 = vunpack.c.l.b16 %v1151
        %v1191 = vpack.c.b16 %v1176, %v1175
        %v1192 = vpack.c.b16 %v1178, %v1177
        %v1193 = vpack.c.b16 %v1180, %v1179
        %v1194 = vpack.c.b16 %v1182, %v1181
        %v1195 = vpack.c.b16 %v1184, %v1183
        %v1196 = vpack.c.b16 %v1186, %v1185
        %v1197 = vpack.c.b16 %v1188, %v1187
        %v1198 = vpack.c.b16 %v1190, %v1189
        %1207 = vmatprep.subr.bf16.mxu0 0
        %1208 = vmatpush1.bf16.msra.mxu0 %v1191
        %1209 = vmatprep.subr.bf16.mxu0 0
        %1210 = vmatpush1.bf16.msra.mxu0 %v1192
        %1211 = vmatprep.subr.bf16.mxu0 0
        %1212 = vmatpush1.bf16.msra.mxu0 %v1193
        %1213 = vmatprep.subr.bf16.mxu0 0
        %1214 = vmatpush1.bf16.msra.mxu0 %v1194
        %1215 = vmatprep.subr.bf16.mxu0 0
        %1216 = vmatpush1.bf16.msra.mxu0 %v1195
        %1217 = vmatprep.subr.bf16.mxu0 0
        %1218 = vmatpush1.bf16.msra.mxu0 %v1196
        %1219 = vmatprep.subr.bf16.mxu0 0
        %1220 = vmatpush1.bf16.msra.mxu0 %v1197
        %1221 = vmatprep.subr.bf16.mxu0 0
        %1222 = vmatpush1.bf16.msra.mxu0 %v1198
        %1223 = vmatprep.subr.bf16.mxu0 0
        %1224 = vmatpush1.bf16.msra.mxu0 0
        %1225 = vmatprep.subr.bf16.mxu0 0
        %1226 = vmatpush1.bf16.msra.mxu0 0
        %1227 = vmatprep.subr.bf16.mxu0 0
        %1228 = vmatpush1.bf16.msra.mxu0 0
        %1229 = vmatprep.subr.bf16.mxu0 0
        %1230 = vmatpush1.bf16.msra.mxu0 0
        %1231 = vmatprep.subr.bf16.mxu0 0
        %1232 = vmatpush1.bf16.msra.mxu0 0
        %1233 = vmatprep.subr.bf16.mxu0 0
        %1234 = vmatpush1.bf16.msra.mxu0 0
        %1235 = vmatprep.subr.bf16.mxu0 0
        %1236 = vmatpush1.bf16.msra.mxu0 0
        %1237 = vmatprep.subr.bf16.mxu0 0
        %1238 = vmatpush1.bf16.msra.mxu0 0
        %1239 = vmatprep.mubr.bf16.mxu0 0
        %1240 = vmatmul.mubr.bf16.gmra.mrb[0].mxu0 %v908
        %v1241 = vpop.f32.mrb[0].mxu0
        %v1242 = vadd.f32 %v1157, %v1241
        %v1243 = vpop.f32.mrb[0].mxu0
        %v1244 = vpop.f32.mrb[0].mxu0
        %v1245 = vadd.f32 %v1157, %v1244
        %v1246 = vpop.f32.mrb[0].mxu0
        %1247 = vdwg.mxu0
        %v1248 = vpack.c.bf16 %v1019, %v1019
        %v1249 = vpack.c.bf16 %v1133, %v1130
        %v1250 = vpack.c.bf16 %v1245, %v1242
        %vm1251 = vcmask 261120
        %v1253 = vsel %vm1251, %v1248, 0
        %v1256 = vsel %vm1251, %v1249, 0
        %1258 = vmatprep.subr.bf16.mxu0 0
        %1259 = vmatpush1.bf16.xpose.msra.mxu0 %v1256
        %1260 = vmatprep.subr.bf16.mxu0 0
        %1261 = vmatpush1.bf16.xpose.msra.mxu0 0
        %1262 = vmatprep.subr.bf16.mxu0 0
        %1263 = vmatpush1.bf16.xpose.msra.mxu0 0
        %1264 = vmatprep.subr.bf16.mxu0 0
        %1265 = vmatpush1.bf16.xpose.msra.mxu0 0
        %1266 = vmatprep.subr.bf16.mxu0 0
        %1267 = vmatpush1.bf16.xpose.msra.mxu0 0
        %1268 = vmatprep.subr.bf16.mxu0 0
        %1269 = vmatpush1.bf16.xpose.msra.mxu0 0
        %1270 = vmatprep.subr.bf16.mxu0 0
        %1271 = vmatpush1.bf16.xpose.msra.mxu0 0
        %1272 = vmatprep.subr.bf16.mxu0 0
        %1273 = vmatpush1.bf16.xpose.msra.mxu0 0
        %1274 = vmatprep.subr.bf16.mxu0 0
        %1275 = vmatpush1.bf16.xpose.msra.mxu0 0
        %1276 = vmatprep.subr.bf16.mxu0 0
        %1277 = vmatpush1.bf16.xpose.msra.mxu0 0
        %1278 = vmatprep.subr.bf16.mxu0 0
        %1279 = vmatpush1.bf16.xpose.msra.mxu0 0
        %1280 = vmatprep.subr.bf16.mxu0 0
        %1281 = vmatpush1.bf16.xpose.msra.mxu0 0
        %1282 = vmatprep.subr.bf16.mxu0 0
        %1283 = vmatpush1.bf16.xpose.msra.mxu0 0
        %1284 = vmatprep.subr.bf16.mxu0 0
        %1285 = vmatpush1.bf16.xpose.msra.mxu0 0
        %1286 = vmatprep.subr.bf16.mxu0 0
        %1287 = vmatpush1.bf16.xpose.msra.mxu0 0
        %1288 = vmatprep.subr.bf16.mxu0 0
        %1289 = vmatpush1.bf16.xpose.msra.mxu0 0
        %1290 = vmatprep.mubr.bf16.mxu0 0
        %1291 = vmatmul.mubr.bf16.gmra.mrb[0].mxu0 %v1253
        %v1292 = vpop.f32.mrb[0].mxu0
        %v1293 = vadd.f32 0.0, %v1292
        %v1294 = vpop.f32.mrb[0].mxu0
        %v1295 = vpop.f32.mrb[0].mxu0
        %v1296 = vpop.f32.mrb[0].mxu0
        %1297 = vdwg.mxu0
        %vm1298 = vcmask 130048
        %v1299 = vsel %vm1298, %v1293, -inf
        %1300 = vmax.xlane.f32.xlu0 %v1299
        %v1301 = vpop.xlane.xlu0 %1300
        %v1302 = vsub.f32 %v1293, %v1301
        %v1303 = vmul.f32 %v1302, 1.442695
        %v1304 = vpow.pop %v1303
        %v1305 = vsel %vm1298, %v1304, 0.0
        %1306 = vadd.xlane.f32.xlu0 %v1305
        %v1307 = vpop.xlane.xlu0 %1306
        %v1308 = vrcp.pop %v1307
        %v1309 = vmul.f32 %v1304, %v1308
        %v1310 = vpack.c.bf16 %v1309, %v1309
        %v1312 = vsel %vm1298, %v1310, 0
        %1314 = vmatprep.subr.bf16.mxu0 0
        %1315 = vmatpush1.bf16.msra.mxu0 %v1250
        %1316 = vmatprep.subr.bf16.mxu0 0
        %1317 = vmatpush1.bf16.msra.mxu0 0
        %1318 = vmatprep.subr.bf16.mxu0 0
        %1319 = vmatpush1.bf16.msra.mxu0 0
        %1320 = vmatprep.subr.bf16.mxu0 0
        %1321 = vmatpush1.bf16.msra.mxu0 0
        %1322 = vmatprep.subr.bf16.mxu0 0
        %1323 = vmatpush1.bf16.msra.mxu0 0
        %1324 = vmatprep.subr.bf16.mxu0 0
        %1325 = vmatpush1.bf16.msra.mxu0 0
        %1326 = vmatprep.subr.bf16.mxu0 0
        %1327 = vmatpush1.bf16.msra.mxu0 0
        %1328 = vmatprep.subr.bf16.mxu0 0
        %1329 = vmatpush1.bf16.msra.mxu0 0
        %1330 = vmatprep.subr.bf16.mxu0 0
        %1331 = vmatpush1.bf16.msra.mxu0 0
        %1332 = vmatprep.subr.bf16.mxu0 0
        %1333 = vmatpush1.bf16.msra.mxu0 0
        %1334 = vmatprep.subr.bf16.mxu0 0
        %1335 = vmatpush1.bf16.msra.mxu0 0
        %1336 = vmatprep.subr.bf16.mxu0 0
        %1337 = vmatpush1.bf16.msra.mxu0 0
        %1338 = vmatprep.subr.bf16.mxu0 0
        %1339 = vmatpush1.bf16.msra.mxu0 0
        %1340 = vmatprep.subr.bf16.mxu0 0
        %1341 = vmatpush1.bf16.msra.mxu0 0
        %1342 = vmatprep.subr.bf16.mxu0 0
        %1343 = vmatpush1.bf16.msra.mxu0 0
        %1344 = vmatprep.subr.bf16.mxu0 0
        %1345 = vmatpush1.bf16.msra.mxu0 0
        %1346 = vmatprep.mubr.bf16.mxu0 0
        %1347 = vmatmul.mubr.bf16.gmra.mrb[0].mxu0 %v1312
        %v1348 = vpop.f32.mrb[0].mxu0
        %v1349 = vadd.f32 0.0, %v1348
        %v1350 = vpop.f32.mrb[0].mxu0
        %v1351 = vpop.f32.mrb[0].mxu0
        %v1352 = vpop.f32.mrb[0].mxu0
        %1353 = vdwg.mxu0
        %1355 = vrot.lane.b32.xlu0 %v1248, 96
        %v1356 = vpop.permute.xlu0 %1355
        %1358 = vrot.lane.b32.xlu0 %v1249, 96
        %v1359 = vpop.permute.xlu0 %1358
        %v1361 = vsel %vm1251, %v1356, 0
        %v1364 = vsel %vm1251, %v1359, 0
        %1366 = vmatprep.subr.bf16.mxu0 0
        %1367 = vmatpush1.bf16.xpose.msra.mxu0 %v1364
        %1368 = vmatprep.subr.bf16.mxu0 0
        %1369 = vmatpush1.bf16.xpose.msra.mxu0 0
        %1370 = vmatprep.subr.bf16.mxu0 0
        %1371 = vmatpush1.bf16.xpose.msra.mxu0 0
        %1372 = vmatprep.subr.bf16.mxu0 0
        %1373 = vmatpush1.bf16.xpose.msra.mxu0 0
        %1374 = vmatprep.subr.bf16.mxu0 0
        %1375 = vmatpush1.bf16.xpose.msra.mxu0 0
        %1376 = vmatprep.subr.bf16.mxu0 0
        %1377 = vmatpush1.bf16.xpose.msra.mxu0 0
        %1378 = vmatprep.subr.bf16.mxu0 0
        %1379 = vmatpush1.bf16.xpose.msra.mxu0 0
        %1380 = vmatprep.subr.bf16.mxu0 0
        %1381 = vmatpush1.bf16.xpose.msra.mxu0 0
        %1382 = vmatprep.subr.bf16.mxu0 0
        %1383 = vmatpush1.bf16.xpose.msra.mxu0 0
        %1384 = vmatprep.subr.bf16.mxu0 0
        %1385 = vmatpush1.bf16.xpose.msra.mxu0 0
        %1386 = vmatprep.subr.bf16.mxu0 0
        %1387 = vmatpush1.bf16.xpose.msra.mxu0 0
        %1388 = vmatprep.subr.bf16.mxu0 0
        %1389 = vmatpush1.bf16.xpose.msra.mxu0 0
        %1390 = vmatprep.subr.bf16.mxu0 0
        %1391 = vmatpush1.bf16.xpose.msra.mxu0 0
        %1392 = vmatprep.subr.bf16.mxu0 0
        %1393 = vmatpush1.bf16.xpose.msra.mxu0 0
        %1394 = vmatprep.subr.bf16.mxu0 0
        %1395 = vmatpush1.bf16.xpose.msra.mxu0 0
        %1396 = vmatprep.subr.bf16.mxu0 0
        %1397 = vmatpush1.bf16.xpose.msra.mxu0 0
        %1398 = vmatprep.mubr.bf16.mxu0 0
        %1399 = vmatmul.mubr.bf16.gmra.mrb[0].mxu0 %v1361
        %v1400 = vpop.f32.mrb[0].mxu0
        %v1401 = vadd.f32 0.0, %v1400
        %v1402 = vpop.f32.mrb[0].mxu0
        %v1403 = vpop.f32.mrb[0].mxu0
        %v1404 = vpop.f32.mrb[0].mxu0
        %1405 = vdwg.mxu0
        %v1406 = vsel %vm1298, %v1401, -inf
        %1407 = vmax.xlane.f32.xlu0 %v1406
        %v1408 = vpop.xlane.xlu0 %1407
        %v1409 = vsub.f32 %v1401, %v1408
        %v1410 = vmul.f32 %v1409, 1.442695
        %v1411 = vpow.pop %v1410
        %v1412 = vsel %vm1298, %v1411, 0.0
        %1413 = vadd.xlane.f32.xlu0 %v1412
        %v1414 = vpop.xlane.xlu0 %1413
        %v1415 = vrcp.pop %v1414
        %v1416 = vmul.f32 %v1411, %v1415
        %v1417 = vpack.c.bf16 %v1416, %v1416
        %1419 = vrot.lane.b32.xlu0 %v1250, 96
        %v1420 = vpop.permute.xlu0 %1419
        %v1423 = vsel %vm1298, %v1417, 0
        %1425 = vmatprep.subr.bf16.mxu0 0
        %1426 = vmatpush1.bf16.msra.mxu0 %v1420
        %1427 = vmatprep.subr.bf16.mxu0 0
        %1428 = vmatpush1.bf16.msra.mxu0 0
        %1429 = vmatprep.subr.bf16.mxu0 0
        %1430 = vmatpush1.bf16.msra.mxu0 0
        %1431 = vmatprep.subr.bf16.mxu0 0
        %1432 = vmatpush1.bf16.msra.mxu0 0
        %1433 = vmatprep.subr.bf16.mxu0 0
        %1434 = vmatpush1.bf16.msra.mxu0 0
        %1435 = vmatprep.subr.bf16.mxu0 0
        %1436 = vmatpush1.bf16.msra.mxu0 0
        %1437 = vmatprep.subr.bf16.mxu0 0
        %1438 = vmatpush1.bf16.msra.mxu0 0
        %1439 = vmatprep.subr.bf16.mxu0 0
        %1440 = vmatpush1.bf16.msra.mxu0 0
        %1441 = vmatprep.subr.bf16.mxu0 0
        %1442 = vmatpush1.bf16.msra.mxu0 0
        %1443 = vmatprep.subr.bf16.mxu0 0
        %1444 = vmatpush1.bf16.msra.mxu0 0
        %1445 = vmatprep.subr.bf16.mxu0 0
        %1446 = vmatpush1.bf16.msra.mxu0 0
        %1447 = vmatprep.subr.bf16.mxu0 0
        %1448 = vmatpush1.bf16.msra.mxu0 0
        %1449 = vmatprep.subr.bf16.mxu0 0
        %1450 = vmatpush1.bf16.msra.mxu0 0
        %1451 = vmatprep.subr.bf16.mxu0 0
        %1452 = vmatpush1.bf16.msra.mxu0 0
        %1453 = vmatprep.subr.bf16.mxu0 0
        %1454 = vmatpush1.bf16.msra.mxu0 0
        %1455 = vmatprep.subr.bf16.mxu0 0
        %1456 = vmatpush1.bf16.msra.mxu0 0
        %1457 = vmatprep.mubr.bf16.mxu0 0
        %1458 = vmatmul.mubr.bf16.gmra.mrb[0].mxu0 %v1423
        %v1459 = vpop.f32.mrb[0].mxu0
        %v1460 = vadd.f32 0.0, %v1459
        %v1461 = vpop.f32.mrb[0].mxu0
        %v1462 = vpop.f32.mrb[0].mxu0
        %v1463 = vpop.f32.mrb[0].mxu0
        %1464 = vdwg.mxu0
        %1465 = vrot.lane.b32.xlu0 %v1248, 64
        %v1466 = vpop.permute.xlu0 %1465
        %1467 = vrot.lane.b32.xlu0 %v1249, 64
        %v1468 = vpop.permute.xlu0 %1467
        %v1470 = vsel %vm1251, %v1466, 0
        %v1473 = vsel %vm1251, %v1468, 0
        %1475 = vmatprep.subr.bf16.mxu0 0
        %1476 = vmatpush1.bf16.xpose.msra.mxu0 %v1473
        %1477 = vmatprep.subr.bf16.mxu0 0
        %1478 = vmatpush1.bf16.xpose.msra.mxu0 0
        %1479 = vmatprep.subr.bf16.mxu0 0
        %1480 = vmatpush1.bf16.xpose.msra.mxu0 0
        %1481 = vmatprep.subr.bf16.mxu0 0
        %1482 = vmatpush1.bf16.xpose.msra.mxu0 0
        %1483 = vmatprep.subr.bf16.mxu0 0
        %1484 = vmatpush1.bf16.xpose.msra.mxu0 0
        %1485 = vmatprep.subr.bf16.mxu0 0
        %1486 = vmatpush1.bf16.xpose.msra.mxu0 0
        %1487 = vmatprep.subr.bf16.mxu0 0
        %1488 = vmatpush1.bf16.xpose.msra.mxu0 0
        %1489 = vmatprep.subr.bf16.mxu0 0
        %1490 = vmatpush1.bf16.xpose.msra.mxu0 0
        %1491 = vmatprep.subr.bf16.mxu0 0
        %1492 = vmatpush1.bf16.xpose.msra.mxu0 0
        %1493 = vmatprep.subr.bf16.mxu0 0
        %1494 = vmatpush1.bf16.xpose.msra.mxu0 0
        %1495 = vmatprep.subr.bf16.mxu0 0
        %1496 = vmatpush1.bf16.xpose.msra.mxu0 0
        %1497 = vmatprep.subr.bf16.mxu0 0
        %1498 = vmatpush1.bf16.xpose.msra.mxu0 0
        %1499 = vmatprep.subr.bf16.mxu0 0
        %1500 = vmatpush1.bf16.xpose.msra.mxu0 0
        %1501 = vmatprep.subr.bf16.mxu0 0
        %1502 = vmatpush1.bf16.xpose.msra.mxu0 0
        %1503 = vmatprep.subr.bf16.mxu0 0
        %1504 = vmatpush1.bf16.xpose.msra.mxu0 0
        %1505 = vmatprep.subr.bf16.mxu0 0
        %1506 = vmatpush1.bf16.xpose.msra.mxu0 0
        %1507 = vmatprep.mubr.bf16.mxu0 0
        %1508 = vmatmul.mubr.bf16.gmra.mrb[0].mxu0 %v1470
        %v1509 = vpop.f32.mrb[0].mxu0
        %v1510 = vadd.f32 0.0, %v1509
        %v1511 = vpop.f32.mrb[0].mxu0
        %v1512 = vpop.f32.mrb[0].mxu0
        %v1513 = vpop.f32.mrb[0].mxu0
        %1514 = vdwg.mxu0
        %v1515 = vsel %vm1298, %v1510, -inf
        %1516 = vmax.xlane.f32.xlu0 %v1515
        %v1517 = vpop.xlane.xlu0 %1516
        %v1518 = vsub.f32 %v1510, %v1517
        %v1519 = vmul.f32 %v1518, 1.442695
        %v1520 = vpow.pop %v1519
        %v1521 = vsel %vm1298, %v1520, 0.0
        %1522 = vadd.xlane.f32.xlu0 %v1521
        %v1523 = vpop.xlane.xlu0 %1522
        %v1524 = vrcp.pop %v1523
        %v1525 = vmul.f32 %v1520, %v1524
        %v1526 = vpack.c.bf16 %v1525, %v1525
        %1527 = vrot.lane.b32.xlu0 %v1250, 64
        %v1528 = vpop.permute.xlu0 %1527
        %v1531 = vsel %vm1298, %v1526, 0
        %1533 = vmatprep.subr.bf16.mxu0 0
        %1534 = vmatpush1.bf16.msra.mxu0 %v1528
        %1535 = vmatprep.subr.bf16.mxu0 0
        %1536 = vmatpush1.bf16.msra.mxu0 0
        %1537 = vmatprep.subr.bf16.mxu0 0
        %1538 = vmatpush1.bf16.msra.mxu0 0
        %1539 = vmatprep.subr.bf16.mxu0 0
        %1540 = vmatpush1.bf16.msra.mxu0 0
        %1541 = vmatprep.subr.bf16.mxu0 0
        %1542 = vmatpush1.bf16.msra.mxu0 0
        %1543 = vmatprep.subr.bf16.mxu0 0
        %1544 = vmatpush1.bf16.msra.mxu0 0
        %1545 = vmatprep.subr.bf16.mxu0 0
        %1546 = vmatpush1.bf16.msra.mxu0 0
        %1547 = vmatprep.subr.bf16.mxu0 0
        %1548 = vmatpush1.bf16.msra.mxu0 0
        %1549 = vmatprep.subr.bf16.mxu0 0
        %1550 = vmatpush1.bf16.msra.mxu0 0
        %1551 = vmatprep.subr.bf16.mxu0 0
        %1552 = vmatpush1.bf16.msra.mxu0 0
        %1553 = vmatprep.subr.bf16.mxu0 0
        %1554 = vmatpush1.bf16.msra.mxu0 0
        %1555 = vmatprep.subr.bf16.mxu0 0
        %1556 = vmatpush1.bf16.msra.mxu0 0
        %1557 = vmatprep.subr.bf16.mxu0 0
        %1558 = vmatpush1.bf16.msra.mxu0 0
        %1559 = vmatprep.subr.bf16.mxu0 0
        %1560 = vmatpush1.bf16.msra.mxu0 0
        %1561 = vmatprep.subr.bf16.mxu0 0
        %1562 = vmatpush1.bf16.msra.mxu0 0
        %1563 = vmatprep.subr.bf16.mxu0 0
        %1564 = vmatpush1.bf16.msra.mxu0 0
        %1565 = vmatprep.mubr.bf16.mxu0 0
        %1566 = vmatmul.mubr.bf16.gmra.mrb[0].mxu0 %v1531
        %v1567 = vpop.f32.mrb[0].mxu0
        %v1568 = vadd.f32 0.0, %v1567
        %v1569 = vpop.f32.mrb[0].mxu0
        %v1570 = vpop.f32.mrb[0].mxu0
        %v1571 = vpop.f32.mrb[0].mxu0
        %1572 = vdwg.mxu0
        %1573 = vrot.lane.b32.xlu0 %v1248, 32
        %v1574 = vpop.permute.xlu0 %1573
        %1575 = vrot.lane.b32.xlu0 %v1249, 32
        %v1576 = vpop.permute.xlu0 %1575
        %v1578 = vsel %vm1251, %v1574, 0
        %v1581 = vsel %vm1251, %v1576, 0
        %1583 = vmatprep.subr.bf16.mxu0 0
        %1584 = vmatpush1.bf16.xpose.msra.mxu0 %v1581
        %1585 = vmatprep.subr.bf16.mxu0 0
        %1586 = vmatpush1.bf16.xpose.msra.mxu0 0
        %1587 = vmatprep.subr.bf16.mxu0 0
        %1588 = vmatpush1.bf16.xpose.msra.mxu0 0
        %1589 = vmatprep.subr.bf16.mxu0 0
        %1590 = vmatpush1.bf16.xpose.msra.mxu0 0
        %1591 = vmatprep.subr.bf16.mxu0 0
        %1592 = vmatpush1.bf16.xpose.msra.mxu0 0
        %1593 = vmatprep.subr.bf16.mxu0 0
        %1594 = vmatpush1.bf16.xpose.msra.mxu0 0
        %1595 = vmatprep.subr.bf16.mxu0 0
        %1596 = vmatpush1.bf16.xpose.msra.mxu0 0
        %1597 = vmatprep.subr.bf16.mxu0 0
        %1598 = vmatpush1.bf16.xpose.msra.mxu0 0
        %1599 = vmatprep.subr.bf16.mxu0 0
        %1600 = vmatpush1.bf16.xpose.msra.mxu0 0
        %1601 = vmatprep.subr.bf16.mxu0 0
        %1602 = vmatpush1.bf16.xpose.msra.mxu0 0
        %1603 = vmatprep.subr.bf16.mxu0 0
        %1604 = vmatpush1.bf16.xpose.msra.mxu0 0
        %1605 = vmatprep.subr.bf16.mxu0 0
        %1606 = vmatpush1.bf16.xpose.msra.mxu0 0
        %1607 = vmatprep.subr.bf16.mxu0 0
        %1608 = vmatpush1.bf16.xpose.msra.mxu0 0
        %1609 = vmatprep.subr.bf16.mxu0 0
        %1610 = vmatpush1.bf16.xpose.msra.mxu0 0
        %1611 = vmatprep.subr.bf16.mxu0 0
        %1612 = vmatpush1.bf16.xpose.msra.mxu0 0
        %1613 = vmatprep.subr.bf16.mxu0 0
        %1614 = vmatpush1.bf16.xpose.msra.mxu0 0
        %1615 = vmatprep.mubr.bf16.mxu0 0
        %1616 = vmatmul.mubr.bf16.gmra.mrb[0].mxu0 %v1578
        %v1617 = vpop.f32.mrb[0].mxu0
        %v1618 = vadd.f32 0.0, %v1617
        %v1619 = vpop.f32.mrb[0].mxu0
        %v1620 = vpop.f32.mrb[0].mxu0
        %v1621 = vpop.f32.mrb[0].mxu0
        %1622 = vdwg.mxu0
        %v1623 = vsel %vm1298, %v1618, -inf
        %1624 = vmax.xlane.f32.xlu0 %v1623
        %v1625 = vpop.xlane.xlu0 %1624
        %v1626 = vsub.f32 %v1618, %v1625
        %v1627 = vmul.f32 %v1626, 1.442695
        %v1628 = vpow.pop %v1627
        %v1629 = vsel %vm1298, %v1628, 0.0
        %1630 = vadd.xlane.f32.xlu0 %v1629
        %v1631 = vpop.xlane.xlu0 %1630
        %v1632 = vrcp.pop %v1631
        %v1633 = vmul.f32 %v1628, %v1632
        %v1634 = vpack.c.bf16 %v1633, %v1633
        %1635 = vrot.lane.b32.xlu0 %v1250, 32
        %v1636 = vpop.permute.xlu0 %1635
        %v1639 = vsel %vm1298, %v1634, 0
        %1641 = vmatprep.subr.bf16.mxu0 0
        %1642 = vmatpush1.bf16.msra.mxu0 %v1636
        %1643 = vmatprep.subr.bf16.mxu0 0
        %1644 = vmatpush1.bf16.msra.mxu0 0
        %1645 = vmatprep.subr.bf16.mxu0 0
        %1646 = vmatpush1.bf16.msra.mxu0 0
        %1647 = vmatprep.subr.bf16.mxu0 0
        %1648 = vmatpush1.bf16.msra.mxu0 0
        %1649 = vmatprep.subr.bf16.mxu0 0
        %1650 = vmatpush1.bf16.msra.mxu0 0
        %1651 = vmatprep.subr.bf16.mxu0 0
        %1652 = vmatpush1.bf16.msra.mxu0 0
        %1653 = vmatprep.subr.bf16.mxu0 0
        %1654 = vmatpush1.bf16.msra.mxu0 0
        %1655 = vmatprep.subr.bf16.mxu0 0
        %1656 = vmatpush1.bf16.msra.mxu0 0
        %1657 = vmatprep.subr.bf16.mxu0 0
        %1658 = vmatpush1.bf16.msra.mxu0 0
        %1659 = vmatprep.subr.bf16.mxu0 0
        %1660 = vmatpush1.bf16.msra.mxu0 0
        %1661 = vmatprep.subr.bf16.mxu0 0
        %1662 = vmatpush1.bf16.msra.mxu0 0
        %1663 = vmatprep.subr.bf16.mxu0 0
        %1664 = vmatpush1.bf16.msra.mxu0 0
        %1665 = vmatprep.subr.bf16.mxu0 0
        %1666 = vmatpush1.bf16.msra.mxu0 0
        %1667 = vmatprep.subr.bf16.mxu0 0
        %1668 = vmatpush1.bf16.msra.mxu0 0
        %1669 = vmatprep.subr.bf16.mxu0 0
        %1670 = vmatpush1.bf16.msra.mxu0 0
        %1671 = vmatprep.subr.bf16.mxu0 0
        %1672 = vmatpush1.bf16.msra.mxu0 0
        %1673 = vmatprep.mubr.bf16.mxu0 0
        %1674 = vmatmul.mubr.bf16.gmra.mrb[0].mxu0 %v1639
        %v1675 = vpop.f32.mrb[0].mxu0
        %v1676 = vadd.f32 0.0, %v1675
        %v1677 = vpop.f32.mrb[0].mxu0
        %v1678 = vpop.f32.mrb[0].mxu0
        %v1679 = vpop.f32.mrb[0].mxu0
        %1680 = vdwg.mxu0
        %1682 = vrot.lane.b32.xlu0 %v1460, 32
        %v1683 = vpop.permute.xlu0 %1682
        %1686 = vrot.lane.b32.xlu0 %v1568, 64
        %v1687 = vpop.permute.xlu0 %1686
        %1690 = vrot.lane.b32.xlu0 %v1676, 96
        %v1691 = vpop.permute.xlu0 %1690
        %v1693 = vsel %vm1251, %v1349, %v1683
        %vm1694 = vcmask 523264
        %v1695 = vsel %vm1694, %v1693, %v1687
        %vm1696 = vcmask 785408
        %v1697 = vsel %vm1696, %v1695, %v1691
        %v1698 = vpack.c.bf16 %v1697, %v1697
        %v1699 = vld [vmem:[#allocation14] sm:$0xf]
        %v1700 = vld [vmem:[#allocation14 + $0x4] sm:$0xf]
        %v1701 = vld [vmem:[#allocation14 + $0x8] sm:$0xf]
        %v1702 = vld [vmem:[#allocation14 + $0xc] sm:$0xf]
        %v1703 = vld [vmem:[#allocation14 + $0x10] sm:$0xf]
        %v1704 = vld [vmem:[#allocation14 + $0x14] sm:$0xf]
        %v1705 = vld [vmem:[#allocation14 + $0x18] sm:$0xf]
        %v1706 = vld [vmem:[#allocation14 + $0x1c] sm:$0xf]
        %v1707 = vld [vmem:[#allocation14 + $0x20] sm:$0xf]
        %v1708 = vld [vmem:[#allocation14 + $0x24] sm:$0xf]
        %v1709 = vld [vmem:[#allocation14 + $0x28] sm:$0xf]
        %v1710 = vld [vmem:[#allocation14 + $0x2c] sm:$0xf]
        %v1711 = vld [vmem:[#allocation14 + $0x30] sm:$0xf]
        %v1712 = vld [vmem:[#allocation14 + $0x34] sm:$0xf]
        %v1713 = vld [vmem:[#allocation14 + $0x38] sm:$0xf]
        %v1714 = vld [vmem:[#allocation14 + $0x3c] sm:$0xf]
        %v1715 = vld [vmem:[%s11] sm:$0x1]
        %v1717 = vlaneseq
        %v1718 = vshrl.u32 %v1717, 7
        %v1719 = vsub.s32 0, %v1718
        %v1720 = vrot.slane %v1715, %v1719
        %v1738 = vunpack.c.l.b16 %v1699
        %v1739 = vunpack.c.l.b16 %v1700
        %v1740 = vunpack.c.l.b16 %v1701
        %v1741 = vunpack.c.l.b16 %v1702
        %v1742 = vunpack.c.l.b16 %v1703
        %v1743 = vunpack.c.l.b16 %v1704
        %v1744 = vunpack.c.l.b16 %v1705
        %v1745 = vunpack.c.l.b16 %v1706
        %v1746 = vunpack.c.l.b16 %v1707
        %v1747 = vunpack.c.l.b16 %v1708
        %v1748 = vunpack.c.l.b16 %v1709
        %v1749 = vunpack.c.l.b16 %v1710
        %v1750 = vunpack.c.l.b16 %v1711
        %v1751 = vunpack.c.l.b16 %v1712
        %v1752 = vunpack.c.l.b16 %v1713
        %v1753 = vunpack.c.l.b16 %v1714
        %v1754 = vpack.c.b16 %v1739, %v1738
        %v1755 = vpack.c.b16 %v1741, %v1740
        %v1756 = vpack.c.b16 %v1743, %v1742
        %v1757 = vpack.c.b16 %v1745, %v1744
        %v1758 = vpack.c.b16 %v1747, %v1746
        %v1759 = vpack.c.b16 %v1749, %v1748
        %v1760 = vpack.c.b16 %v1751, %v1750
        %v1761 = vpack.c.b16 %v1753, %v1752
        %1770 = vmatprep.subr.bf16.mxu0 0
        %1771 = vmatpush1.bf16.msra.mxu0 %v1754
        %1772 = vmatprep.subr.bf16.mxu0 0
        %1773 = vmatpush1.bf16.msra.mxu0 %v1755
        %1774 = vmatprep.subr.bf16.mxu0 0
        %1775 = vmatpush1.bf16.msra.mxu0 %v1756
        %1776 = vmatprep.subr.bf16.mxu0 0
        %1777 = vmatpush1.bf16.msra.mxu0 %v1757
        %1778 = vmatprep.subr.bf16.mxu0 0
        %1779 = vmatpush1.bf16.msra.mxu0 %v1758
        %1780 = vmatprep.subr.bf16.mxu0 0
        %1781 = vmatpush1.bf16.msra.mxu0 %v1759
        %1782 = vmatprep.subr.bf16.mxu0 0
        %1783 = vmatpush1.bf16.msra.mxu0 %v1760
        %1784 = vmatprep.subr.bf16.mxu0 0
        %1785 = vmatpush1.bf16.msra.mxu0 %v1761
        %1786 = vmatprep.subr.bf16.mxu0 0
        %1787 = vmatpush1.bf16.msra.mxu0 0
        %1788 = vmatprep.subr.bf16.mxu0 0
        %1789 = vmatpush1.bf16.msra.mxu0 0
        %1790 = vmatprep.subr.bf16.mxu0 0
        %1791 = vmatpush1.bf16.msra.mxu0 0
        %1792 = vmatprep.subr.bf16.mxu0 0
        %1793 = vmatpush1.bf16.msra.mxu0 0
        %1794 = vmatprep.subr.bf16.mxu0 0
        %1795 = vmatpush1.bf16.msra.mxu0 0
        %1796 = vmatprep.subr.bf16.mxu0 0
        %1797 = vmatpush1.bf16.msra.mxu0 0
        %1798 = vmatprep.subr.bf16.mxu0 0
        %1799 = vmatpush1.bf16.msra.mxu0 0
        %1800 = vmatprep.subr.bf16.mxu0 0
        %1801 = vmatpush1.bf16.msra.mxu0 0
        %1802 = vmatprep.mubr.bf16.mxu0 0
        %1803 = vmatmul.mubr.bf16.gmra.mrb[0].mxu0 %v1698
        %v1804 = vpop.f32.mrb[0].mxu0
        %v1805 = vadd.f32 %v1720, %v1804
        %v1806 = vpop.f32.mrb[0].mxu0
        %v1807 = vpop.f32.mrb[0].mxu0
        %v1808 = vpop.f32.mrb[0].mxu0
        %1809 = vdwg.mxu0
        %v1810 = vadd.f32 %v909, %v1805
        %v1811 = vld [vmem:[%s12] sm:$0x1]
        %v1812 = vld [vmem:[%s13] sm:$0x1]
        %1813 = vadd.xlane.f32.xlu0 %v1810
        %v1814 = vpop.xlane.xlu0 %1813
        %v1815 = vrcp.pop 128.0
        %v1816 = vmul.f32 %v1814, %v1815
        %v1817 = vsub.f32 %v1810, %v1816
        %v1818 = vmul.f32 %v1817, %v1817
        %1819 = vadd.xlane.f32.xlu0 %v1818
        %v1820 = vpop.xlane.xlu0 %1819
        %v1821 = vmul.f32 %v1820, %v1815
        %v1822 = vadd.f32 %v1821, 1e-05
        %v1823 = vrsqrt.pop %v1822
        %v1824 = vmul.f32 %v1817, %v1823
        %v1826 = vlaneseq
        %v1827 = vshrl.u32 %v1826, 7
        %v1828 = vsub.s32 0, %v1827
        %v1829 = vrot.slane %v1811, %v1828
        %v1831 = vmul.f32 %v1824, %v1829
        %v1833 = vlaneseq
        %v1834 = vshrl.u32 %v1833, 7
        %v1835 = vsub.s32 0, %v1834
        %v1836 = vrot.slane %v1812, %v1835
        %v1838 = vadd.f32 %v1831, %v1836
        %v1839 = vpack.c.bf16 %v1838, %v1838
        %v1840 = vld [vmem:[#allocation16] sm:$0xff]
        %v1841 = vld [vmem:[#allocation16 + $0x8] sm:$0xff]
        %v1842 = vld [vmem:[#allocation16 + $0x10] sm:$0xff]
        %v1843 = vld [vmem:[#allocation16 + $0x18] sm:$0xff]
        %v1844 = vld [vmem:[#allocation16 + $0x20] sm:$0xff]
        %v1845 = vld [vmem:[#allocation16 + $0x28] sm:$0xff]
        %v1846 = vld [vmem:[#allocation16 + $0x30] sm:$0xff]
        %v1847 = vld [vmem:[#allocation16 + $0x38] sm:$0xff]
        %v1848 = vld [vmem:[#allocation16 + $0x40] sm:$0xff]
        %v1849 = vld [vmem:[#allocation16 + $0x48] sm:$0xff]
        %v1850 = vld [vmem:[#allocation16 + $0x50] sm:$0xff]
        %v1851 = vld [vmem:[#allocation16 + $0x58] sm:$0xff]
        %v1852 = vld [vmem:[#allocation16 + $0x60] sm:$0xff]
        %v1853 = vld [vmem:[#allocation16 + $0x68] sm:$0xff]
        %v1854 = vld [vmem:[#allocation16 + $0x70] sm:$0xff]
        %v1855 = vld [vmem:[#allocation16 + $0x78] sm:$0xff]
        %v1856 = vld [vmem:[%s15] sm:$0x3]
        %v1858 = vlaneseq
        %v1859 = vshrl.u32 %v1858, 7
        %v1860 = vsub.s32 0, %v1859
        %v1861 = vrot.slane %v1856, %v1860
        %v1862 = vlaneseq
        %v1863 = vshrl.u32 %v1862, 7
        %v1864 = vsub.s32 1, %v1863
        %v1865 = vrot.slane %v1856, %v1864
        %v1884 = vunpack.c.l.b16 %v1840
        %v1885 = vunpack.c.h.b16 %v1840
        %v1886 = vunpack.c.l.b16 %v1841
        %v1887 = vunpack.c.h.b16 %v1841
        %v1888 = vunpack.c.l.b16 %v1842
        %v1889 = vunpack.c.h.b16 %v1842
        %v1890 = vunpack.c.l.b16 %v1843
        %v1891 = vunpack.c.h.b16 %v1843
        %v1892 = vunpack.c.l.b16 %v1844
        %v1893 = vunpack.c.h.b16 %v1844
        %v1894 = vunpack.c.l.b16 %v1845
        %v1895 = vunpack.c.h.b16 %v1845
        %v1896 = vunpack.c.l.b16 %v1846
        %v1897 = vunpack.c.h.b16 %v1846
        %v1898 = vunpack.c.l.b16 %v1847
        %v1899 = vunpack.c.h.b16 %v1847
        %v1900 = vunpack.c.l.b16 %v1848
        %v1901 = vunpack.c.h.b16 %v1848
        %v1902 = vunpack.c.l.b16 %v1849
        %v1903 = vunpack.c.h.b16 %v1849
        %v1904 = vunpack.c.l.b16 %v1850
        %v1905 = vunpack.c.h.b16 %v1850
        %v1906 = vunpack.c.l.b16 %v1851
        %v1907 = vunpack.c.h.b16 %v1851
        %v1908 = vunpack.c.l.b16 %v1852
        %v1909 = vunpack.c.h.b16 %v1852
        %v1910 = vunpack.c.l.b16 %v1853
        %v1911 = vunpack.c.h.b16 %v1853
        %v1912 = vunpack.c.l.b16 %v1854
        %v1913 = vunpack.c.h.b16 %v1854
        %v1914 = vunpack.c.l.b16 %v1855
        %v1915 = vunpack.c.h.b16 %v1855
        %v1916 = vpack.c.b16 %v1886, %v1884
        %v1917 = vpack.c.b16 %v1887, %v1885
        %v1918 = vpack.c.b16 %v1890, %v1888
        %v1919 = vpack.c.b16 %v1891, %v1889
        %v1920 = vpack.c.b16 %v1894, %v1892
        %v1921 = vpack.c.b16 %v1895, %v1893
        %v1922 = vpack.c.b16 %v1898, %v1896
        %v1923 = vpack.c.b16 %v1899, %v1897
        %v1924 = vpack.c.b16 %v1902, %v1900
        %v1925 = vpack.c.b16 %v1903, %v1901
        %v1926 = vpack.c.b16 %v1906, %v1904
        %v1927 = vpack.c.b16 %v1907, %v1905
        %v1928 = vpack.c.b16 %v1910, %v1908
        %v1929 = vpack.c.b16 %v1911, %v1909
        %v1930 = vpack.c.b16 %v1914, %v1912
        %v1931 = vpack.c.b16 %v1915, %v1913
        %1948 = vmatprep.subr.bf16.mxu0 %v1917
        %1949 = vmatpush1.bf16.msra.mxu0 %v1916
        %1950 = vmatprep.subr.bf16.mxu0 %v1919
        %1951 = vmatpush1.bf16.msra.mxu0 %v1918
        %1952 = vmatprep.subr.bf16.mxu0 %v1921
        %1953 = vmatpush1.bf16.msra.mxu0 %v1920
        %1954 = vmatprep.subr.bf16.mxu0 %v1923
        %1955 = vmatpush1.bf16.msra.mxu0 %v1922
        %1956 = vmatprep.subr.bf16.mxu0 %v1925
        %1957 = vmatpush1.bf16.msra.mxu0 %v1924
        %1958 = vmatprep.subr.bf16.mxu0 %v1927
        %1959 = vmatpush1.bf16.msra.mxu0 %v1926
        %1960 = vmatprep.subr.bf16.mxu0 %v1929
        %1961 = vmatpush1.bf16.msra.mxu0 %v1928
        %1962 = vmatprep.subr.bf16.mxu0 %v1931
        %1963 = vmatpush1.bf16.msra.mxu0 %v1930
        %1964 = vmatprep.subr.bf16.mxu0 0
        %1965 = vmatpush1.bf16.msra.mxu0 0
        %1966 = vmatprep.subr.bf16.mxu0 0
        %1967 = vmatpush1.bf16.msra.mxu0 0
        %1968 = vmatprep.subr.bf16.mxu0 0
        %1969 = vmatpush1.bf16.msra.mxu0 0
        %1970 = vmatprep.subr.bf16.mxu0 0
        %1971 = vmatpush1.bf16.msra.mxu0 0
        %1972 = vmatprep.subr.bf16.mxu0 0
        %1973 = vmatpush1.bf16.msra.mxu0 0
        %1974 = vmatprep.subr.bf16.mxu0 0
        %1975 = vmatpush1.bf16.msra.mxu0 0
        %1976 = vmatprep.subr.bf16.mxu0 0
        %1977 = vmatpush1.bf16.msra.mxu0 0
        %1978 = vmatprep.subr.bf16.mxu0 0
        %1979 = vmatpush1.bf16.msra.mxu0 0
        %1980 = vmatprep.mubr.bf16.mxu0 0
        %1981 = vmatmul.mubr.bf16.gmra.mrb[0].mxu0 %v1839
        %v1982 = vpop.f32.mrb[0].mxu0
        %v1983 = vadd.f32 %v1861, %v1982
        %v1984 = vpop.f32.mrb[0].mxu0
        %v1985 = vadd.f32 %v1865, %v1984
        %v1986 = vpop.f32.mrb[0].mxu0
        %v1987 = vpop.f32.mrb[0].mxu0
        %1988 = vdwg.mxu0
        %v1989 = vmax.f32 %v1983, 0.0
        %v1990 = vmax.f32 %v1985, 0.0
        %v1991 = vpack.c.bf16 %v1989, %v1989
        %v1992 = vpack.c.bf16 %v1990, %v1990
        %v1993 = vld [vmem:[#allocation17] sm:$0xf]
        %v1994 = vld [vmem:[#allocation17 + $0x4] sm:$0xf]
        %v1995 = vld [vmem:[#allocation17 + $0x8] sm:$0xf]
        %v1996 = vld [vmem:[#allocation17 + $0xc] sm:$0xf]
        %v1997 = vld [vmem:[#allocation17 + $0x10] sm:$0xf]
        %v1998 = vld [vmem:[#allocation17 + $0x14] sm:$0xf]
        %v1999 = vld [vmem:[#allocation17 + $0x18] sm:$0xf]
        %v2000 = vld [vmem:[#allocation17 + $0x1c] sm:$0xf]
        %v2001 = vld [vmem:[#allocation17 + $0x20] sm:$0xf]
        %v2002 = vld [vmem:[#allocation17 + $0x24] sm:$0xf]
        %v2003 = vld [vmem:[#allocation17 + $0x28] sm:$0xf]
        %v2004 = vld [vmem:[#allocation17 + $0x2c] sm:$0xf]
        %v2005 = vld [vmem:[#allocation17 + $0x30] sm:$0xf]
        %v2006 = vld [vmem:[#allocation17 + $0x34] sm:$0xf]
        %v2007 = vld [vmem:[#allocation17 + $0x38] sm:$0xf]
        %v2008 = vld [vmem:[#allocation17 + $0x3c] sm:$0xf]
        %v2009 = vld [vmem:[#allocation17 + $0x40] sm:$0xf]
        %v2010 = vld [vmem:[#allocation17 + $0x44] sm:$0xf]
        %v2011 = vld [vmem:[#allocation17 + $0x48] sm:$0xf]
        %v2012 = vld [vmem:[#allocation17 + $0x4c] sm:$0xf]
        %v2013 = vld [vmem:[#allocation17 + $0x50] sm:$0xf]
        %v2014 = vld [vmem:[#allocation17 + $0x54] sm:$0xf]
        %v2015 = vld [vmem:[#allocation17 + $0x58] sm:$0xf]
        %v2016 = vld [vmem:[#allocation17 + $0x5c] sm:$0xf]
        %v2017 = vld [vmem:[#allocation17 + $0x60] sm:$0xf]
        %v2018 = vld [vmem:[#allocation17 + $0x64] sm:$0xf]
        %v2019 = vld [vmem:[#allocation17 + $0x68] sm:$0xf]
        %v2020 = vld [vmem:[#allocation17 + $0x6c] sm:$0xf]
        %v2021 = vld [vmem:[#allocation17 + $0x70] sm:$0xf]
        %v2022 = vld [vmem:[#allocation17 + $0x74] sm:$0xf]
        %v2023 = vld [vmem:[#allocation17 + $0x78] sm:$0xf]
        %v2024 = vld [vmem:[#allocation17 + $0x7c] sm:$0xf]
        %v2025 = vld [vmem:[%s17] sm:$0x1]
        %v2027 = vlaneseq
        %v2028 = vshrl.u32 %v2027, 7
        %v2029 = vsub.s32 0, %v2028
        %v2030 = vrot.slane %v2025, %v2029
        %v2064 = vunpack.c.l.b16 %v1993
        %v2065 = vunpack.c.l.b16 %v1994
        %v2066 = vunpack.c.l.b16 %v1995
        %v2067 = vunpack.c.l.b16 %v1996
        %v2068 = vunpack.c.l.b16 %v1997
        %v2069 = vunpack.c.l.b16 %v1998
        %v2070 = vunpack.c.l.b16 %v1999
        %v2071 = vunpack.c.l.b16 %v2000
        %v2072 = vunpack.c.l.b16 %v2001
        %v2073 = vunpack.c.l.b16 %v2002
        %v2074 = vunpack.c.l.b16 %v2003
        %v2075 = vunpack.c.l.b16 %v2004
        %v2076 = vunpack.c.l.b16 %v2005
        %v2077 = vunpack.c.l.b16 %v2006
        %v2078 = vunpack.c.l.b16 %v2007
        %v2079 = vunpack.c.l.b16 %v2008
        %v2080 = vunpack.c.l.b16 %v2009
        %v2081 = vunpack.c.l.b16 %v2010
        %v2082 = vunpack.c.l.b16 %v2011
        %v2083 = vunpack.c.l.b16 %v2012
        %v2084 = vunpack.c.l.b16 %v2013
        %v2085 = vunpack.c.l.b16 %v2014
        %v2086 = vunpack.c.l.b16 %v2015
        %v2087 = vunpack.c.l.b16 %v2016
        %v2088 = vunpack.c.l.b16 %v2017
        %v2089 = vunpack.c.l.b16 %v2018
        %v2090 = vunpack.c.l.b16 %v2019
        %v2091 = vunpack.c.l.b16 %v2020
        %v2092 = vunpack.c.l.b16 %v2021
        %v2093 = vunpack.c.l.b16 %v2022
        %v2094 = vunpack.c.l.b16 %v2023
        %v2095 = vunpack.c.l.b16 %v2024
        %v2096 = vpack.c.b16 %v2065, %v2064
        %v2097 = vpack.c.b16 %v2067, %v2066
        %v2098 = vpack.c.b16 %v2069, %v2068
        %v2099 = vpack.c.b16 %v2071, %v2070
        %v2100 = vpack.c.b16 %v2073, %v2072
        %v2101 = vpack.c.b16 %v2075, %v2074
        %v2102 = vpack.c.b16 %v2077, %v2076
        %v2103 = vpack.c.b16 %v2079, %v2078
        %v2104 = vpack.c.b16 %v2081, %v2080
        %v2105 = vpack.c.b16 %v2083, %v2082
        %v2106 = vpack.c.b16 %v2085, %v2084
        %v2107 = vpack.c.b16 %v2087, %v2086
        %v2108 = vpack.c.b16 %v2089, %v2088
        %v2109 = vpack.c.b16 %v2091, %v2090
        %v2110 = vpack.c.b16 %v2093, %v2092
        %v2111 = vpack.c.b16 %v2095, %v2094
        %2128 = vmatprep.subr.bf16.mxu0 0
        %2129 = vmatpush1.bf16.msra.mxu0 %v2096
        %2130 = vmatprep.subr.bf16.mxu0 0
        %2131 = vmatpush1.bf16.msra.mxu0 %v2097
        %2132 = vmatprep.subr.bf16.mxu0 0
        %2133 = vmatpush1.bf16.msra.mxu0 %v2098
        %2134 = vmatprep.subr.bf16.mxu0 0
        %2135 = vmatpush1.bf16.msra.mxu0 %v2099
        %2136 = vmatprep.subr.bf16.mxu0 0
        %2137 = vmatpush1.bf16.msra.mxu0 %v2100
        %2138 = vmatprep.subr.bf16.mxu0 0
        %2139 = vmatpush1.bf16.msra.mxu0 %v2101
        %2140 = vmatprep.subr.bf16.mxu0 0
        %2141 = vmatpush1.bf16.msra.mxu0 %v2102
        %2142 = vmatprep.subr.bf16.mxu0 0
        %2143 = vmatpush1.bf16.msra.mxu0 %v2103
        %2144 = vmatprep.subr.bf16.mxu0 0
        %2145 = vmatpush1.bf16.msra.mxu0 %v2104
        %2146 = vmatprep.subr.bf16.mxu0 0
        %2147 = vmatpush1.bf16.msra.mxu0 %v2105
        %2148 = vmatprep.subr.bf16.mxu0 0
        %2149 = vmatpush1.bf16.msra.mxu0 %v2106
        %2150 = vmatprep.subr.bf16.mxu0 0
        %2151 = vmatpush1.bf16.msra.mxu0 %v2107
        %2152 = vmatprep.subr.bf16.mxu0 0
        %2153 = vmatpush1.bf16.msra.mxu0 %v2108
        %2154 = vmatprep.subr.bf16.mxu0 0
        %2155 = vmatpush1.bf16.msra.mxu0 %v2109
        %2156 = vmatprep.subr.bf16.mxu0 0
        %2157 = vmatpush1.bf16.msra.mxu0 %v2110
        %2158 = vmatprep.subr.bf16.mxu0 0
        %2159 = vmatpush1.bf16.msra.mxu0 %v2111
        %2160 = vmatprep.mubr.bf16.mxu0 %v1992
        %2161 = vmatmul.mubr.bf16.gmra.mrb[0].mxu0 %v1991
        %v2162 = vpop.f32.mrb[0].mxu0
        %v2163 = vadd.f32 %v2030, %v2162
        %v2164 = vpop.f32.mrb[0].mxu0
        %v2165 = vpop.f32.mrb[0].mxu0
        %v2166 = vpop.f32.mrb[0].mxu0
        %2167 = vdwg.mxu0
        %v2168 = vadd.f32 %v1838, %v2163
        %v2169 = vld [vmem:[%s18] sm:$0x1]
        %v2170 = vld [vmem:[%s19] sm:$0x1]
        %2171 = vadd.xlane.f32.xlu0 %v2168
        %v2172 = vpop.xlane.xlu0 %2171
        %v2173 = vmul.f32 %v2172, %v1815
        %v2174 = vsub.f32 %v2168, %v2173
        %v2175 = vmul.f32 %v2174, %v2174
        %2176 = vadd.xlane.f32.xlu0 %v2175
        %v2177 = vpop.xlane.xlu0 %2176
        %v2178 = vmul.f32 %v2177, %v1815
        %v2179 = vadd.f32 %v2178, 1e-05
        %v2180 = vrsqrt.pop %v2179
        %v2181 = vmul.f32 %v2174, %v2180
        %v2183 = vlaneseq
        %v2184 = vshrl.u32 %v2183, 7
        %v2185 = vsub.s32 0, %v2184
        %v2186 = vrot.slane %v2169, %v2185
        %v2188 = vmul.f32 %v2181, %v2186
        %v2190 = vlaneseq
        %v2191 = vshrl.u32 %v2190, 7
        %v2192 = vsub.s32 0, %v2191
        %v2193 = vrot.slane %v2170, %v2192
        %v2195 = vadd.f32 %v2188, %v2193
        %v2196 = vadd.f32 %v2195, %v910
        %v2197 = vpack.c.bf16 %v2196, %v2196
        %s2198 = scalar_lea.vmem [#allocation10], 64
        %v2199 = vld [vmem:[%s2198] sm:$0xf]
        %v2200 = vld [vmem:[%s2198 + $0x4] sm:$0xf]
        %v2201 = vld [vmem:[%s2198 + $0x8] sm:$0xf]
        %v2202 = vld [vmem:[%s2198 + $0xc] sm:$0xf]
        %v2203 = vld [vmem:[%s2198 + $0x10] sm:$0xf]
        %v2204 = vld [vmem:[%s2198 + $0x14] sm:$0xf]
        %v2205 = vld [vmem:[%s2198 + $0x18] sm:$0xf]
        %v2206 = vld [vmem:[%s2198 + $0x1c] sm:$0xf]
        %v2207 = vld [vmem:[%s2198 + $0x20] sm:$0xf]
        %v2208 = vld [vmem:[%s2198 + $0x24] sm:$0xf]
        %v2209 = vld [vmem:[%s2198 + $0x28] sm:$0xf]
        %v2210 = vld [vmem:[%s2198 + $0x2c] sm:$0xf]
        %v2211 = vld [vmem:[%s2198 + $0x30] sm:$0xf]
        %v2212 = vld [vmem:[%s2198 + $0x34] sm:$0xf]
        %v2213 = vld [vmem:[%s2198 + $0x38] sm:$0xf]
        %v2214 = vld [vmem:[%s2198 + $0x3c] sm:$0xf]
        %s2215 = scalar_lea.vmem %s5, 1
        %v2216 = vld [vmem:[%s2215] sm:$0x1]
        %v2218 = vlaneseq
        %v2219 = vshrl.u32 %v2218, 7
        %v2220 = vsub.s32 0, %v2219
        %v2221 = vrot.slane %v2216, %v2220
        %v2239 = vunpack.c.l.b16 %v2199
        %v2240 = vunpack.c.l.b16 %v2200
        %v2241 = vunpack.c.l.b16 %v2201
        %v2242 = vunpack.c.l.b16 %v2202
        %v2243 = vunpack.c.l.b16 %v2203
        %v2244 = vunpack.c.l.b16 %v2204
        %v2245 = vunpack.c.l.b16 %v2205
        %v2246 = vunpack.c.l.b16 %v2206
        %v2247 = vunpack.c.l.b16 %v2207
        %v2248 = vunpack.c.l.b16 %v2208
        %v2249 = vunpack.c.l.b16 %v2209
        %v2250 = vunpack.c.l.b16 %v2210
        %v2251 = vunpack.c.l.b16 %v2211
        %v2252 = vunpack.c.l.b16 %v2212
        %v2253 = vunpack.c.l.b16 %v2213
        %v2254 = vunpack.c.l.b16 %v2214
        %v2255 = vpack.c.b16 %v2240, %v2239
        %v2256 = vpack.c.b16 %v2242, %v2241
        %v2257 = vpack.c.b16 %v2244, %v2243
        %v2258 = vpack.c.b16 %v2246, %v2245
        %v2259 = vpack.c.b16 %v2248, %v2247
        %v2260 = vpack.c.b16 %v2250, %v2249
        %v2261 = vpack.c.b16 %v2252, %v2251
        %v2262 = vpack.c.b16 %v2254, %v2253
        %2271 = vmatprep.subr.bf16.mxu0 0
        %2272 = vmatpush1.bf16.msra.mxu0 %v2255
        %2273 = vmatprep.subr.bf16.mxu0 0
        %2274 = vmatpush1.bf16.msra.mxu0 %v2256
        %2275 = vmatprep.subr.bf16.mxu0 0
        %2276 = vmatpush1.bf16.msra.mxu0 %v2257
        %2277 = vmatprep.subr.bf16.mxu0 0
        %2278 = vmatpush1.bf16.msra.mxu0 %v2258
        %2279 = vmatprep.subr.bf16.mxu0 0
        %2280 = vmatpush1.bf16.msra.mxu0 %v2259
        %2281 = vmatprep.subr.bf16.mxu0 0
        %2282 = vmatpush1.bf16.msra.mxu0 %v2260
        %2283 = vmatprep.subr.bf16.mxu0 0
        %2284 = vmatpush1.bf16.msra.mxu0 %v2261
        %2285 = vmatprep.subr.bf16.mxu0 0
        %2286 = vmatpush1.bf16.msra.mxu0 %v2262
        %2287 = vmatprep.subr.bf16.mxu0 0
        %2288 = vmatpush1.bf16.msra.mxu0 0
        %2289 = vmatprep.subr.bf16.mxu0 0
        %2290 = vmatpush1.bf16.msra.mxu0 0
        %2291 = vmatprep.subr.bf16.mxu0 0
        %2292 = vmatpush1.bf16.msra.mxu0 0
        %2293 = vmatprep.subr.bf16.mxu0 0
        %2294 = vmatpush1.bf16.msra.mxu0 0
        %2295 = vmatprep.subr.bf16.mxu0 0
        %2296 = vmatpush1.bf16.msra.mxu0 0
        %2297 = vmatprep.subr.bf16.mxu0 0
        %2298 = vmatpush1.bf16.msra.mxu0 0
        %2299 = vmatprep.subr.bf16.mxu0 0
        %2300 = vmatpush1.bf16.msra.mxu0 0
        %2301 = vmatprep.subr.bf16.mxu0 0
        %2302 = vmatpush1.bf16.msra.mxu0 0
        %2303 = vmatprep.mubr.bf16.mxu0 0
        %2304 = vmatmul.mubr.bf16.gmra.mrb[0].mxu0 %v2197
        %v2305 = vpop.f32.mrb[0].mxu0
        %v2306 = vadd.f32 %v2221, %v2305
        %v2307 = vpop.f32.mrb[0].mxu0
        %v2308 = vpop.f32.mrb[0].mxu0
        %v2309 = vpop.f32.mrb[0].mxu0
        %2310 = vdwg.mxu0
        %s2311 = scalar_lea.vmem [#allocation11], 64
        %v2312 = vld [vmem:[%s2311] sm:$0xf]
        %v2313 = vld [vmem:[%s2311 + $0x4] sm:$0xf]
        %v2314 = vld [vmem:[%s2311 + $0x8] sm:$0xf]
        %v2315 = vld [vmem:[%s2311 + $0xc] sm:$0xf]
        %v2316 = vld [vmem:[%s2311 + $0x10] sm:$0xf]
        %v2317 = vld [vmem:[%s2311 + $0x14] sm:$0xf]
        %v2318 = vld [vmem:[%s2311 + $0x18] sm:$0xf]
        %v2319 = vld [vmem:[%s2311 + $0x1c] sm:$0xf]
        %v2320 = vld [vmem:[%s2311 + $0x20] sm:$0xf]
        %v2321 = vld [vmem:[%s2311 + $0x24] sm:$0xf]
        %v2322 = vld [vmem:[%s2311 + $0x28] sm:$0xf]
        %v2323 = vld [vmem:[%s2311 + $0x2c] sm:$0xf]
        %v2324 = vld [vmem:[%s2311 + $0x30] sm:$0xf]
        %v2325 = vld [vmem:[%s2311 + $0x34] sm:$0xf]
        %v2326 = vld [vmem:[%s2311 + $0x38] sm:$0xf]
        %v2327 = vld [vmem:[%s2311 + $0x3c] sm:$0xf]
        %s2328 = scalar_lea.vmem %s7, 1
        %v2329 = vld [vmem:[%s2328] sm:$0x1]
        %v2331 = vlaneseq
        %v2332 = vshrl.u32 %v2331, 7
        %v2333 = vsub.s32 0, %v2332
        %v2334 = vrot.slane %v2329, %v2333
        %v2352 = vunpack.c.l.b16 %v2312
        %v2353 = vunpack.c.l.b16 %v2313
        %v2354 = vunpack.c.l.b16 %v2314
        %v2355 = vunpack.c.l.b16 %v2315
        %v2356 = vunpack.c.l.b16 %v2316
        %v2357 = vunpack.c.l.b16 %v2317
        %v2358 = vunpack.c.l.b16 %v2318
        %v2359 = vunpack.c.l.b16 %v2319
        %v2360 = vunpack.c.l.b16 %v2320
        %v2361 = vunpack.c.l.b16 %v2321
        %v2362 = vunpack.c.l.b16 %v2322
        %v2363 = vunpack.c.l.b16 %v2323
        %v2364 = vunpack.c.l.b16 %v2324
        %v2365 = vunpack.c.l.b16 %v2325
        %v2366 = vunpack.c.l.b16 %v2326
        %v2367 = vunpack.c.l.b16 %v2327
        %v2368 = vpack.c.b16 %v2353, %v2352
        %v2369 = vpack.c.b16 %v2355, %v2354
        %v2370 = vpack.c.b16 %v2357, %v2356
        %v2371 = vpack.c.b16 %v2359, %v2358
        %v2372 = vpack.c.b16 %v2361, %v2360
        %v2373 = vpack.c.b16 %v2363, %v2362
        %v2374 = vpack.c.b16 %v2365, %v2364
        %v2375 = vpack.c.b16 %v2367, %v2366
        %2384 = vmatprep.subr.bf16.mxu0 0
        %2385 = vmatpush1.bf16.msra.mxu0 %v2368
        %2386 = vmatprep.subr.bf16.mxu0 0
        %2387 = vmatpush1.bf16.msra.mxu0 %v2369
        %2388 = vmatprep.subr.bf16.mxu0 0
        %2389 = vmatpush1.bf16.msra.mxu0 %v2370
        %2390 = vmatprep.subr.bf16.mxu0 0
        %2391 = vmatpush1.bf16.msra.mxu0 %v2371
        %2392 = vmatprep.subr.bf16.mxu0 0
        %2393 = vmatpush1.bf16.msra.mxu0 %v2372
        %2394 = vmatprep.subr.bf16.mxu0 0
        %2395 = vmatpush1.bf16.msra.mxu0 %v2373
        %2396 = vmatprep.subr.bf16.mxu0 0
        %2397 = vmatpush1.bf16.msra.mxu0 %v2374
        %2398 = vmatprep.subr.bf16.mxu0 0
        %2399 = vmatpush1.bf16.msra.mxu0 %v2375
        %2400 = vmatprep.subr.bf16.mxu0 0
        %2401 = vmatpush1.bf16.msra.mxu0 0
        %2402 = vmatprep.subr.bf16.mxu0 0
        %2403 = vmatpush1.bf16.msra.mxu0 0
        %2404 = vmatprep.subr.bf16.mxu0 0
        %2405 = vmatpush1.bf16.msra.mxu0 0
        %2406 = vmatprep.subr.bf16.mxu0 0
        %2407 = vmatpush1.bf16.msra.mxu0 0
        %2408 = vmatprep.subr.bf16.mxu0 0
        %2409 = vmatpush1.bf16.msra.mxu0 0
        %2410 = vmatprep.subr.bf16.mxu0 0
        %2411 = vmatpush1.bf16.msra.mxu0 0
        %2412 = vmatprep.subr.bf16.mxu0 0
        %2413 = vmatpush1.bf16.msra.mxu0 0
        %2414 = vmatprep.subr.bf16.mxu0 0
        %2415 = vmatpush1.bf16.msra.mxu0 0
        %2416 = vmatprep.mubr.bf16.mxu0 0
        %2417 = vmatmul.mubr.bf16.gmra.mrb[0].mxu0 %v907
        %v2418 = vpop.f32.mrb[0].mxu0
        %v2419 = vadd.f32 %v2334, %v2418
        %v2420 = vpop.f32.mrb[0].mxu0
        %v2421 = vpop.f32.mrb[0].mxu0
        %v2422 = vadd.f32 %v2334, %v2421
        %v2423 = vpop.f32.mrb[0].mxu0
        %2424 = vdwg.mxu0
        %s2425 = scalar_lea.vmem [#allocation13], 64
        %v2426 = vld [vmem:[%s2425] sm:$0xf]
        %v2427 = vld [vmem:[%s2425 + $0x4] sm:$0xf]
        %v2428 = vld [vmem:[%s2425 + $0x8] sm:$0xf]
        %v2429 = vld [vmem:[%s2425 + $0xc] sm:$0xf]
        %v2430 = vld [vmem:[%s2425 + $0x10] sm:$0xf]
        %v2431 = vld [vmem:[%s2425 + $0x14] sm:$0xf]
        %v2432 = vld [vmem:[%s2425 + $0x18] sm:$0xf]
        %v2433 = vld [vmem:[%s2425 + $0x1c] sm:$0xf]
        %v2434 = vld [vmem:[%s2425 + $0x20] sm:$0xf]
        %v2435 = vld [vmem:[%s2425 + $0x24] sm:$0xf]
        %v2436 = vld [vmem:[%s2425 + $0x28] sm:$0xf]
        %v2437 = vld [vmem:[%s2425 + $0x2c] sm:$0xf]
        %v2438 = vld [vmem:[%s2425 + $0x30] sm:$0xf]
        %v2439 = vld [vmem:[%s2425 + $0x34] sm:$0xf]
        %v2440 = vld [vmem:[%s2425 + $0x38] sm:$0xf]
        %v2441 = vld [vmem:[%s2425 + $0x3c] sm:$0xf]
        %s2442 = scalar_lea.vmem %s9, 1
        %v2443 = vld [vmem:[%s2442] sm:$0x1]
        %v2445 = vlaneseq
        %v2446 = vshrl.u32 %v2445, 7
        %v2447 = vsub.s32 0, %v2446
        %v2448 = vrot.slane %v2443, %v2447
        %v2466 = vunpack.c.l.b16 %v2426
        %v2467 = vunpack.c.l.b16 %v2427
        %v2468 = vunpack.c.l.b16 %v2428
        %v2469 = vunpack.c.l.b16 %v2429
        %v2470 = vunpack.c.l.b16 %v2430
        %v2471 = vunpack.c.l.b16 %v2431
        %v2472 = vunpack.c.l.b16 %v2432
        %v2473 = vunpack.c.l.b16 %v2433
        %v2474 = vunpack.c.l.b16 %v2434
        %v2475 = vunpack.c.l.b16 %v2435
        %v2476 = vunpack.c.l.b16 %v2436
        %v2477 = vunpack.c.l.b16 %v2437
        %v2478 = vunpack.c.l.b16 %v2438
        %v2479 = vunpack.c.l.b16 %v2439
        %v2480 = vunpack.c.l.b16 %v2440
        %v2481 = vunpack.c.l.b16 %v2441
        %v2482 = vpack.c.b16 %v2467, %v2466
        %v2483 = vpack.c.b16 %v2469, %v2468
        %v2484 = vpack.c.b16 %v2471, %v2470
        %v2485 = vpack.c.b16 %v2473, %v2472
        %v2486 = vpack.c.b16 %v2475, %v2474
        %v2487 = vpack.c.b16 %v2477, %v2476
        %v2488 = vpack.c.b16 %v2479, %v2478
        %v2489 = vpack.c.b16 %v2481, %v2480
        %2498 = vmatprep.subr.bf16.mxu0 0
        %2499 = vmatpush1.bf16.msra.mxu0 %v2482
        %2500 = vmatprep.subr.bf16.mxu0 0
        %2501 = vmatpush1.bf16.msra.mxu0 %v2483
        %2502 = vmatprep.subr.bf16.mxu0 0
        %2503 = vmatpush1.bf16.msra.mxu0 %v2484
        %2504 = vmatprep.subr.bf16.mxu0 0
        %2505 = vmatpush1.bf16.msra.mxu0 %v2485
        %2506 = vmatprep.subr.bf16.mxu0 0
        %2507 = vmatpush1.bf16.msra.mxu0 %v2486
        %2508 = vmatprep.subr.bf16.mxu0 0
        %2509 = vmatpush1.bf16.msra.mxu0 %v2487
        %2510 = vmatprep.subr.bf16.mxu0 0
        %2511 = vmatpush1.bf16.msra.mxu0 %v2488
        %2512 = vmatprep.subr.bf16.mxu0 0
        %2513 = vmatpush1.bf16.msra.mxu0 %v2489
        %2514 = vmatprep.subr.bf16.mxu0 0
        %2515 = vmatpush1.bf16.msra.mxu0 0
        %2516 = vmatprep.subr.bf16.mxu0 0
        %2517 = vmatpush1.bf16.msra.mxu0 0
        %2518 = vmatprep.subr.bf16.mxu0 0
        %2519 = vmatpush1.bf16.msra.mxu0 0
        %2520 = vmatprep.subr.bf16.mxu0 0
        %2521 = vmatpush1.bf16.msra.mxu0 0
        %2522 = vmatprep.subr.bf16.mxu0 0
        %2523 = vmatpush1.bf16.msra.mxu0 0
        %2524 = vmatprep.subr.bf16.mxu0 0
        %2525 = vmatpush1.bf16.msra.mxu0 0
        %2526 = vmatprep.subr.bf16.mxu0 0
        %2527 = vmatpush1.bf16.msra.mxu0 0
        %2528 = vmatprep.subr.bf16.mxu0 0
        %2529 = vmatpush1.bf16.msra.mxu0 0
        %2530 = vmatprep.mubr.bf16.mxu0 0
        %2531 = vmatmul.mubr.bf16.gmra.mrb[0].mxu0 %v908
        %v2532 = vpop.f32.mrb[0].mxu0
        %v2533 = vadd.f32 %v2448, %v2532
        %v2534 = vpop.f32.mrb[0].mxu0
        %v2535 = vpop.f32.mrb[0].mxu0
        %v2536 = vadd.f32 %v2448, %v2535
        %v2537 = vpop.f32.mrb[0].mxu0
        %2538 = vdwg.mxu0
        %v2539 = vpack.c.bf16 %v2306, %v2306
        %v2540 = vpack.c.bf16 %v2422, %v2419
        %v2541 = vpack.c.bf16 %v2536, %v2533
        %v2543 = vsel %vm1251, %v2539, 0
        %v2546 = vsel %vm1251, %v2540, 0
        %2548 = vmatprep.subr.bf16.mxu0 0
        %2549 = vmatpush1.bf16.xpose.msra.mxu0 %v2546
        %2550 = vmatprep.subr.bf16.mxu0 0
        %2551 = vmatpush1.bf16.xpose.msra.mxu0 0
        %2552 = vmatprep.subr.bf16.mxu0 0
        %2553 = vmatpush1.bf16.xpose.msra.mxu0 0
        %2554 = vmatprep.subr.bf16.mxu0 0
        %2555 = vmatpush1.bf16.xpose.msra.mxu0 0
        %2556 = vmatprep.subr.bf16.mxu0 0
        %2557 = vmatpush1.bf16.xpose.msra.mxu0 0
        %2558 = vmatprep.subr.bf16.mxu0 0
        %2559 = vmatpush1.bf16.xpose.msra.mxu0 0
        %2560 = vmatprep.subr.bf16.mxu0 0
        %2561 = vmatpush1.bf16.xpose.msra.mxu0 0
        %2562 = vmatprep.subr.bf16.mxu0 0
        %2563 = vmatpush1.bf16.xpose.msra.mxu0 0
        %2564 = vmatprep.subr.bf16.mxu0 0
        %2565 = vmatpush1.bf16.xpose.msra.mxu0 0
        %2566 = vmatprep.subr.bf16.mxu0 0
        %2567 = vmatpush1.bf16.xpose.msra.mxu0 0
        %2568 = vmatprep.subr.bf16.mxu0 0
        %2569 = vmatpush1.bf16.xpose.msra.mxu0 0
        %2570 = vmatprep.subr.bf16.mxu0 0
        %2571 = vmatpush1.bf16.xpose.msra.mxu0 0
        %2572 = vmatprep.subr.bf16.mxu0 0
        %2573 = vmatpush1.bf16.xpose.msra.mxu0 0
        %2574 = vmatprep.subr.bf16.mxu0 0
        %2575 = vmatpush1.bf16.xpose.msra.mxu0 0
        %2576 = vmatprep.subr.bf16.mxu0 0
        %2577 = vmatpush1.bf16.xpose.msra.mxu0 0
        %2578 = vmatprep.subr.bf16.mxu0 0
        %2579 = vmatpush1.bf16.xpose.msra.mxu0 0
        %2580 = vmatprep.mubr.bf16.mxu0 0
        %2581 = vmatmul.mubr.bf16.gmra.mrb[0].mxu0 %v2543
        %v2582 = vpop.f32.mrb[0].mxu0
        %v2583 = vadd.f32 0.0, %v2582
        %v2584 = vpop.f32.mrb[0].mxu0
        %v2585 = vpop.f32.mrb[0].mxu0
        %v2586 = vpop.f32.mrb[0].mxu0
        %2587 = vdwg.mxu0
        %v2588 = vsel %vm1298, %v2583, -inf
        %2589 = vmax.xlane.f32.xlu0 %v2588
        %v2590 = vpop.xlane.xlu0 %2589
        %v2591 = vsub.f32 %v2583, %v2590
        %v2592 = vmul.f32 %v2591, 1.442695
        %v2593 = vpow.pop %v2592
        %v2594 = vsel %vm1298, %v2593, 0.0
        %2595 = vadd.xlane.f32.xlu0 %v2594
        %v2596 = vpop.xlane.xlu0 %2595
        %v2597 = vrcp.pop %v2596
        %v2598 = vmul.f32 %v2593, %v2597
        %v2599 = vpack.c.bf16 %v2598, %v2598
        %v2601 = vsel %vm1298, %v2599, 0
        %2603 = vmatprep.subr.bf16.mxu0 0
        %2604 = vmatpush1.bf16.msra.mxu0 %v2541
        %2605 = vmatprep.subr.bf16.mxu0 0
        %2606 = vmatpush1.bf16.msra.mxu0 0
        %2607 = vmatprep.subr.bf16.mxu0 0
        %2608 = vmatpush1.bf16.msra.mxu0 0
        %2609 = vmatprep.subr.bf16.mxu0 0
        %2610 = vmatpush1.bf16.msra.mxu0 0
        %2611 = vmatprep.subr.bf16.mxu0 0
        %2612 = vmatpush1.bf16.msra.mxu0 0
        %2613 = vmatprep.subr.bf16.mxu0 0
        %2614 = vmatpush1.bf16.msra.mxu0 0
        %2615 = vmatprep.subr.bf16.mxu0 0
        %2616 = vmatpush1.bf16.msra.mxu0 0
        %2617 = vmatprep.subr.bf16.mxu0 0
        %2618 = vmatpush1.bf16.msra.mxu0 0
        %2619 = vmatprep.subr.bf16.mxu0 0
        %2620 = vmatpush1.bf16.msra.mxu0 0
        %2621 = vmatprep.subr.bf16.mxu0 0
        %2622 = vmatpush1.bf16.msra.mxu0 0
        %2623 = vmatprep.subr.bf16.mxu0 0
        %2624 = vmatpush1.bf16.msra.mxu0 0
        %2625 = vmatprep.subr.bf16.mxu0 0
        %2626 = vmatpush1.bf16.msra.mxu0 0
        %2627 = vmatprep.subr.bf16.mxu0 0
        %2628 = vmatpush1.bf16.msra.mxu0 0
        %2629 = vmatprep.subr.bf16.mxu0 0
        %2630 = vmatpush1.bf16.msra.mxu0 0
        %2631 = vmatprep.subr.bf16.mxu0 0
        %2632 = vmatpush1.bf16.msra.mxu0 0
        %2633 = vmatprep.subr.bf16.mxu0 0
        %2634 = vmatpush1.bf16.msra.mxu0 0
        %2635 = vmatprep.mubr.bf16.mxu0 0
        %2636 = vmatmul.mubr.bf16.gmra.mrb[0].mxu0 %v2601
        %v2637 = vpop.f32.mrb[0].mxu0
        %v2638 = vadd.f32 0.0, %v2637
        %v2639 = vpop.f32.mrb[0].mxu0
        %v2640 = vpop.f32.mrb[0].mxu0
        %v2641 = vpop.f32.mrb[0].mxu0
        %2642 = vdwg.mxu0
        %2644 = vrot.lane.b32.xlu0 %v2539, 96
        %v2645 = vpop.permute.xlu0 %2644
        %2647 = vrot.lane.b32.xlu0 %v2540, 96
        %v2648 = vpop.permute.xlu0 %2647
        %v2650 = vsel %vm1251, %v2645, 0
        %v2653 = vsel %vm1251, %v2648, 0
        %2655 = vmatprep.subr.bf16.mxu0 0
        %2656 = vmatpush1.bf16.xpose.msra.mxu0 %v2653
        %2657 = vmatprep.subr.bf16.mxu0 0
        %2658 = vmatpush1.bf16.xpose.msra.mxu0 0
        %2659 = vmatprep.subr.bf16.mxu0 0
        %2660 = vmatpush1.bf16.xpose.msra.mxu0 0
        %2661 = vmatprep.subr.bf16.mxu0 0
        %2662 = vmatpush1.bf16.xpose.msra.mxu0 0
        %2663 = vmatprep.subr.bf16.mxu0 0
        %2664 = vmatpush1.bf16.xpose.msra.mxu0 0
        %2665 = vmatprep.subr.bf16.mxu0 0
        %2666 = vmatpush1.bf16.xpose.msra.mxu0 0
        %2667 = vmatprep.subr.bf16.mxu0 0
        %2668 = vmatpush1.bf16.xpose.msra.mxu0 0
        %2669 = vmatprep.subr.bf16.mxu0 0
        %2670 = vmatpush1.bf16.xpose.msra.mxu0 0
        %2671 = vmatprep.subr.bf16.mxu0 0
        %2672 = vmatpush1.bf16.xpose.msra.mxu0 0
        %2673 = vmatprep.subr.bf16.mxu0 0
        %2674 = vmatpush1.bf16.xpose.msra.mxu0 0
        %2675 = vmatprep.subr.bf16.mxu0 0
        %2676 = vmatpush1.bf16.xpose.msra.mxu0 0
        %2677 = vmatprep.subr.bf16.mxu0 0
        %2678 = vmatpush1.bf16.xpose.msra.mxu0 0
        %2679 = vmatprep.subr.bf16.mxu0 0
        %2680 = vmatpush1.bf16.xpose.msra.mxu0 0
        %2681 = vmatprep.subr.bf16.mxu0 0
        %2682 = vmatpush1.bf16.xpose.msra.mxu0 0
        %2683 = vmatprep.subr.bf16.mxu0 0
        %2684 = vmatpush1.bf16.xpose.msra.mxu0 0
        %2685 = vmatprep.subr.bf16.mxu0 0
        %2686 = vmatpush1.bf16.xpose.msra.mxu0 0
        %2687 = vmatprep.mubr.bf16.mxu0 0
        %2688 = vmatmul.mubr.bf16.gmra.mrb[0].mxu0 %v2650
        %v2689 = vpop.f32.mrb[0].mxu0
        %v2690 = vadd.f32 0.0, %v2689
        %v2691 = vpop.f32.mrb[0].mxu0
        %v2692 = vpop.f32.mrb[0].mxu0
        %v2693 = vpop.f32.mrb[0].mxu0
        %2694 = vdwg.mxu0
        %v2695 = vsel %vm1298, %v2690, -inf
        %2696 = vmax.xlane.f32.xlu0 %v2695
        %v2697 = vpop.xlane.xlu0 %2696
        %v2698 = vsub.f32 %v2690, %v2697
        %v2699 = vmul.f32 %v2698, 1.442695
        %v2700 = vpow.pop %v2699
        %v2701 = vsel %vm1298, %v2700, 0.0
        %2702 = vadd.xlane.f32.xlu0 %v2701
        %v2703 = vpop.xlane.xlu0 %2702
        %v2704 = vrcp.pop %v2703
        %v2705 = vmul.f32 %v2700, %v2704
        %v2706 = vpack.c.bf16 %v2705, %v2705
        %2708 = vrot.lane.b32.xlu0 %v2541, 96
        %v2709 = vpop.permute.xlu0 %2708
        %v2712 = vsel %vm1298, %v2706, 0
        %2714 = vmatprep.subr.bf16.mxu0 0
        %2715 = vmatpush1.bf16.msra.mxu0 %v2709
        %2716 = vmatprep.subr.bf16.mxu0 0
        %2717 = vmatpush1.bf16.msra.mxu0 0
        %2718 = vmatprep.subr.bf16.mxu0 0
        %2719 = vmatpush1.bf16.msra.mxu0 0
        %2720 = vmatprep.subr.bf16.mxu0 0
        %2721 = vmatpush1.bf16.msra.mxu0 0
        %2722 = vmatprep.subr.bf16.mxu0 0
        %2723 = vmatpush1.bf16.msra.mxu0 0
        %2724 = vmatprep.subr.bf16.mxu0 0
        %2725 = vmatpush1.bf16.msra.mxu0 0
        %2726 = vmatprep.subr.bf16.mxu0 0
        %2727 = vmatpush1.bf16.msra.mxu0 0
        %2728 = vmatprep.subr.bf16.mxu0 0
        %2729 = vmatpush1.bf16.msra.mxu0 0
        %2730 = vmatprep.subr.bf16.mxu0 0
        %2731 = vmatpush1.bf16.msra.mxu0 0
        %2732 = vmatprep.subr.bf16.mxu0 0
        %2733 = vmatpush1.bf16.msra.mxu0 0
        %2734 = vmatprep.subr.bf16.mxu0 0
        %2735 = vmatpush1.bf16.msra.mxu0 0
        %2736 = vmatprep.subr.bf16.mxu0 0
        %2737 = vmatpush1.bf16.msra.mxu0 0
        %2738 = vmatprep.subr.bf16.mxu0 0
        %2739 = vmatpush1.bf16.msra.mxu0 0
        %2740 = vmatprep.subr.bf16.mxu0 0
        %2741 = vmatpush1.bf16.msra.mxu0 0
        %2742 = vmatprep.subr.bf16.mxu0 0
        %2743 = vmatpush1.bf16.msra.mxu0 0
        %2744 = vmatprep.subr.bf16.mxu0 0
        %2745 = vmatpush1.bf16.msra.mxu0 0
        %2746 = vmatprep.mubr.bf16.mxu0 0
        %2747 = vmatmul.mubr.bf16.gmra.mrb[0].mxu0 %v2712
        %v2748 = vpop.f32.mrb[0].mxu0
        %v2749 = vadd.f32 0.0, %v2748
        %v2750 = vpop.f32.mrb[0].mxu0
        %v2751 = vpop.f32.mrb[0].mxu0
        %v2752 = vpop.f32.mrb[0].mxu0
        %2753 = vdwg.mxu0
        %2754 = vrot.lane.b32.xlu0 %v2539, 64
        %v2755 = vpop.permute.xlu0 %2754
        %2756 = vrot.lane.b32.xlu0 %v2540, 64
        %v2757 = vpop.permute.xlu0 %2756
        %v2759 = vsel %vm1251, %v2755, 0
        %v2762 = vsel %vm1251, %v2757, 0
        %2764 = vmatprep.subr.bf16.mxu0 0
        %2765 = vmatpush1.bf16.xpose.msra.mxu0 %v2762
        %2766 = vmatprep.subr.bf16.mxu0 0
        %2767 = vmatpush1.bf16.xpose.msra.mxu0 0
        %2768 = vmatprep.subr.bf16.mxu0 0
        %2769 = vmatpush1.bf16.xpose.msra.mxu0 0
        %2770 = vmatprep.subr.bf16.mxu0 0
        %2771 = vmatpush1.bf16.xpose.msra.mxu0 0
        %2772 = vmatprep.subr.bf16.mxu0 0
        %2773 = vmatpush1.bf16.xpose.msra.mxu0 0
        %2774 = vmatprep.subr.bf16.mxu0 0
        %2775 = vmatpush1.bf16.xpose.msra.mxu0 0
        %2776 = vmatprep.subr.bf16.mxu0 0
        %2777 = vmatpush1.bf16.xpose.msra.mxu0 0
        %2778 = vmatprep.subr.bf16.mxu0 0
        %2779 = vmatpush1.bf16.xpose.msra.mxu0 0
        %2780 = vmatprep.subr.bf16.mxu0 0
        %2781 = vmatpush1.bf16.xpose.msra.mxu0 0
        %2782 = vmatprep.subr.bf16.mxu0 0
        %2783 = vmatpush1.bf16.xpose.msra.mxu0 0
        %2784 = vmatprep.subr.bf16.mxu0 0
        %2785 = vmatpush1.bf16.xpose.msra.mxu0 0
        %2786 = vmatprep.subr.bf16.mxu0 0
        %2787 = vmatpush1.bf16.xpose.msra.mxu0 0
        %2788 = vmatprep.subr.bf16.mxu0 0
        %2789 = vmatpush1.bf16.xpose.msra.mxu0 0
        %2790 = vmatprep.subr.bf16.mxu0 0
        %2791 = vmatpush1.bf16.xpose.msra.mxu0 0
        %2792 = vmatprep.subr.bf16.mxu0 0
        %2793 = vmatpush1.bf16.xpose.msra.mxu0 0
        %2794 = vmatprep.subr.bf16.mxu0 0
        %2795 = vmatpush1.bf16.xpose.msra.mxu0 0
        %2796 = vmatprep.mubr.bf16.mxu0 0
        %2797 = vmatmul.mubr.bf16.gmra.mrb[0].mxu0 %v2759
        %v2798 = vpop.f32.mrb[0].mxu0
        %v2799 = vadd.f32 0.0, %v2798
        %v2800 = vpop.f32.mrb[0].mxu0
        %v2801 = vpop.f32.mrb[0].mxu0
        %v2802 = vpop.f32.mrb[0].mxu0
        %2803 = vdwg.mxu0
        %v2804 = vsel %vm1298, %v2799, -inf
        %2805 = vmax.xlane.f32.xlu0 %v2804
        %v2806 = vpop.xlane.xlu0 %2805
        %v2807 = vsub.f32 %v2799, %v2806
        %v2808 = vmul.f32 %v2807, 1.442695
        %v2809 = vpow.pop %v2808
        %v2810 = vsel %vm1298, %v2809, 0.0
        %2811 = vadd.xlane.f32.xlu0 %v2810
        %v2812 = vpop.xlane.xlu0 %2811
        %v2813 = vrcp.pop %v2812
        %v2814 = vmul.f32 %v2809, %v2813
        %v2815 = vpack.c.bf16 %v2814, %v2814
        %2816 = vrot.lane.b32.xlu0 %v2541, 64
        %v2817 = vpop.permute.xlu0 %2816
        %v2820 = vsel %vm1298, %v2815, 0
        %2822 = vmatprep.subr.bf16.mxu0 0
        %2823 = vmatpush1.bf16.msra.mxu0 %v2817
        %2824 = vmatprep.subr.bf16.mxu0 0
        %2825 = vmatpush1.bf16.msra.mxu0 0
        %2826 = vmatprep.subr.bf16.mxu0 0
        %2827 = vmatpush1.bf16.msra.mxu0 0
        %2828 = vmatprep.subr.bf16.mxu0 0
        %2829 = vmatpush1.bf16.msra.mxu0 0
        %2830 = vmatprep.subr.bf16.mxu0 0
        %2831 = vmatpush1.bf16.msra.mxu0 0
        %2832 = vmatprep.subr.bf16.mxu0 0
        %2833 = vmatpush1.bf16.msra.mxu0 0
        %2834 = vmatprep.subr.bf16.mxu0 0
        %2835 = vmatpush1.bf16.msra.mxu0 0
        %2836 = vmatprep.subr.bf16.mxu0 0
        %2837 = vmatpush1.bf16.msra.mxu0 0
        %2838 = vmatprep.subr.bf16.mxu0 0
        %2839 = vmatpush1.bf16.msra.mxu0 0
        %2840 = vmatprep.subr.bf16.mxu0 0
        %2841 = vmatpush1.bf16.msra.mxu0 0
        %2842 = vmatprep.subr.bf16.mxu0 0
        %2843 = vmatpush1.bf16.msra.mxu0 0
        %2844 = vmatprep.subr.bf16.mxu0 0
        %2845 = vmatpush1.bf16.msra.mxu0 0
        %2846 = vmatprep.subr.bf16.mxu0 0
        %2847 = vmatpush1.bf16.msra.mxu0 0
        %2848 = vmatprep.subr.bf16.mxu0 0
        %2849 = vmatpush1.bf16.msra.mxu0 0
        %2850 = vmatprep.subr.bf16.mxu0 0
        %2851 = vmatpush1.bf16.msra.mxu0 0
        %2852 = vmatprep.subr.bf16.mxu0 0
        %2853 = vmatpush1.bf16.msra.mxu0 0
        %2854 = vmatprep.mubr.bf16.mxu0 0
        %2855 = vmatmul.mubr.bf16.gmra.mrb[0].mxu0 %v2820
        %v2856 = vpop.f32.mrb[0].mxu0
        %v2857 = vadd.f32 0.0, %v2856
        %v2858 = vpop.f32.mrb[0].mxu0
        %v2859 = vpop.f32.mrb[0].mxu0
        %v2860 = vpop.f32.mrb[0].mxu0
        %2861 = vdwg.mxu0
        %2862 = vrot.lane.b32.xlu0 %v2539, 32
        %v2863 = vpop.permute.xlu0 %2862
        %2864 = vrot.lane.b32.xlu0 %v2540, 32
        %v2865 = vpop.permute.xlu0 %2864
        %v2867 = vsel %vm1251, %v2863, 0
        %v2870 = vsel %vm1251, %v2865, 0
        %2872 = vmatprep.subr.bf16.mxu0 0
        %2873 = vmatpush1.bf16.xpose.msra.mxu0 %v2870
        %2874 = vmatprep.subr.bf16.mxu0 0
        %2875 = vmatpush1.bf16.xpose.msra.mxu0 0
        %2876 = vmatprep.subr.bf16.mxu0 0
        %2877 = vmatpush1.bf16.xpose.msra.mxu0 0
        %2878 = vmatprep.subr.bf16.mxu0 0
        %2879 = vmatpush1.bf16.xpose.msra.mxu0 0
        %2880 = vmatprep.subr.bf16.mxu0 0
        %2881 = vmatpush1.bf16.xpose.msra.mxu0 0
        %2882 = vmatprep.subr.bf16.mxu0 0
        %2883 = vmatpush1.bf16.xpose.msra.mxu0 0
        %2884 = vmatprep.subr.bf16.mxu0 0
        %2885 = vmatpush1.bf16.xpose.msra.mxu0 0
        %2886 = vmatprep.subr.bf16.mxu0 0
        %2887 = vmatpush1.bf16.xpose.msra.mxu0 0
        %2888 = vmatprep.subr.bf16.mxu0 0
        %2889 = vmatpush1.bf16.xpose.msra.mxu0 0
        %2890 = vmatprep.subr.bf16.mxu0 0
        %2891 = vmatpush1.bf16.xpose.msra.mxu0 0
        %2892 = vmatprep.subr.bf16.mxu0 0
        %2893 = vmatpush1.bf16.xpose.msra.mxu0 0
        %2894 = vmatprep.subr.bf16.mxu0 0
        %2895 = vmatpush1.bf16.xpose.msra.mxu0 0
        %2896 = vmatprep.subr.bf16.mxu0 0
        %2897 = vmatpush1.bf16.xpose.msra.mxu0 0
        %2898 = vmatprep.subr.bf16.mxu0 0
        %2899 = vmatpush1.bf16.xpose.msra.mxu0 0
        %2900 = vmatprep.subr.bf16.mxu0 0
        %2901 = vmatpush1.bf16.xpose.msra.mxu0 0
        %2902 = vmatprep.subr.bf16.mxu0 0
        %2903 = vmatpush1.bf16.xpose.msra.mxu0 0
        %2904 = vmatprep.mubr.bf16.mxu0 0
        %2905 = vmatmul.mubr.bf16.gmra.mrb[0].mxu0 %v2867
        %v2906 = vpop.f32.mrb[0].mxu0
        %v2907 = vadd.f32 0.0, %v2906
        %v2908 = vpop.f32.mrb[0].mxu0
        %v2909 = vpop.f32.mrb[0].mxu0
        %v2910 = vpop.f32.mrb[0].mxu0
        %2911 = vdwg.mxu0
        %v2912 = vsel %vm1298, %v2907, -inf
        %2913 = vmax.xlane.f32.xlu0 %v2912
        %v2914 = vpop.xlane.xlu0 %2913
        %v2915 = vsub.f32 %v2907, %v2914
        %v2916 = vmul.f32 %v2915, 1.442695
        %v2917 = vpow.pop %v2916
        %v2918 = vsel %vm1298, %v2917, 0.0
        %2919 = vadd.xlane.f32.xlu0 %v2918
        %v2920 = vpop.xlane.xlu0 %2919
        %v2921 = vrcp.pop %v2920
        %v2922 = vmul.f32 %v2917, %v2921
        %v2923 = vpack.c.bf16 %v2922, %v2922
        %2924 = vrot.lane.b32.xlu0 %v2541, 32
        %v2925 = vpop.permute.xlu0 %2924
        %v2928 = vsel %vm1298, %v2923, 0
        %2930 = vmatprep.subr.bf16.mxu0 0
        %2931 = vmatpush1.bf16.msra.mxu0 %v2925
        %2932 = vmatprep.subr.bf16.mxu0 0
        %2933 = vmatpush1.bf16.msra.mxu0 0
        %2934 = vmatprep.subr.bf16.mxu0 0
        %2935 = vmatpush1.bf16.msra.mxu0 0
        %2936 = vmatprep.subr.bf16.mxu0 0
        %2937 = vmatpush1.bf16.msra.mxu0 0
        %2938 = vmatprep.subr.bf16.mxu0 0
        %2939 = vmatpush1.bf16.msra.mxu0 0
        %2940 = vmatprep.subr.bf16.mxu0 0
        %2941 = vmatpush1.bf16.msra.mxu0 0
        %2942 = vmatprep.subr.bf16.mxu0 0
        %2943 = vmatpush1.bf16.msra.mxu0 0
        %2944 = vmatprep.subr.bf16.mxu0 0
        %2945 = vmatpush1.bf16.msra.mxu0 0
        %2946 = vmatprep.subr.bf16.mxu0 0
        %2947 = vmatpush1.bf16.msra.mxu0 0
        %2948 = vmatprep.subr.bf16.mxu0 0
        %2949 = vmatpush1.bf16.msra.mxu0 0
        %2950 = vmatprep.subr.bf16.mxu0 0
        %2951 = vmatpush1.bf16.msra.mxu0 0
        %2952 = vmatprep.subr.bf16.mxu0 0
        %2953 = vmatpush1.bf16.msra.mxu0 0
        %2954 = vmatprep.subr.bf16.mxu0 0
        %2955 = vmatpush1.bf16.msra.mxu0 0
        %2956 = vmatprep.subr.bf16.mxu0 0
        %2957 = vmatpush1.bf16.msra.mxu0 0
        %2958 = vmatprep.subr.bf16.mxu0 0
        %2959 = vmatpush1.bf16.msra.mxu0 0
        %2960 = vmatprep.subr.bf16.mxu0 0
        %2961 = vmatpush1.bf16.msra.mxu0 0
        %2962 = vmatprep.mubr.bf16.mxu0 0
        %2963 = vmatmul.mubr.bf16.gmra.mrb[0].mxu0 %v2928
        %v2964 = vpop.f32.mrb[0].mxu0
        %v2965 = vadd.f32 0.0, %v2964
        %v2966 = vpop.f32.mrb[0].mxu0
        %v2967 = vpop.f32.mrb[0].mxu0
        %v2968 = vpop.f32.mrb[0].mxu0
        %2969 = vdwg.mxu0
        %2971 = vrot.lane.b32.xlu0 %v2749, 32
        %v2972 = vpop.permute.xlu0 %2971
        %2975 = vrot.lane.b32.xlu0 %v2857, 64
        %v2976 = vpop.permute.xlu0 %2975
        %2979 = vrot.lane.b32.xlu0 %v2965, 96
        %v2980 = vpop.permute.xlu0 %2979
        %v2982 = vsel %vm1251, %v2638, %v2972
        %v2983 = vsel %vm1694, %v2982, %v2976
        %v2984 = vsel %vm1696, %v2983, %v2980
        %v2985 = vpack.c.bf16 %v2984, %v2984
        %s2986 = scalar_lea.vmem [#allocation14], 64
        %v2987 = vld [vmem:[%s2986] sm:$0xf]
        %v2988 = vld [vmem:[%s2986 + $0x4] sm:$0xf]
        %v2989 = vld [vmem:[%s2986 + $0x8] sm:$0xf]
        %v2990 = vld [vmem:[%s2986 + $0xc] sm:$0xf]
        %v2991 = vld [vmem:[%s2986 + $0x10] sm:$0xf]
        %v2992 = vld [vmem:[%s2986 + $0x14] sm:$0xf]
        %v2993 = vld [vmem:[%s2986 + $0x18] sm:$0xf]
        %v2994 = vld [vmem:[%s2986 + $0x1c] sm:$0xf]
        %v2995 = vld [vmem:[%s2986 + $0x20] sm:$0xf]
        %v2996 = vld [vmem:[%s2986 + $0x24] sm:$0xf]
        %v2997 = vld [vmem:[%s2986 + $0x28] sm:$0xf]
        %v2998 = vld [vmem:[%s2986 + $0x2c] sm:$0xf]
        %v2999 = vld [vmem:[%s2986 + $0x30] sm:$0xf]
        %v3000 = vld [vmem:[%s2986 + $0x34] sm:$0xf]
        %v3001 = vld [vmem:[%s2986 + $0x38] sm:$0xf]
        %v3002 = vld [vmem:[%s2986 + $0x3c] sm:$0xf]
        %s3003 = scalar_lea.vmem %s11, 1
        %v3004 = vld [vmem:[%s3003] sm:$0x1]
        %v3006 = vlaneseq
        %v3007 = vshrl.u32 %v3006, 7
        %v3008 = vsub.s32 0, %v3007
        %v3009 = vrot.slane %v3004, %v3008
        %v3027 = vunpack.c.l.b16 %v2987
        %v3028 = vunpack.c.l.b16 %v2988
        %v3029 = vunpack.c.l.b16 %v2989
        %v3030 = vunpack.c.l.b16 %v2990
        %v3031 = vunpack.c.l.b16 %v2991
        %v3032 = vunpack.c.l.b16 %v2992
        %v3033 = vunpack.c.l.b16 %v2993
        %v3034 = vunpack.c.l.b16 %v2994
        %v3035 = vunpack.c.l.b16 %v2995
        %v3036 = vunpack.c.l.b16 %v2996
        %v3037 = vunpack.c.l.b16 %v2997
        %v3038 = vunpack.c.l.b16 %v2998
        %v3039 = vunpack.c.l.b16 %v2999
        %v3040 = vunpack.c.l.b16 %v3000
        %v3041 = vunpack.c.l.b16 %v3001
        %v3042 = vunpack.c.l.b16 %v3002
        %v3043 = vpack.c.b16 %v3028, %v3027
        %v3044 = vpack.c.b16 %v3030, %v3029
        %v3045 = vpack.c.b16 %v3032, %v3031
        %v3046 = vpack.c.b16 %v3034, %v3033
        %v3047 = vpack.c.b16 %v3036, %v3035
        %v3048 = vpack.c.b16 %v3038, %v3037
        %v3049 = vpack.c.b16 %v3040, %v3039
        %v3050 = vpack.c.b16 %v3042, %v3041
        %3059 = vmatprep.subr.bf16.mxu0 0
        %3060 = vmatpush1.bf16.msra.mxu0 %v3043
        %3061 = vmatprep.subr.bf16.mxu0 0
        %3062 = vmatpush1.bf16.msra.mxu0 %v3044
        %3063 = vmatprep.subr.bf16.mxu0 0
        %3064 = vmatpush1.bf16.msra.mxu0 %v3045
        %3065 = vmatprep.subr.bf16.mxu0 0
        %3066 = vmatpush1.bf16.msra.mxu0 %v3046
        %3067 = vmatprep.subr.bf16.mxu0 0
        %3068 = vmatpush1.bf16.msra.mxu0 %v3047
        %3069 = vmatprep.subr.bf16.mxu0 0
        %3070 = vmatpush1.bf16.msra.mxu0 %v3048
        %3071 = vmatprep.subr.bf16.mxu0 0
        %3072 = vmatpush1.bf16.msra.mxu0 %v3049
        %3073 = vmatprep.subr.bf16.mxu0 0
        %3074 = vmatpush1.bf16.msra.mxu0 %v3050
        %3075 = vmatprep.subr.bf16.mxu0 0
        %3076 = vmatpush1.bf16.msra.mxu0 0
        %3077 = vmatprep.subr.bf16.mxu0 0
        %3078 = vmatpush1.bf16.msra.mxu0 0
        %3079 = vmatprep.subr.bf16.mxu0 0
        %3080 = vmatpush1.bf16.msra.mxu0 0
        %3081 = vmatprep.subr.bf16.mxu0 0
        %3082 = vmatpush1.bf16.msra.mxu0 0
        %3083 = vmatprep.subr.bf16.mxu0 0
        %3084 = vmatpush1.bf16.msra.mxu0 0
        %3085 = vmatprep.subr.bf16.mxu0 0
        %3086 = vmatpush1.bf16.msra.mxu0 0
        %3087 = vmatprep.subr.bf16.mxu0 0
        %3088 = vmatpush1.bf16.msra.mxu0 0
        %3089 = vmatprep.subr.bf16.mxu0 0
        %3090 = vmatpush1.bf16.msra.mxu0 0
        %3091 = vmatprep.mubr.bf16.mxu0 0
        %3092 = vmatmul.mubr.bf16.gmra.mrb[0].mxu0 %v2985
        %v3093 = vpop.f32.mrb[0].mxu0
        %v3094 = vadd.f32 %v3009, %v3093
        %v3095 = vpop.f32.mrb[0].mxu0
        %v3096 = vpop.f32.mrb[0].mxu0
        %v3097 = vpop.f32.mrb[0].mxu0
        %3098 = vdwg.mxu0
        %v3099 = vadd.f32 %v2195, %v3094
        %s3100 = scalar_lea.vmem %s12, 1
        %v3101 = vld [vmem:[%s3100] sm:$0x1]
        %s3102 = scalar_lea.vmem %s13, 1
        %v3103 = vld [vmem:[%s3102] sm:$0x1]
        %3104 = vadd.xlane.f32.xlu0 %v3099
        %v3105 = vpop.xlane.xlu0 %3104
        %v3106 = vmul.f32 %v3105, %v1815
        %v3107 = vsub.f32 %v3099, %v3106
        %v3108 = vmul.f32 %v3107, %v3107
        %3109 = vadd.xlane.f32.xlu0 %v3108
        %v3110 = vpop.xlane.xlu0 %3109
        %v3111 = vmul.f32 %v3110, %v1815
        %v3112 = vadd.f32 %v3111, 1e-05
        %v3113 = vrsqrt.pop %v3112
        %v3114 = vmul.f32 %v3107, %v3113
        %v3116 = vlaneseq
        %v3117 = vshrl.u32 %v3116, 7
        %v3118 = vsub.s32 0, %v3117
        %v3119 = vrot.slane %v3101, %v3118
        %v3121 = vmul.f32 %v3114, %v3119
        %v3123 = vlaneseq
        %v3124 = vshrl.u32 %v3123, 7
        %v3125 = vsub.s32 0, %v3124
        %v3126 = vrot.slane %v3103, %v3125
        %v3128 = vadd.f32 %v3121, %v3126
        %v3129 = vpack.c.bf16 %v3128, %v3128
        %s3130 = scalar_lea.vmem [#allocation16], 128
        %v3131 = vld [vmem:[%s3130] sm:$0xff]
        %v3132 = vld [vmem:[%s3130 + $0x8] sm:$0xff]
        %v3133 = vld [vmem:[%s3130 + $0x10] sm:$0xff]
        %v3134 = vld [vmem:[%s3130 + $0x18] sm:$0xff]
        %v3135 = vld [vmem:[%s3130 + $0x20] sm:$0xff]
        %v3136 = vld [vmem:[%s3130 + $0x28] sm:$0xff]
        %v3137 = vld [vmem:[%s3130 + $0x30] sm:$0xff]
        %v3138 = vld [vmem:[%s3130 + $0x38] sm:$0xff]
        %v3139 = vld [vmem:[%s3130 + $0x40] sm:$0xff]
        %v3140 = vld [vmem:[%s3130 + $0x48] sm:$0xff]
        %v3141 = vld [vmem:[%s3130 + $0x50] sm:$0xff]
        %v3142 = vld [vmem:[%s3130 + $0x58] sm:$0xff]
        %v3143 = vld [vmem:[%s3130 + $0x60] sm:$0xff]
        %v3144 = vld [vmem:[%s3130 + $0x68] sm:$0xff]
        %v3145 = vld [vmem:[%s3130 + $0x70] sm:$0xff]
        %v3146 = vld [vmem:[%s3130 + $0x78] sm:$0xff]
        %s3147 = scalar_lea.vmem %s15, 2
        %v3148 = vld [vmem:[%s3147] sm:$0x3]
        %v3150 = vlaneseq
        %v3151 = vshrl.u32 %v3150, 7
        %v3152 = vsub.s32 0, %v3151
        %v3153 = vrot.slane %v3148, %v3152
        %v3154 = vlaneseq
        %v3155 = vshrl.u32 %v3154, 7
        %v3156 = vsub.s32 1, %v3155
        %v3157 = vrot.slane %v3148, %v3156
        %v3176 = vunpack.c.l.b16 %v3131
        %v3177 = vunpack.c.h.b16 %v3131
        %v3178 = vunpack.c.l.b16 %v3132
        %v3179 = vunpack.c.h.b16 %v3132
        %v3180 = vunpack.c.l.b16 %v3133
        %v3181 = vunpack.c.h.b16 %v3133
        %v3182 = vunpack.c.l.b16 %v3134
        %v3183 = vunpack.c.h.b16 %v3134
        %v3184 = vunpack.c.l.b16 %v3135
        %v3185 = vunpack.c.h.b16 %v3135
        %v3186 = vunpack.c.l.b16 %v3136
        %v3187 = vunpack.c.h.b16 %v3136
        %v3188 = vunpack.c.l.b16 %v3137
        %v3189 = vunpack.c.h.b16 %v3137
        %v3190 = vunpack.c.l.b16 %v3138
        %v3191 = vunpack.c.h.b16 %v3138
        %v3192 = vunpack.c.l.b16 %v3139
        %v3193 = vunpack.c.h.b16 %v3139
        %v3194 = vunpack.c.l.b16 %v3140
        %v3195 = vunpack.c.h.b16 %v3140
        %v3196 = vunpack.c.l.b16 %v3141
        %v3197 = vunpack.c.h.b16 %v3141
        %v3198 = vunpack.c.l.b16 %v3142
        %v3199 = vunpack.c.h.b16 %v3142
        %v3200 = vunpack.c.l.b16 %v3143
        %v3201 = vunpack.c.h.b16 %v3143
        %v3202 = vunpack.c.l.b16 %v3144
        %v3203 = vunpack.c.h.b16 %v3144
        %v3204 = vunpack.c.l.b16 %v3145
        %v3205 = vunpack.c.h.b16 %v3145
        %v3206 = vunpack.c.l.b16 %v3146
        %v3207 = vunpack.c.h.b16 %v3146
        %v3208 = vpack.c.b16 %v3178, %v3176
        %v3209 = vpack.c.b16 %v3179, %v3177
        %v3210 = vpack.c.b16 %v3182, %v3180
        %v3211 = vpack.c.b16 %v3183, %v3181
        %v3212 = vpack.c.b16 %v3186, %v3184
        %v3213 = vpack.c.b16 %v3187, %v3185
        %v3214 = vpack.c.b16 %v3190, %v3188
        %v3215 = vpack.c.b16 %v3191, %v3189
        %v3216 = vpack.c.b16 %v3194, %v3192
        %v3217 = vpack.c.b16 %v3195, %v3193
        %v3218 = vpack.c.b16 %v3198, %v3196
        %v3219 = vpack.c.b16 %v3199, %v3197
        %v3220 = vpack.c.b16 %v3202, %v3200
        %v3221 = vpack.c.b16 %v3203, %v3201
        %v3222 = vpack.c.b16 %v3206, %v3204
        %v3223 = vpack.c.b16 %v3207, %v3205
        %3240 = vmatprep.subr.bf16.mxu0 %v3209
        %3241 = vmatpush1.bf16.msra.mxu0 %v3208
        %3242 = vmatprep.subr.bf16.mxu0 %v3211
        %3243 = vmatpush1.bf16.msra.mxu0 %v3210
        %3244 = vmatprep.subr.bf16.mxu0 %v3213
        %3245 = vmatpush1.bf16.msra.mxu0 %v3212
        %3246 = vmatprep.subr.bf16.mxu0 %v3215
        %3247 = vmatpush1.bf16.msra.mxu0 %v3214
        %3248 = vmatprep.subr.bf16.mxu0 %v3217
        %3249 = vmatpush1.bf16.msra.mxu0 %v3216
        %3250 = vmatprep.subr.bf16.mxu0 %v3219
        %3251 = vmatpush1.bf16.msra.mxu0 %v3218
        %3252 = vmatprep.subr.bf16.mxu0 %v3221
        %3253 = vmatpush1.bf16.msra.mxu0 %v3220
        %3254 = vmatprep.subr.bf16.mxu0 %v3223
        %3255 = vmatpush1.bf16.msra.mxu0 %v3222
        %3256 = vmatprep.subr.bf16.mxu0 0
        %3257 = vmatpush1.bf16.msra.mxu0 0
        %3258 = vmatprep.subr.bf16.mxu0 0
        %3259 = vmatpush1.bf16.msra.mxu0 0
        %3260 = vmatprep.subr.bf16.mxu0 0
        %3261 = vmatpush1.bf16.msra.mxu0 0
        %3262 = vmatprep.subr.bf16.mxu0 0
        %3263 = vmatpush1.bf16.msra.mxu0 0
        %3264 = vmatprep.subr.bf16.mxu0 0
        %3265 = vmatpush1.bf16.msra.mxu0 0
        %3266 = vmatprep.subr.bf16.mxu0 0
        %3267 = vmatpush1.bf16.msra.mxu0 0
        %3268 = vmatprep.subr.bf16.mxu0 0
        %3269 = vmatpush1.bf16.msra.mxu0 0
        %3270 = vmatprep.subr.bf16.mxu0 0
        %3271 = vmatpush1.bf16.msra.mxu0 0
        %3272 = vmatprep.mubr.bf16.mxu0 0
        %3273 = vmatmul.mubr.bf16.gmra.mrb[0].mxu0 %v3129
        %v3274 = vpop.f32.mrb[0].mxu0
        %v3275 = vadd.f32 %v3153, %v3274
        %v3276 = vpop.f32.mrb[0].mxu0
        %v3277 = vadd.f32 %v3157, %v3276
        %v3278 = vpop.f32.mrb[0].mxu0
        %v3279 = vpop.f32.mrb[0].mxu0
        %3280 = vdwg.mxu0
        %v3281 = vmax.f32 %v3275, 0.0
        %v3282 = vmax.f32 %v3277, 0.0
        %v3283 = vpack.c.bf16 %v3281, %v3281
        %v3284 = vpack.c.bf16 %v3282, %v3282
        %s3285 = scalar_lea.vmem [#allocation17], 128
        %v3286 = vld [vmem:[%s3285] sm:$0xf]
        %v3287 = vld [vmem:[%s3285 + $0x4] sm:$0xf]
        %v3288 = vld [vmem:[%s3285 + $0x8] sm:$0xf]
        %v3289 = vld [vmem:[%s3285 + $0xc] sm:$0xf]
        %v3290 = vld [vmem:[%s3285 + $0x10] sm:$0xf]
        %v3291 = vld [vmem:[%s3285 + $0x14] sm:$0xf]
        %v3292 = vld [vmem:[%s3285 + $0x18] sm:$0xf]
        %v3293 = vld [vmem:[%s3285 + $0x1c] sm:$0xf]
        %v3294 = vld [vmem:[%s3285 + $0x20] sm:$0xf]
        %v3295 = vld [vmem:[%s3285 + $0x24] sm:$0xf]
        %v3296 = vld [vmem:[%s3285 + $0x28] sm:$0xf]
        %v3297 = vld [vmem:[%s3285 + $0x2c] sm:$0xf]
        %v3298 = vld [vmem:[%s3285 + $0x30] sm:$0xf]
        %v3299 = vld [vmem:[%s3285 + $0x34] sm:$0xf]
        %v3300 = vld [vmem:[%s3285 + $0x38] sm:$0xf]
        %v3301 = vld [vmem:[%s3285 + $0x3c] sm:$0xf]
        %v3302 = vld [vmem:[%s3285 + $0x40] sm:$0xf]
        %v3303 = vld [vmem:[%s3285 + $0x44] sm:$0xf]
        %v3304 = vld [vmem:[%s3285 + $0x48] sm:$0xf]
        %v3305 = vld [vmem:[%s3285 + $0x4c] sm:$0xf]
        %v3306 = vld [vmem:[%s3285 + $0x50] sm:$0xf]
        %v3307 = vld [vmem:[%s3285 + $0x54] sm:$0xf]
        %v3308 = vld [vmem:[%s3285 + $0x58] sm:$0xf]
        %v3309 = vld [vmem:[%s3285 + $0x5c] sm:$0xf]
        %v3310 = vld [vmem:[%s3285 + $0x60] sm:$0xf]
        %v3311 = vld [vmem:[%s3285 + $0x64] sm:$0xf]
        %v3312 = vld [vmem:[%s3285 + $0x68] sm:$0xf]
        %v3313 = vld [vmem:[%s3285 + $0x6c] sm:$0xf]
        %v3314 = vld [vmem:[%s3285 + $0x70] sm:$0xf]
        %v3315 = vld [vmem:[%s3285 + $0x74] sm:$0xf]
        %v3316 = vld [vmem:[%s3285 + $0x78] sm:$0xf]
        %v3317 = vld [vmem:[%s3285 + $0x7c] sm:$0xf]
        %s3318 = scalar_lea.vmem %s17, 1
        %v3319 = vld [vmem:[%s3318] sm:$0x1]
        %v3321 = vlaneseq
        %v3322 = vshrl.u32 %v3321, 7
        %v3323 = vsub.s32 0, %v3322
        %v3324 = vrot.slane %v3319, %v3323
        %v3358 = vunpack.c.l.b16 %v3286
        %v3359 = vunpack.c.l.b16 %v3287
        %v3360 = vunpack.c.l.b16 %v3288
        %v3361 = vunpack.c.l.b16 %v3289
        %v3362 = vunpack.c.l.b16 %v3290
        %v3363 = vunpack.c.l.b16 %v3291
        %v3364 = vunpack.c.l.b16 %v3292
        %v3365 = vunpack.c.l.b16 %v3293
        %v3366 = vunpack.c.l.b16 %v3294
        %v3367 = vunpack.c.l.b16 %v3295
        %v3368 = vunpack.c.l.b16 %v3296
        %v3369 = vunpack.c.l.b16 %v3297
        %v3370 = vunpack.c.l.b16 %v3298
        %v3371 = vunpack.c.l.b16 %v3299
        %v3372 = vunpack.c.l.b16 %v3300
        %v3373 = vunpack.c.l.b16 %v3301
        %v3374 = vunpack.c.l.b16 %v3302
        %v3375 = vunpack.c.l.b16 %v3303
        %v3376 = vunpack.c.l.b16 %v3304
        %v3377 = vunpack.c.l.b16 %v3305
        %v3378 = vunpack.c.l.b16 %v3306
        %v3379 = vunpack.c.l.b16 %v3307
        %v3380 = vunpack.c.l.b16 %v3308
        %v3381 = vunpack.c.l.b16 %v3309
        %v3382 = vunpack.c.l.b16 %v3310
        %v3383 = vunpack.c.l.b16 %v3311
        %v3384 = vunpack.c.l.b16 %v3312
        %v3385 = vunpack.c.l.b16 %v3313
        %v3386 = vunpack.c.l.b16 %v3314
        %v3387 = vunpack.c.l.b16 %v3315
        %v3388 = vunpack.c.l.b16 %v3316
        %v3389 = vunpack.c.l.b16 %v3317
        %v3390 = vpack.c.b16 %v3359, %v3358
        %v3391 = vpack.c.b16 %v3361, %v3360
        %v3392 = vpack.c.b16 %v3363, %v3362
        %v3393 = vpack.c.b16 %v3365, %v3364
        %v3394 = vpack.c.b16 %v3367, %v3366
        %v3395 = vpack.c.b16 %v3369, %v3368
        %v3396 = vpack.c.b16 %v3371, %v3370
        %v3397 = vpack.c.b16 %v3373, %v3372
        %v3398 = vpack.c.b16 %v3375, %v3374
        %v3399 = vpack.c.b16 %v3377, %v3376
        %v3400 = vpack.c.b16 %v3379, %v3378
        %v3401 = vpack.c.b16 %v3381, %v3380
        %v3402 = vpack.c.b16 %v3383, %v3382
        %v3403 = vpack.c.b16 %v3385, %v3384
        %v3404 = vpack.c.b16 %v3387, %v3386
        %v3405 = vpack.c.b16 %v3389, %v3388
        %3422 = vmatprep.subr.bf16.mxu0 0
        %3423 = vmatpush1.bf16.msra.mxu0 %v3390
        %3424 = vmatprep.subr.bf16.mxu0 0
        %3425 = vmatpush1.bf16.msra.mxu0 %v3391
        %3426 = vmatprep.subr.bf16.mxu0 0
        %3427 = vmatpush1.bf16.msra.mxu0 %v3392
        %3428 = vmatprep.subr.bf16.mxu0 0
        %3429 = vmatpush1.bf16.msra.mxu0 %v3393
        %3430 = vmatprep.subr.bf16.mxu0 0
        %3431 = vmatpush1.bf16.msra.mxu0 %v3394
        %3432 = vmatprep.subr.bf16.mxu0 0
        %3433 = vmatpush1.bf16.msra.mxu0 %v3395
        %3434 = vmatprep.subr.bf16.mxu0 0
        %3435 = vmatpush1.bf16.msra.mxu0 %v3396
        %3436 = vmatprep.subr.bf16.mxu0 0
        %3437 = vmatpush1.bf16.msra.mxu0 %v3397
        %3438 = vmatprep.subr.bf16.mxu0 0
        %3439 = vmatpush1.bf16.msra.mxu0 %v3398
        %3440 = vmatprep.subr.bf16.mxu0 0
        %3441 = vmatpush1.bf16.msra.mxu0 %v3399
        %3442 = vmatprep.subr.bf16.mxu0 0
        %3443 = vmatpush1.bf16.msra.mxu0 %v3400
        %3444 = vmatprep.subr.bf16.mxu0 0
        %3445 = vmatpush1.bf16.msra.mxu0 %v3401
        %3446 = vmatprep.subr.bf16.mxu0 0
        %3447 = vmatpush1.bf16.msra.mxu0 %v3402
        %3448 = vmatprep.subr.bf16.mxu0 0
        %3449 = vmatpush1.bf16.msra.mxu0 %v3403
        %3450 = vmatprep.subr.bf16.mxu0 0
        %3451 = vmatpush1.bf16.msra.mxu0 %v3404
        %3452 = vmatprep.subr.bf16.mxu0 0
        %3453 = vmatpush1.bf16.msra.mxu0 %v3405
        %3454 = vmatprep.mubr.bf16.mxu0 %v3284
        %3455 = vmatmul.mubr.bf16.gmra.mrb[0].mxu0 %v3283
        %v3456 = vpop.f32.mrb[0].mxu0
        %v3457 = vadd.f32 %v3324, %v3456
        %v3458 = vpop.f32.mrb[0].mxu0
        %v3459 = vpop.f32.mrb[0].mxu0
        %v3460 = vpop.f32.mrb[0].mxu0
        %3461 = vdwg.mxu0
        %v3462 = vadd.f32 %v3128, %v3457
        %s3463 = scalar_lea.vmem %s18, 1
        %v3464 = vld [vmem:[%s3463] sm:$0x1]
        %s3465 = scalar_lea.vmem %s19, 1
        %v3466 = vld [vmem:[%s3465] sm:$0x1]
        %3467 = vadd.xlane.f32.xlu0 %v3462
        %v3468 = vpop.xlane.xlu0 %3467
        %v3469 = vmul.f32 %v3468, %v1815
        %v3470 = vsub.f32 %v3462, %v3469
        %v3471 = vmul.f32 %v3470, %v3470
        %3472 = vadd.xlane.f32.xlu0 %v3471
        %v3473 = vpop.xlane.xlu0 %3472
        %v3474 = vmul.f32 %v3473, %v1815
        %v3475 = vadd.f32 %v3474, 1e-05
        %v3476 = vrsqrt.pop %v3475
        %v3477 = vmul.f32 %v3470, %v3476
        %v3479 = vlaneseq
        %v3480 = vshrl.u32 %v3479, 7
        %v3481 = vsub.s32 0, %v3480
        %v3482 = vrot.slane %v3464, %v3481
        %v3484 = vmul.f32 %v3477, %v3482
        %v3486 = vlaneseq
        %v3487 = vshrl.u32 %v3486, 7
        %v3488 = vsub.s32 0, %v3487
        %v3489 = vrot.slane %v3466, %v3488
        %v3491 = vadd.f32 %v3484, %v3489
        %v3492 = vld [vmem:[%s20] sm:$0x1]
        %v3493 = vld [vmem:[%s21] sm:$0x1]
        %3494 = vadd.xlane.f32.xlu0 %v3491
        %v3495 = vpop.xlane.xlu0 %3494
        %v3496 = vmul.f32 %v3495, %v1815
        %v3497 = vsub.f32 %v3491, %v3496
        %v3498 = vmul.f32 %v3497, %v3497
        %3499 = vadd.xlane.f32.xlu0 %v3498
        %v3500 = vpop.xlane.xlu0 %3499
        %v3501 = vmul.f32 %v3500, %v1815
        %v3502 = vadd.f32 %v3501, 1e-05
        %v3503 = vrsqrt.pop %v3502
        %v3504 = vmul.f32 %v3497, %v3503
        %v3506 = vlaneseq
        %v3507 = vshrl.u32 %v3506, 7
        %v3508 = vsub.s32 0, %v3507
        %v3509 = vrot.slane %v3492, %v3508
        %v3511 = vmul.f32 %v3504, %v3509
        %v3513 = vlaneseq
        %v3514 = vshrl.u32 %v3513, 7
        %v3515 = vsub.s32 0, %v3514
        %v3516 = vrot.slane %v3493, %v3515
        %v3518 = vadd.f32 %v3511, %v3516
        %3519 = vst [vmem:[%s899] sm:$0xff] %v3518
        %s3520 = sand.u32 %s538, 1
        %s3521 = scalar_lea.sflag [#allocation4], %s3520
        %s3522 = sand.u32 %s538, 1
        %s3523 = smul.addr %s3522, 8
        %s3524 = scalar_lea.vmem [#allocation19], %s3523
        // Predicated region
        $region149: #{tpu_custom_call.1} parent=107 // pred_check
          %p3525 = pneg %p548
        $region150: #{tpu_custom_call.1} parent=107 // pred_check_branch
          %3527 = sbr.rel (%p3525) target = $region152
        $region151: #{tpu_custom_call.1} parent=107 // pred_region
          %s3529 = ssub.s32 128, 128
          %3530 = vsyncadd %s3521, %s3529
          %s3531 = smul.addr %s48, 128
          %s3532 = scalar_lea.hbm %s22, %s3531
          %s3534 = sshll.u32 %s3524, 4
          %s3535 = int_to_ptr.vmem [resolvable:$true] %s3534
          %3537 = dma.vmem_to_hbm [thread:$0]  %s3535, 128, %s3532, %s3521
        $region152: #{tpu_custom_call.1} parent=107 // pred_fallthru
          _
      $region108: #{tpu_custom_call.1} parent=5 // pred_fallthru
        _
      %p3538 = scmp.le.s32.totalorder 2, %s43
      // Predicated region
      $region153: #{tpu_custom_call.1} parent=5 // pred_check
        %p3539 = pneg %p3538
      $region154: #{tpu_custom_call.1} parent=5 // pred_check_branch
        %3541 = sbr.rel (%p3539) target = $region156
      $region155: #{tpu_custom_call.1} parent=5 // pred_region
        %s3542 = ssub.s32 %s43, 2
        // Predicated region
        $region157: #{tpu_custom_call.1} parent=155 // pred_check
          %p3543 = pneg %p554
        $region158: #{tpu_custom_call.1} parent=155 // pred_check_branch
          %3545 = sbr.rel (%p3543) target = $region160
        $region159: #{tpu_custom_call.1} parent=155 // pred_region
          %s3546 = sand.u32 %s539, 1
          %s3547 = scalar_lea.sflag [#allocation4], %s3546
          %s3548 = sand.u32 %s539, 1
          %s3549 = smul.addr %s3548, 8
          %s3550 = scalar_lea.vmem [#allocation19], %s3549
          %3551 = dma.done %s3547, 128
        $region160: #{tpu_custom_call.1} parent=155 // pred_fallthru
          _
      $region156: #{tpu_custom_call.1} parent=5 // pred_fallthru
        _
    $region6: #{tpu_custom_call.1} parent=1 // loop_footer
      %s47 = sadd.s32 1, %s43
    $region7: #{tpu_custom_call.1} parent=1 // loop_footer_branch
      %42 = sbr.rel target = $region3
    $region8: #{tpu_custom_call.1} parent=1 // loop_exit
      _
    %3552 = vsyncpa [#allocation3], 1
    %s3553 = scalar_lea.sflag [#allocation3], 1
    %3554 = vsyncpa %s3553, 1
    %3555 = vsyncpa [#allocation6], 1
    %s3556 = scalar_lea.sflag [#allocation6], 1
    %3557 = vsyncpa %s3556, 1
    %3558 = vsyncpa [#allocation9], 1
    %s3559 = scalar_lea.sflag [#allocation9], 1
    %3560 = vsyncpa %s3559, 1
    %3561 = vsyncpa [#allocation12], 1
    %3562 = vsyncpa [#allocation15], 1
    %3563 = vsyncpa [#allocation18], 1
    %3564 = vsyncpa [#allocation4], 1
    %s3565 = scalar_lea.sflag [#allocation4], 1
    %3566 = vsyncpa %s3565, 1

</llo_original>
